<compile_context>
chip_gen: v5e
topology: v5e:2x2
jax: 0.10.0
libtpu: 0.0.40
codegen_flags: <defaults>
</compile_context>

<pallas_src>
import functools
import math

import numpy as np
import jax
import jax.numpy as jnp
from jax import lax
from jax.experimental import pallas as pl
from jax.experimental.pallas import tpu as pltpu

# ----------------------------- hyper-parameters ------------------------------
BATCH = 2
FEATURE_DIM = 32                       # ann_out_dim (CNN feature dim)
SNN_OUT_DIM = 16                       # snn.fc2.weight.size()[1]
CANN_NUM = 8
CANN_OUT_DIM = 4 * CANN_NUM            # 32
RESERVOIR_INP = FEATURE_DIM + SNN_OUT_DIM + CANN_OUT_DIM   # 80
RESERVOIR_NUM = 40
NUM_BLOCK = 5
NUM_BLOCKNEURON = RESERVOIR_NUM // NUM_BLOCK               # 8
NUM_CLASS = 10
SEQ_LEN_APS = 3
SEQ_LEN_GPS = 3
SEQ_LEN_DVS = 3
DVS_EXPAND = 3
EXPAND_LEN = int(SEQ_LEN_GPS * SEQ_LEN_APS
                 / np.gcd(SEQ_LEN_GPS, SEQ_LEN_DVS) * DVS_EXPAND)  # 9
THRESHOLD = 0.5                        # thr_base1 == ref_base1 == 0.5
W_FPS = W_GPS = W_DVS = W_HEAD = W_TIME = 1.0

# torch.quantile(mem.reshape(B, NB, M), q=0.8, dim=1)  (linear interpolation)
Q0 = (100.0 - 20.0) / 100.0
_POS = Q0 * (NUM_BLOCKNEURON - 1)
K_LO = int(np.floor(_POS))
K_HI = min(K_LO + 1, NUM_BLOCKNEURON - 1)
FRAC = float(_POS - K_LO)
NEG = -1e30

# Packed-weights buffer row offsets (single (TOTAL_ROWS, RESERVOIR_NUM) input).
WP_OFF = 0
WLAT_OFF = RESERVOIR_INP                         # 80
PARAM_OFF = RESERVOIR_INP + RESERVOIR_NUM        # 120  (7 param rows)
BMLP_ROW = PARAM_OFF + 7                         # 127  (bias, padded to R)
WMLP_OFF = PARAM_OFF + 8                         # 128  (readout, cols padded)
TOTAL_ROWS = WMLP_OFF + RESERVOIR_NUM            # 168

# Matmuls here are tiny ((18,80)@(80,40), (2,40)@(40,40)); HIGHEST precision is
# kept so the kernel's discrete spike decisions bit-match the f32 reference.
_HP = lax.Precision.HIGHEST


# --------------------------------- kernel ------------------------------------
def mhnn_kernel(comb_ref, w_ref, logits_ref, sumspike_ref):
  B, R, NB, M = BATCH, RESERVOIR_NUM, NUM_BLOCK, NUM_BLOCKNEURON

  dot = functools.partial(jnp.dot, preferred_element_type=jnp.float32,
                          precision=_HP)

  # ---- loop-invariant operands, hoisted above the unrolled recurrence ------
  wlat = w_ref[WLAT_OFF:PARAM_OFF, :]              # (R, R)
  params = w_ref[PARAM_OFF:PARAM_OFF + 7, :]       # (7, R)
  bcast = lambda row: jnp.broadcast_to(row, (B, R))
  decay = bcast(params[0:1, :])
  thr_beta = bcast(params[1:2, :])
  thr_decay = bcast(params[2:3, :])
  cur_beta = bcast(params[3:4, :])
  cur_decay = bcast(params[4:5, :])
  b_lat = bcast(params[6:7, :])

  # ---- hoisted input projection: ONE (T*B, INP)@(INP, R) MXU matmul --------
  # Row t*B+b of proj_all is step t / batch b:  x_t @ Wp^T + b_proj.
  proj_all = dot(comb_ref[...], w_ref[WP_OFF:WLAT_OFF, :]) + params[5:6, :]

  # Group of flat neuron n is (n % NUM_BLOCK); rolling the lane axis by a
  # multiple of NUM_BLOCK keeps every lane inside its own group.
  group_roll = lambda x, s: jnp.roll(x, s, axis=-1)

  def group_max(v):
    # log-tree over the 8 group members (offsets 5,10,20 cover all of them).
    for s in (NB, 2 * NB, 4 * NB):
      v = jnp.maximum(v, group_roll(v, s))
    return v

  zeros = jnp.zeros((B, R), jnp.float32)
  spike, mem, thr_tr, cur_tr, sumspk = zeros, zeros, zeros, zeros, zeros

  for t in range(EXPAND_LEN):          # fully unrolled; all indices static
    thr = THRESHOLD + thr_tr * thr_beta                 # thr_base1 + trace*beta
    cur = cur_tr * cur_beta                             # cur_base1 == 0
    lat = dot(spike, wlat) + b_lat
    state = proj_all[t * B:(t + 1) * B, :] + lat
    mem = (mem - spike * THRESHOLD) * decay + state + cur   # ref == ref_base1

    # ---- block-wise 80% quantile WTA (torch.quantile over each group) -----
    # strict-less rank of each neuron within its group (ties handled: the k-th
    # order statistic equals max over members with rank <= k).
    rank = (group_roll(mem, NB) < mem).astype(jnp.float32)
    for k in range(2, M):
      rank = rank + (group_roll(mem, k * NB) < mem).astype(jnp.float32)
    v_lo = group_max(jnp.where(rank <= float(K_LO), mem, NEG))
    v_hi = group_max(jnp.where(rank <= float(K_HI), mem, NEG))
    nps = v_lo + FRAC * (v_hi - v_lo)                   # per-neuron group quantile
    mem = jnp.maximum(mem - nps, 0.0)

    spike = (mem - thr > 0.0).astype(jnp.float32)
    thr_tr = thr_tr * thr_decay + spike
    cur_tr = cur_tr * cur_decay + spike
    sumspk = sumspk + spike

  sumspike_ref[...] = sumspk
  # readout: wmlp is column-padded to R with zeros; bias row likewise.
  out_full = (dot(sumspk, w_ref[WMLP_OFF:WMLP_OFF + R, :])
              + w_ref[BMLP_ROW:BMLP_ROW + 1, :])
  logits_ref[...] = out_full[:, :NUM_CLASS]


# ------------------------------ pallas wrapper --------------------------------
def mhnn_reservoir(comb2d, weights_packed):
  vmem = pl.BlockSpec(memory_space=pltpu.MemorySpace.VMEM)
  return pl.pallas_call(
      mhnn_kernel,
      out_shape=(jax.ShapeDtypeStruct((BATCH, NUM_CLASS), jnp.float32),
                 jax.ShapeDtypeStruct((BATCH, RESERVOIR_NUM), jnp.float32)),
      in_specs=[vmem, vmem],
      out_specs=(vmem, vmem),
  )(comb2d, weights_packed)


def build_combined(out1, out2, out3, out4, out5):
  """(EXPAND_LEN*BATCH, RESERVOIR_INP), row t*B+b, static t%3 gating baked in."""
  z1 = jnp.zeros_like(out1[0])
  z3 = jnp.zeros_like(out3[0])
  z4 = jnp.zeros_like(out4[0])
  z5 = jnp.zeros_like(out5[0])
  steps = []
  for t in range(EXPAND_LEN):
    if t % 3 == 2:
      o1, o3, o4, o5 = out1[t // 3], out3[t // 3], out4[t // 3], out5[t // 3]
    else:
      o1, o3, o4, o5 = z1, z3, z4, z5
    steps.append(jnp.concatenate([o1, out2[t], o3, o4, o5], axis=-1))
  return jnp.concatenate(steps, axis=0)


def mhnn_forward(cnn_feat, snn_out, gps_out, weights_packed, epoch=100):
  """Glue reproducing MHNN.forward given the front-end feature streams."""
  del epoch  # K_winner is computed from epoch but unused by wta_mem_update
  out1 = jnp.transpose(cnn_feat, (1, 0, 2))                    # (seq_aps, B, feat)
  out2 = snn_out                                               # (seq_dvs*3, B, snn)
  out3 = gps_out[:, :, CANN_NUM:3 * CANN_NUM] * W_GPS
  out4 = gps_out[:, :, :CANN_NUM] * W_TIME
  out5 = gps_out[:, :, -CANN_NUM:] * W_HEAD
  comb = build_combined(out1, out2, out3, out4, out5)
  logits, r_sumspike = mhnn_reservoir(comb, weights_packed)
  neuron_pop = jnp.transpose(
      r_sumspike.reshape(BATCH, NUM_BLOCK, NUM_BLOCKNEURON), (1, 0, 2))
  return logits, (neuron_pop[0], neuron_pop[1]), r_sumspike


# ------------------------------ parameter init ---------------------------------
def init_params(key):
  """Builds the single packed (TOTAL_ROWS, RESERVOIR_NUM) weights buffer."""
  keys = jax.random.split(key, 9)

  def linear(k, out_f, in_f):
    kw, kb = jax.random.split(k)
    bound = 1.0 / math.sqrt(in_f)
    w = jax.random.uniform(kw, (out_f, in_f), jnp.float32, minval=-bound, maxval=bound)
    b = jax.random.uniform(kb, (out_f,), jnp.float32, minval=-bound, maxval=bound)
    return w, b

  # project: Linear(reservior_inp_num -> reservoir_num), block-masked
  w_proj, b_proj = linear(keys[0], RESERVOIR_NUM, RESERVOIR_INP)
  mask = np.zeros((RESERVOIR_INP, RESERVOIR_NUM), np.float32)
  input_node_list = [0, FEATURE_DIM, SNN_OUT_DIM, CANN_NUM * 2, CANN_NUM]
  cum = np.cumsum(input_node_list)
  for i in range(len(cum) - 1):
    mask[cum[i]:cum[i + 1], NUM_BLOCKNEURON * i:NUM_BLOCKNEURON * (i + 1)] = 1.0
  w_proj = w_proj * jnp.asarray(mask.T)
  wp_t = w_proj.T                                   # (RESERVOIR_INP, R)

  # lateral_conn: sparse-masked, scaled 0.001
  w_lat, b_lat = linear(keys[1], RESERVOIR_NUM, RESERVOIR_NUM)
  lat_mask = (jax.random.uniform(keys[2], (RESERVOIR_NUM, RESERVOIR_NUM)) > 0.8
              ).astype(jnp.float32)
  lat_mask = lat_mask * (1.0 - jnp.eye(RESERVOIR_NUM, dtype=jnp.float32))
  w_lat = 0.001 * w_lat * lat_mask.T
  wlat_t = w_lat.T                                  # (R, R)

  # readout mlp, column-padded to R so it fits the packed buffer width
  w_mlp, b_mlp = linear(keys[3], NUM_CLASS, RESERVOIR_NUM)
  wmlp_pad = jnp.zeros((RESERVOIR_NUM, RESERVOIR_NUM), jnp.float32)
  wmlp_pad = wmlp_pad.at[:, :NUM_CLASS].set(w_mlp.T)
  bmlp_pad = jnp.zeros((1, RESERVOIR_NUM), jnp.float32)
  bmlp_pad = bmlp_pad.at[0, :NUM_CLASS].set(b_mlp)

  # per-neuron hyper-parameters (clamped to [0, 1] like forward() does)
  u = lambda k: jax.random.uniform(k, (RESERVOIR_NUM,), jnp.float32)
  decay = jnp.clip(u(keys[4]), 0.0, 1.0)
  thr_beta = 0.1 * u(keys[5])
  thr_decay = jnp.clip(0.5 * u(keys[6]), 0.0, 1.0)
  cur_beta = 0.1 * u(keys[7])
  cur_decay = jnp.clip(0.5 * u(keys[8]), 0.0, 1.0)
  # ref_beta1 / ref_decay1 are omitted: ref_trace never feeds back into the
  # forward dynamics, so it has no effect on any returned value.
  params = jnp.stack(
      [decay, thr_beta, thr_decay, cur_beta, cur_decay, b_proj, b_lat], axis=0)

  packed = jnp.concatenate([wp_t, wlat_t, params, bmlp_pad, wmlp_pad], axis=0)
  assert packed.shape == (TOTAL_ROWS, RESERVOIR_NUM)
  return packed


# ------------------------------ pure-JAX reference ------------------------------
def mhnn_reference(comb2d, w):
  wp_t = w[WP_OFF:WLAT_OFF]
  wlat_t = w[WLAT_OFF:PARAM_OFF]
  decay, thr_beta, thr_decay, cur_beta, cur_decay, b_proj, b_lat = (
      w[PARAM_OFF + i] for i in range(7))
  bmlp = w[BMLP_ROW, :NUM_CLASS]
  wmlp_t = w[WMLP_OFF:WMLP_OFF + RESERVOIR_NUM, :NUM_CLASS]

  B, R = BATCH, RESERVOIR_NUM
  r_spike = jnp.zeros((B, R), jnp.float32)
  r_mem = jnp.zeros((B, R), jnp.float32)
  r_sum = jnp.zeros((B, R), jnp.float32)
  thr_tr = jnp.zeros((B, R), jnp.float32)
  cur_tr = jnp.zeros((B, R), jnp.float32)

  for step in range(EXPAND_LEN):
    x = comb2d[step * B:(step + 1) * B]
    thr = THRESHOLD + thr_tr * thr_beta
    cur = cur_tr * cur_beta
    state = ((jnp.dot(x, wp_t, precision=_HP) + b_proj)
             + (jnp.dot(r_spike, wlat_t, precision=_HP) + b_lat))
    mem = (r_mem - r_spike * THRESHOLD) * decay + state + cur
    mem3 = mem.reshape(B, NUM_BLOCKNEURON, NUM_BLOCK)
    nps = jnp.quantile(mem3, Q0, axis=1, keepdims=True)
    mem = jnp.maximum(mem3 - nps, 0.0).reshape(B, R)
    spike = (mem - thr > 0.0).astype(jnp.float32)

    thr_tr = thr_tr * thr_decay + spike
    cur_tr = cur_tr * cur_decay + spike
    r_spike, r_mem = spike, mem
    r_sum = r_sum + spike
  # ref_trace intentionally absent: it never feeds back into the dynamics.

  logits = jnp.dot(r_sum, wmlp_t, precision=_HP) + bmlp
  return logits, r_sum


# ----------------------------------- main ---------------------------------------
if __name__ == "__main__":
  key = jax.random.PRNGKey(0)
  k_in, k_par = jax.random.split(key)
  k1, k2, k3 = jax.random.split(k_in, 3)

  # Precomputed front-end feature streams (stand-ins for external CNN/SNN/CANN).
  cnn_feat = jax.random.normal(k1, (BATCH, SEQ_LEN_APS, FEATURE_DIM), jnp.float32)
  snn_out = (jax.random.uniform(k2, (SEQ_LEN_DVS * 3, BATCH, SNN_OUT_DIM))
             > 0.5).astype(jnp.float32)
  gps_out = jax.random.uniform(k3, (SEQ_LEN_GPS, BATCH, CANN_OUT_DIM),
                               jnp.float32)

  weights = init_params(k_par)

  logits, (pop0, pop1), r_sumspike = mhnn_forward(cnn_feat, snn_out, gps_out, weights)
  jax.block_until_ready((logits, pop0, pop1, r_sumspike))

  # reference check
  out1 = jnp.transpose(cnn_feat, (1, 0, 2))
  out3 = gps_out[:, :, CANN_NUM:3 * CANN_NUM] * W_GPS
  out4 = gps_out[:, :, :CANN_NUM] * W_TIME
  out5 = gps_out[:, :, -CANN_NUM:] * W_HEAD
  comb = build_combined(out1, snn_out, out3, out4, out5)
  ref_logits, ref_sum = mhnn_reference(comb, weights)

  np.testing.assert_allclose(np.asarray(r_sumspike), np.asarray(ref_sum),
                             atol=1e-3, rtol=0)
  np.testing.assert_allclose(np.asarray(logits), np.asarray(ref_logits),
                             atol=1e-3, rtol=1e-3)
  assert logits.shape == (BATCH, NUM_CLASS)
  assert pop0.shape == (BATCH, NUM_BLOCKNEURON) and pop1.shape == (BATCH, NUM_BLOCKNEURON)
  print("KERNEL_OK")
</pallas_src>

<mosaic_0001>
module attributes {stable_mosaic.version = 11 : i64} {
  func.func @mhnn_kernel(%arg0: memref<18x80xf32, #tpu.memory_space<vmem>>, %arg1: memref<168x40xf32, #tpu.memory_space<vmem>>, %arg2: memref<2x10xf32, #tpu.memory_space<vmem>>, %arg3: memref<2x40xf32, #tpu.memory_space<vmem>>) attributes {dimension_semantics = [], scalar_prefetch = 0 : i64, scratch_operands = 0 : i64, tpu.core_type = #tpu.core_type<tc>} {
    %c80 = arith.constant 80 : index
    %c0 = arith.constant 0 : index
    %0 = vector.load %arg1[%c80, %c0] : memref<168x40xf32, #tpu.memory_space<vmem>>, vector<40x40xf32>
    %c120 = arith.constant 120 : index
    %c0_0 = arith.constant 0 : index
    %1 = vector.load %arg1[%c120, %c0_0] : memref<168x40xf32, #tpu.memory_space<vmem>>, vector<7x40xf32>
    %2 = vector.extract_strided_slice %1 {offsets = [0, 0], sizes = [1, 40], strides = [1, 1]} : vector<7x40xf32> to vector<1x40xf32>
    %3 = vector.shape_cast %2 : vector<1x40xf32> to vector<1x40xf32>
    %4 = vector.broadcast %3 : vector<1x40xf32> to vector<2x40xf32>
    %5 = vector.extract_strided_slice %1 {offsets = [1, 0], sizes = [1, 40], strides = [1, 1]} : vector<7x40xf32> to vector<1x40xf32>
    %6 = vector.shape_cast %5 : vector<1x40xf32> to vector<1x40xf32>
    %7 = vector.broadcast %6 : vector<1x40xf32> to vector<2x40xf32>
    %8 = vector.extract_strided_slice %1 {offsets = [2, 0], sizes = [1, 40], strides = [1, 1]} : vector<7x40xf32> to vector<1x40xf32>
    %9 = vector.shape_cast %8 : vector<1x40xf32> to vector<1x40xf32>
    %10 = vector.broadcast %9 : vector<1x40xf32> to vector<2x40xf32>
    %11 = vector.extract_strided_slice %1 {offsets = [3, 0], sizes = [1, 40], strides = [1, 1]} : vector<7x40xf32> to vector<1x40xf32>
    %12 = vector.shape_cast %11 : vector<1x40xf32> to vector<1x40xf32>
    %13 = vector.broadcast %12 : vector<1x40xf32> to vector<2x40xf32>
    %14 = vector.extract_strided_slice %1 {offsets = [4, 0], sizes = [1, 40], strides = [1, 1]} : vector<7x40xf32> to vector<1x40xf32>
    %15 = vector.shape_cast %14 : vector<1x40xf32> to vector<1x40xf32>
    %16 = vector.broadcast %15 : vector<1x40xf32> to vector<2x40xf32>
    %17 = vector.extract_strided_slice %1 {offsets = [6, 0], sizes = [1, 40], strides = [1, 1]} : vector<7x40xf32> to vector<1x40xf32>
    %18 = vector.shape_cast %17 : vector<1x40xf32> to vector<1x40xf32>
    %19 = vector.broadcast %18 : vector<1x40xf32> to vector<2x40xf32>
    %c0_1 = arith.constant 0 : index
    %c0_2 = arith.constant 0 : index
    %20 = vector.load %arg0[%c0_1, %c0_2] : memref<18x80xf32, #tpu.memory_space<vmem>>, vector<18x80xf32>
    %c0_3 = arith.constant 0 : index
    %c0_4 = arith.constant 0 : index
    %21 = vector.load %arg1[%c0_3, %c0_4] : memref<168x40xf32, #tpu.memory_space<vmem>>, vector<80x40xf32>
    %cst = arith.constant dense<0.000000e+00> : vector<18x40xf32>
    %22 = tpu.matmul %20, %21, %cst {dimension_numbers = #tpu.dot_dimension_numbers<[1], [0], [0], [1], [0, 0, 1, 1], [], []>, precision = #tpu.contract_precision<fp32>} : vector<18x80xf32>, vector<80x40xf32>, vector<18x40xf32> -> vector<18x40xf32>
    %23 = vector.extract_strided_slice %1 {offsets = [5, 0], sizes = [1, 40], strides = [1, 1]} : vector<7x40xf32> to vector<1x40xf32>
    %24 = vector.broadcast %23 : vector<1x40xf32> to vector<18x40xf32>
    %25 = arith.addf %22, %24 : vector<18x40xf32>
    %cst_5 = arith.constant 0.000000e+00 : f32
    %26 = vector.broadcast %cst_5 : f32 to vector<2x40xf32>
    %27 = arith.mulf %26, %7 : vector<2x40xf32>
    %cst_6 = arith.constant 5.000000e-01 : f32
    %28 = vector.broadcast %cst_6 : f32 to vector<2x40xf32>
    %29 = arith.addf %28, %27 : vector<2x40xf32>
    %30 = arith.mulf %26, %13 : vector<2x40xf32>
    %cst_7 = arith.constant dense<0.000000e+00> : vector<2x40xf32>
    %31 = tpu.matmul %26, %0, %cst_7 {dimension_numbers = #tpu.dot_dimension_numbers<[1], [0], [0], [1], [0, 0, 1, 1], [], []>, precision = #tpu.contract_precision<fp32>} : vector<2x40xf32>, vector<40x40xf32>, vector<2x40xf32> -> vector<2x40xf32>
    %32 = arith.addf %31, %19 : vector<2x40xf32>
    %33 = vector.extract_strided_slice %25 {offsets = [0, 0], sizes = [2, 40], strides = [1, 1]} : vector<18x40xf32> to vector<2x40xf32>
    %34 = arith.addf %33, %32 : vector<2x40xf32>
    %cst_8 = arith.constant 5.000000e-01 : f32
    %35 = vector.broadcast %cst_8 : f32 to vector<2x40xf32>
    %36 = arith.mulf %26, %35 : vector<2x40xf32>
    %37 = arith.subf %26, %36 : vector<2x40xf32>
    %38 = arith.mulf %37, %4 : vector<2x40xf32>
    %39 = arith.addf %38, %34 : vector<2x40xf32>
    %40 = arith.addf %39, %30 : vector<2x40xf32>
    %41 = vector.extract_strided_slice %40 {offsets = [0, 35], sizes = [2, 5], strides = [1, 1]} : vector<2x40xf32> to vector<2x5xf32>
    %42 = vector.extract_strided_slice %40 {offsets = [0, 0], sizes = [2, 35], strides = [1, 1]} : vector<2x40xf32> to vector<2x35xf32>
    %43 = tpu.concatenate %41, %42 in 1 : vector<2x5xf32>, vector<2x35xf32> -> vector<2x40xf32>
    %44 = arith.cmpf olt, %43, %40 : vector<2x40xf32>
    %45 = arith.extui %44 : vector<2x40xi1> to vector<2x40xi32>
    %46 = arith.sitofp %45 : vector<2x40xi32> to vector<2x40xf32>
    %47 = vector.extract_strided_slice %40 {offsets = [0, 30], sizes = [2, 10], strides = [1, 1]} : vector<2x40xf32> to vector<2x10xf32>
    %48 = vector.extract_strided_slice %40 {offsets = [0, 0], sizes = [2, 30], strides = [1, 1]} : vector<2x40xf32> to vector<2x30xf32>
    %49 = tpu.concatenate %47, %48 in 1 : vector<2x10xf32>, vector<2x30xf32> -> vector<2x40xf32>
    %50 = arith.cmpf olt, %49, %40 : vector<2x40xf32>
    %51 = arith.extui %50 : vector<2x40xi1> to vector<2x40xi32>
    %52 = arith.sitofp %51 : vector<2x40xi32> to vector<2x40xf32>
    %53 = arith.addf %46, %52 : vector<2x40xf32>
    %54 = vector.extract_strided_slice %40 {offsets = [0, 25], sizes = [2, 15], strides = [1, 1]} : vector<2x40xf32> to vector<2x15xf32>
    %55 = vector.extract_strided_slice %40 {offsets = [0, 0], sizes = [2, 25], strides = [1, 1]} : vector<2x40xf32> to vector<2x25xf32>
    %56 = tpu.concatenate %54, %55 in 1 : vector<2x15xf32>, vector<2x25xf32> -> vector<2x40xf32>
    %57 = arith.cmpf olt, %56, %40 : vector<2x40xf32>
    %58 = arith.extui %57 : vector<2x40xi1> to vector<2x40xi32>
    %59 = arith.sitofp %58 : vector<2x40xi32> to vector<2x40xf32>
    %60 = arith.addf %53, %59 : vector<2x40xf32>
    %61 = vector.extract_strided_slice %40 {offsets = [0, 20], sizes = [2, 20], strides = [1, 1]} : vector<2x40xf32> to vector<2x20xf32>
    %62 = vector.extract_strided_slice %40 {offsets = [0, 0], sizes = [2, 20], strides = [1, 1]} : vector<2x40xf32> to vector<2x20xf32>
    %63 = tpu.concatenate %61, %62 in 1 : vector<2x20xf32>, vector<2x20xf32> -> vector<2x40xf32>
    %64 = arith.cmpf olt, %63, %40 : vector<2x40xf32>
    %65 = arith.extui %64 : vector<2x40xi1> to vector<2x40xi32>
    %66 = arith.sitofp %65 : vector<2x40xi32> to vector<2x40xf32>
    %67 = arith.addf %60, %66 : vector<2x40xf32>
    %68 = vector.extract_strided_slice %40 {offsets = [0, 15], sizes = [2, 25], strides = [1, 1]} : vector<2x40xf32> to vector<2x25xf32>
    %69 = vector.extract_strided_slice %40 {offsets = [0, 0], sizes = [2, 15], strides = [1, 1]} : vector<2x40xf32> to vector<2x15xf32>
    %70 = tpu.concatenate %68, %69 in 1 : vector<2x25xf32>, vector<2x15xf32> -> vector<2x40xf32>
    %71 = arith.cmpf olt, %70, %40 : vector<2x40xf32>
    %72 = arith.extui %71 : vector<2x40xi1> to vector<2x40xi32>
    %73 = arith.sitofp %72 : vector<2x40xi32> to vector<2x40xf32>
    %74 = arith.addf %67, %73 : vector<2x40xf32>
    %75 = vector.extract_strided_slice %40 {offsets = [0, 10], sizes = [2, 30], strides = [1, 1]} : vector<2x40xf32> to vector<2x30xf32>
    %76 = vector.extract_strided_slice %40 {offsets = [0, 0], sizes = [2, 10], strides = [1, 1]} : vector<2x40xf32> to vector<2x10xf32>
    %77 = tpu.concatenate %75, %76 in 1 : vector<2x30xf32>, vector<2x10xf32> -> vector<2x40xf32>
    %78 = arith.cmpf olt, %77, %40 : vector<2x40xf32>
    %79 = arith.extui %78 : vector<2x40xi1> to vector<2x40xi32>
    %80 = arith.sitofp %79 : vector<2x40xi32> to vector<2x40xf32>
    %81 = arith.addf %74, %80 : vector<2x40xf32>
    %82 = vector.extract_strided_slice %40 {offsets = [0, 5], sizes = [2, 35], strides = [1, 1]} : vector<2x40xf32> to vector<2x35xf32>
    %83 = vector.extract_strided_slice %40 {offsets = [0, 0], sizes = [2, 5], strides = [1, 1]} : vector<2x40xf32> to vector<2x5xf32>
    %84 = tpu.concatenate %82, %83 in 1 : vector<2x35xf32>, vector<2x5xf32> -> vector<2x40xf32>
    %85 = arith.cmpf olt, %84, %40 : vector<2x40xf32>
    %86 = arith.extui %85 : vector<2x40xi1> to vector<2x40xi32>
    %87 = arith.sitofp %86 : vector<2x40xi32> to vector<2x40xf32>
    %88 = arith.addf %81, %87 : vector<2x40xf32>
    %cst_9 = arith.constant 5.000000e+00 : f32
    %89 = vector.broadcast %cst_9 : f32 to vector<2x40xf32>
    %90 = arith.cmpf ole, %88, %89 : vector<2x40xf32>
    %cst_10 = arith.constant -1.000000e+30 : f32
    %91 = vector.broadcast %cst_10 : f32 to vector<2x40xf32>
    %92 = arith.select %90, %40, %91 : vector<2x40xi1>, vector<2x40xf32>
    %93 = vector.extract_strided_slice %92 {offsets = [0, 35], sizes = [2, 5], strides = [1, 1]} : vector<2x40xf32> to vector<2x5xf32>
    %94 = vector.extract_strided_slice %92 {offsets = [0, 0], sizes = [2, 35], strides = [1, 1]} : vector<2x40xf32> to vector<2x35xf32>
    %95 = tpu.concatenate %93, %94 in 1 : vector<2x5xf32>, vector<2x35xf32> -> vector<2x40xf32>
    %96 = arith.maximumf %92, %95 : vector<2x40xf32>
    %97 = vector.extract_strided_slice %96 {offsets = [0, 30], sizes = [2, 10], strides = [1, 1]} : vector<2x40xf32> to vector<2x10xf32>
    %98 = vector.extract_strided_slice %96 {offsets = [0, 0], sizes = [2, 30], strides = [1, 1]} : vector<2x40xf32> to vector<2x30xf32>
    %99 = tpu.concatenate %97, %98 in 1 : vector<2x10xf32>, vector<2x30xf32> -> vector<2x40xf32>
    %100 = arith.maximumf %96, %99 : vector<2x40xf32>
    %101 = vector.extract_strided_slice %100 {offsets = [0, 20], sizes = [2, 20], strides = [1, 1]} : vector<2x40xf32> to vector<2x20xf32>
    %102 = vector.extract_strided_slice %100 {offsets = [0, 0], sizes = [2, 20], strides = [1, 1]} : vector<2x40xf32> to vector<2x20xf32>
    %103 = tpu.concatenate %101, %102 in 1 : vector<2x20xf32>, vector<2x20xf32> -> vector<2x40xf32>
    %104 = arith.maximumf %100, %103 : vector<2x40xf32>
    %cst_11 = arith.constant 6.000000e+00 : f32
    %105 = vector.broadcast %cst_11 : f32 to vector<2x40xf32>
    %106 = arith.cmpf ole, %88, %105 : vector<2x40xf32>
    %cst_12 = arith.constant -1.000000e+30 : f32
    %107 = vector.broadcast %cst_12 : f32 to vector<2x40xf32>
    %108 = arith.select %106, %40, %107 : vector<2x40xi1>, vector<2x40xf32>
    %109 = vector.extract_strided_slice %108 {offsets = [0, 35], sizes = [2, 5], strides = [1, 1]} : vector<2x40xf32> to vector<2x5xf32>
    %110 = vector.extract_strided_slice %108 {offsets = [0, 0], sizes = [2, 35], strides = [1, 1]} : vector<2x40xf32> to vector<2x35xf32>
    %111 = tpu.concatenate %109, %110 in 1 : vector<2x5xf32>, vector<2x35xf32> -> vector<2x40xf32>
    %112 = arith.maximumf %108, %111 : vector<2x40xf32>
    %113 = vector.extract_strided_slice %112 {offsets = [0, 30], sizes = [2, 10], strides = [1, 1]} : vector<2x40xf32> to vector<2x10xf32>
    %114 = vector.extract_strided_slice %112 {offsets = [0, 0], sizes = [2, 30], strides = [1, 1]} : vector<2x40xf32> to vector<2x30xf32>
    %115 = tpu.concatenate %113, %114 in 1 : vector<2x10xf32>, vector<2x30xf32> -> vector<2x40xf32>
    %116 = arith.maximumf %112, %115 : vector<2x40xf32>
    %117 = vector.extract_strided_slice %116 {offsets = [0, 20], sizes = [2, 20], strides = [1, 1]} : vector<2x40xf32> to vector<2x20xf32>
    %118 = vector.extract_strided_slice %116 {offsets = [0, 0], sizes = [2, 20], strides = [1, 1]} : vector<2x40xf32> to vector<2x20xf32>
    %119 = tpu.concatenate %117, %118 in 1 : vector<2x20xf32>, vector<2x20xf32> -> vector<2x40xf32>
    %120 = arith.maximumf %116, %119 : vector<2x40xf32>
    %121 = arith.subf %120, %104 : vector<2x40xf32>
    %cst_13 = arith.constant 6.000000e-01 : f32
    %122 = vector.broadcast %cst_13 : f32 to vector<2x40xf32>
    %123 = arith.mulf %122, %121 : vector<2x40xf32>
    %124 = arith.addf %104, %123 : vector<2x40xf32>
    %125 = arith.subf %40, %124 : vector<2x40xf32>
    %cst_14 = arith.constant 0.000000e+00 : f32
    %126 = vector.broadcast %cst_14 : f32 to vector<2x40xf32>
    %127 = arith.maximumf %125, %126 : vector<2x40xf32>
    %128 = arith.subf %127, %29 : vector<2x40xf32>
    %cst_15 = arith.constant 0.000000e+00 : f32
    %129 = vector.broadcast %cst_15 : f32 to vector<2x40xf32>
    %130 = arith.cmpf ogt, %128, %129 : vector<2x40xf32>
    %131 = arith.extui %130 : vector<2x40xi1> to vector<2x40xi32>
    %132 = arith.sitofp %131 : vector<2x40xi32> to vector<2x40xf32>
    %133 = arith.mulf %26, %10 : vector<2x40xf32>
    %134 = arith.addf %133, %132 : vector<2x40xf32>
    %135 = arith.mulf %26, %16 : vector<2x40xf32>
    %136 = arith.addf %135, %132 : vector<2x40xf32>
    %137 = arith.addf %26, %132 : vector<2x40xf32>
    %138 = arith.mulf %134, %7 : vector<2x40xf32>
    %cst_16 = arith.constant 5.000000e-01 : f32
    %139 = vector.broadcast %cst_16 : f32 to vector<2x40xf32>
    %140 = arith.addf %139, %138 : vector<2x40xf32>
    %141 = arith.mulf %136, %13 : vector<2x40xf32>
    %cst_17 = arith.constant dense<0.000000e+00> : vector<2x40xf32>
    %142 = tpu.matmul %132, %0, %cst_17 {dimension_numbers = #tpu.dot_dimension_numbers<[1], [0], [0], [1], [0, 0, 1, 1], [], []>, precision = #tpu.contract_precision<fp32>} : vector<2x40xf32>, vector<40x40xf32>, vector<2x40xf32> -> vector<2x40xf32>
    %143 = arith.addf %142, %19 : vector<2x40xf32>
    %144 = vector.extract_strided_slice %25 {offsets = [2, 0], sizes = [2, 40], strides = [1, 1]} : vector<18x40xf32> to vector<2x40xf32>
    %145 = arith.addf %144, %143 : vector<2x40xf32>
    %cst_18 = arith.constant 5.000000e-01 : f32
    %146 = vector.broadcast %cst_18 : f32 to vector<2x40xf32>
    %147 = arith.mulf %132, %146 : vector<2x40xf32>
    %148 = arith.subf %127, %147 : vector<2x40xf32>
    %149 = arith.mulf %148, %4 : vector<2x40xf32>
    %150 = arith.addf %149, %145 : vector<2x40xf32>
    %151 = arith.addf %150, %141 : vector<2x40xf32>
    %152 = vector.extract_strided_slice %151 {offsets = [0, 35], sizes = [2, 5], strides = [1, 1]} : vector<2x40xf32> to vector<2x5xf32>
    %153 = vector.extract_strided_slice %151 {offsets = [0, 0], sizes = [2, 35], strides = [1, 1]} : vector<2x40xf32> to vector<2x35xf32>
    %154 = tpu.concatenate %152, %153 in 1 : vector<2x5xf32>, vector<2x35xf32> -> vector<2x40xf32>
    %155 = arith.cmpf olt, %154, %151 : vector<2x40xf32>
    %156 = arith.extui %155 : vector<2x40xi1> to vector<2x40xi32>
    %157 = arith.sitofp %156 : vector<2x40xi32> to vector<2x40xf32>
    %158 = vector.extract_strided_slice %151 {offsets = [0, 30], sizes = [2, 10], strides = [1, 1]} : vector<2x40xf32> to vector<2x10xf32>
    %159 = vector.extract_strided_slice %151 {offsets = [0, 0], sizes = [2, 30], strides = [1, 1]} : vector<2x40xf32> to vector<2x30xf32>
    %160 = tpu.concatenate %158, %159 in 1 : vector<2x10xf32>, vector<2x30xf32> -> vector<2x40xf32>
    %161 = arith.cmpf olt, %160, %151 : vector<2x40xf32>
    %162 = arith.extui %161 : vector<2x40xi1> to vector<2x40xi32>
    %163 = arith.sitofp %162 : vector<2x40xi32> to vector<2x40xf32>
    %164 = arith.addf %157, %163 : vector<2x40xf32>
    %165 = vector.extract_strided_slice %151 {offsets = [0, 25], sizes = [2, 15], strides = [1, 1]} : vector<2x40xf32> to vector<2x15xf32>
    %166 = vector.extract_strided_slice %151 {offsets = [0, 0], sizes = [2, 25], strides = [1, 1]} : vector<2x40xf32> to vector<2x25xf32>
    %167 = tpu.concatenate %165, %166 in 1 : vector<2x15xf32>, vector<2x25xf32> -> vector<2x40xf32>
    %168 = arith.cmpf olt, %167, %151 : vector<2x40xf32>
    %169 = arith.extui %168 : vector<2x40xi1> to vector<2x40xi32>
    %170 = arith.sitofp %169 : vector<2x40xi32> to vector<2x40xf32>
    %171 = arith.addf %164, %170 : vector<2x40xf32>
    %172 = vector.extract_strided_slice %151 {offsets = [0, 20], sizes = [2, 20], strides = [1, 1]} : vector<2x40xf32> to vector<2x20xf32>
    %173 = vector.extract_strided_slice %151 {offsets = [0, 0], sizes = [2, 20], strides = [1, 1]} : vector<2x40xf32> to vector<2x20xf32>
    %174 = tpu.concatenate %172, %173 in 1 : vector<2x20xf32>, vector<2x20xf32> -> vector<2x40xf32>
    %175 = arith.cmpf olt, %174, %151 : vector<2x40xf32>
    %176 = arith.extui %175 : vector<2x40xi1> to vector<2x40xi32>
    %177 = arith.sitofp %176 : vector<2x40xi32> to vector<2x40xf32>
    %178 = arith.addf %171, %177 : vector<2x40xf32>
    %179 = vector.extract_strided_slice %151 {offsets = [0, 15], sizes = [2, 25], strides = [1, 1]} : vector<2x40xf32> to vector<2x25xf32>
    %180 = vector.extract_strided_slice %151 {offsets = [0, 0], sizes = [2, 15], strides = [1, 1]} : vector<2x40xf32> to vector<2x15xf32>
    %181 = tpu.concatenate %179, %180 in 1 : vector<2x25xf32>, vector<2x15xf32> -> vector<2x40xf32>
    %182 = arith.cmpf olt, %181, %151 : vector<2x40xf32>
    %183 = arith.extui %182 : vector<2x40xi1> to vector<2x40xi32>
    %184 = arith.sitofp %183 : vector<2x40xi32> to vector<2x40xf32>
    %185 = arith.addf %178, %184 : vector<2x40xf32>
    %186 = vector.extract_strided_slice %151 {offsets = [0, 10], sizes = [2, 30], strides = [1, 1]} : vector<2x40xf32> to vector<2x30xf32>
    %187 = vector.extract_strided_slice %151 {offsets = [0, 0], sizes = [2, 10], strides = [1, 1]} : vector<2x40xf32> to vector<2x10xf32>
    %188 = tpu.concatenate %186, %187 in 1 : vector<2x30xf32>, vector<2x10xf32> -> vector<2x40xf32>
    %189 = arith.cmpf olt, %188, %151 : vector<2x40xf32>
    %190 = arith.extui %189 : vector<2x40xi1> to vector<2x40xi32>
    %191 = arith.sitofp %190 : vector<2x40xi32> to vector<2x40xf32>
    %192 = arith.addf %185, %191 : vector<2x40xf32>
    %193 = vector.extract_strided_slice %151 {offsets = [0, 5], sizes = [2, 35], strides = [1, 1]} : vector<2x40xf32> to vector<2x35xf32>
    %194 = vector.extract_strided_slice %151 {offsets = [0, 0], sizes = [2, 5], strides = [1, 1]} : vector<2x40xf32> to vector<2x5xf32>
    %195 = tpu.concatenate %193, %194 in 1 : vector<2x35xf32>, vector<2x5xf32> -> vector<2x40xf32>
    %196 = arith.cmpf olt, %195, %151 : vector<2x40xf32>
    %197 = arith.extui %196 : vector<2x40xi1> to vector<2x40xi32>
    %198 = arith.sitofp %197 : vector<2x40xi32> to vector<2x40xf32>
    %199 = arith.addf %192, %198 : vector<2x40xf32>
    %cst_19 = arith.constant 5.000000e+00 : f32
    %200 = vector.broadcast %cst_19 : f32 to vector<2x40xf32>
    %201 = arith.cmpf ole, %199, %200 : vector<2x40xf32>
    %cst_20 = arith.constant -1.000000e+30 : f32
    %202 = vector.broadcast %cst_20 : f32 to vector<2x40xf32>
    %203 = arith.select %201, %151, %202 : vector<2x40xi1>, vector<2x40xf32>
    %204 = vector.extract_strided_slice %203 {offsets = [0, 35], sizes = [2, 5], strides = [1, 1]} : vector<2x40xf32> to vector<2x5xf32>
    %205 = vector.extract_strided_slice %203 {offsets = [0, 0], sizes = [2, 35], strides = [1, 1]} : vector<2x40xf32> to vector<2x35xf32>
    %206 = tpu.concatenate %204, %205 in 1 : vector<2x5xf32>, vector<2x35xf32> -> vector<2x40xf32>
    %207 = arith.maximumf %203, %206 : vector<2x40xf32>
    %208 = vector.extract_strided_slice %207 {offsets = [0, 30], sizes = [2, 10], strides = [1, 1]} : vector<2x40xf32> to vector<2x10xf32>
    %209 = vector.extract_strided_slice %207 {offsets = [0, 0], sizes = [2, 30], strides = [1, 1]} : vector<2x40xf32> to vector<2x30xf32>
    %210 = tpu.concatenate %208, %209 in 1 : vector<2x10xf32>, vector<2x30xf32> -> vector<2x40xf32>
    %211 = arith.maximumf %207, %210 : vector<2x40xf32>
    %212 = vector.extract_strided_slice %211 {offsets = [0, 20], sizes = [2, 20], strides = [1, 1]} : vector<2x40xf32> to vector<2x20xf32>
    %213 = vector.extract_strided_slice %211 {offsets = [0, 0], sizes = [2, 20], strides = [1, 1]} : vector<2x40xf32> to vector<2x20xf32>
    %214 = tpu.concatenate %212, %213 in 1 : vector<2x20xf32>, vector<2x20xf32> -> vector<2x40xf32>
    %215 = arith.maximumf %211, %214 : vector<2x40xf32>
    %cst_21 = arith.constant 6.000000e+00 : f32
    %216 = vector.broadcast %cst_21 : f32 to vector<2x40xf32>
    %217 = arith.cmpf ole, %199, %216 : vector<2x40xf32>
    %cst_22 = arith.constant -1.000000e+30 : f32
    %218 = vector.broadcast %cst_22 : f32 to vector<2x40xf32>
    %219 = arith.select %217, %151, %218 : vector<2x40xi1>, vector<2x40xf32>
    %220 = vector.extract_strided_slice %219 {offsets = [0, 35], sizes = [2, 5], strides = [1, 1]} : vector<2x40xf32> to vector<2x5xf32>
    %221 = vector.extract_strided_slice %219 {offsets = [0, 0], sizes = [2, 35], strides = [1, 1]} : vector<2x40xf32> to vector<2x35xf32>
    %222 = tpu.concatenate %220, %221 in 1 : vector<2x5xf32>, vector<2x35xf32> -> vector<2x40xf32>
    %223 = arith.maximumf %219, %222 : vector<2x40xf32>
    %224 = vector.extract_strided_slice %223 {offsets = [0, 30], sizes = [2, 10], strides = [1, 1]} : vector<2x40xf32> to vector<2x10xf32>
    %225 = vector.extract_strided_slice %223 {offsets = [0, 0], sizes = [2, 30], strides = [1, 1]} : vector<2x40xf32> to vector<2x30xf32>
    %226 = tpu.concatenate %224, %225 in 1 : vector<2x10xf32>, vector<2x30xf32> -> vector<2x40xf32>
    %227 = arith.maximumf %223, %226 : vector<2x40xf32>
    %228 = vector.extract_strided_slice %227 {offsets = [0, 20], sizes = [2, 20], strides = [1, 1]} : vector<2x40xf32> to vector<2x20xf32>
    %229 = vector.extract_strided_slice %227 {offsets = [0, 0], sizes = [2, 20], strides = [1, 1]} : vector<2x40xf32> to vector<2x20xf32>
    %230 = tpu.concatenate %228, %229 in 1 : vector<2x20xf32>, vector<2x20xf32> -> vector<2x40xf32>
    %231 = arith.maximumf %227, %230 : vector<2x40xf32>
    %232 = arith.subf %231, %215 : vector<2x40xf32>
    %cst_23 = arith.constant 6.000000e-01 : f32
    %233 = vector.broadcast %cst_23 : f32 to vector<2x40xf32>
    %234 = arith.mulf %233, %232 : vector<2x40xf32>
    %235 = arith.addf %215, %234 : vector<2x40xf32>
    %236 = arith.subf %151, %235 : vector<2x40xf32>
    %cst_24 = arith.constant 0.000000e+00 : f32
    %237 = vector.broadcast %cst_24 : f32 to vector<2x40xf32>
    %238 = arith.maximumf %236, %237 : vector<2x40xf32>
    %239 = arith.subf %238, %140 : vector<2x40xf32>
    %cst_25 = arith.constant 0.000000e+00 : f32
    %240 = vector.broadcast %cst_25 : f32 to vector<2x40xf32>
    %241 = arith.cmpf ogt, %239, %240 : vector<2x40xf32>
    %242 = arith.extui %241 : vector<2x40xi1> to vector<2x40xi32>
    %243 = arith.sitofp %242 : vector<2x40xi32> to vector<2x40xf32>
    %244 = arith.mulf %134, %10 : vector<2x40xf32>
    %245 = arith.addf %244, %243 : vector<2x40xf32>
    %246 = arith.mulf %136, %16 : vector<2x40xf32>
    %247 = arith.addf %246, %243 : vector<2x40xf32>
    %248 = arith.addf %137, %243 : vector<2x40xf32>
    %249 = arith.mulf %245, %7 : vector<2x40xf32>
    %cst_26 = arith.constant 5.000000e-01 : f32
    %250 = vector.broadcast %cst_26 : f32 to vector<2x40xf32>
    %251 = arith.addf %250, %249 : vector<2x40xf32>
    %252 = arith.mulf %247, %13 : vector<2x40xf32>
    %cst_27 = arith.constant dense<0.000000e+00> : vector<2x40xf32>
    %253 = tpu.matmul %243, %0, %cst_27 {dimension_numbers = #tpu.dot_dimension_numbers<[1], [0], [0], [1], [0, 0, 1, 1], [], []>, precision = #tpu.contract_precision<fp32>} : vector<2x40xf32>, vector<40x40xf32>, vector<2x40xf32> -> vector<2x40xf32>
    %254 = arith.addf %253, %19 : vector<2x40xf32>
    %255 = vector.extract_strided_slice %25 {offsets = [4, 0], sizes = [2, 40], strides = [1, 1]} : vector<18x40xf32> to vector<2x40xf32>
    %256 = arith.addf %255, %254 : vector<2x40xf32>
    %cst_28 = arith.constant 5.000000e-01 : f32
    %257 = vector.broadcast %cst_28 : f32 to vector<2x40xf32>
    %258 = arith.mulf %243, %257 : vector<2x40xf32>
    %259 = arith.subf %238, %258 : vector<2x40xf32>
    %260 = arith.mulf %259, %4 : vector<2x40xf32>
    %261 = arith.addf %260, %256 : vector<2x40xf32>
    %262 = arith.addf %261, %252 : vector<2x40xf32>
    %263 = vector.extract_strided_slice %262 {offsets = [0, 35], sizes = [2, 5], strides = [1, 1]} : vector<2x40xf32> to vector<2x5xf32>
    %264 = vector.extract_strided_slice %262 {offsets = [0, 0], sizes = [2, 35], strides = [1, 1]} : vector<2x40xf32> to vector<2x35xf32>
    %265 = tpu.concatenate %263, %264 in 1 : vector<2x5xf32>, vector<2x35xf32> -> vector<2x40xf32>
    %266 = arith.cmpf olt, %265, %262 : vector<2x40xf32>
    %267 = arith.extui %266 : vector<2x40xi1> to vector<2x40xi32>
    %268 = arith.sitofp %267 : vector<2x40xi32> to vector<2x40xf32>
    %269 = vector.extract_strided_slice %262 {offsets = [0, 30], sizes = [2, 10], strides = [1, 1]} : vector<2x40xf32> to vector<2x10xf32>
    %270 = vector.extract_strided_slice %262 {offsets = [0, 0], sizes = [2, 30], strides = [1, 1]} : vector<2x40xf32> to vector<2x30xf32>
    %271 = tpu.concatenate %269, %270 in 1 : vector<2x10xf32>, vector<2x30xf32> -> vector<2x40xf32>
    %272 = arith.cmpf olt, %271, %262 : vector<2x40xf32>
    %273 = arith.extui %272 : vector<2x40xi1> to vector<2x40xi32>
    %274 = arith.sitofp %273 : vector<2x40xi32> to vector<2x40xf32>
    %275 = arith.addf %268, %274 : vector<2x40xf32>
    %276 = vector.extract_strided_slice %262 {offsets = [0, 25], sizes = [2, 15], strides = [1, 1]} : vector<2x40xf32> to vector<2x15xf32>
    %277 = vector.extract_strided_slice %262 {offsets = [0, 0], sizes = [2, 25], strides = [1, 1]} : vector<2x40xf32> to vector<2x25xf32>
    %278 = tpu.concatenate %276, %277 in 1 : vector<2x15xf32>, vector<2x25xf32> -> vector<2x40xf32>
    %279 = arith.cmpf olt, %278, %262 : vector<2x40xf32>
    %280 = arith.extui %279 : vector<2x40xi1> to vector<2x40xi32>
    %281 = arith.sitofp %280 : vector<2x40xi32> to vector<2x40xf32>
    %282 = arith.addf %275, %281 : vector<2x40xf32>
    %283 = vector.extract_strided_slice %262 {offsets = [0, 20], sizes = [2, 20], strides = [1, 1]} : vector<2x40xf32> to vector<2x20xf32>
    %284 = vector.extract_strided_slice %262 {offsets = [0, 0], sizes = [2, 20], strides = [1, 1]} : vector<2x40xf32> to vector<2x20xf32>
    %285 = tpu.concatenate %283, %284 in 1 : vector<2x20xf32>, vector<2x20xf32> -> vector<2x40xf32>
    %286 = arith.cmpf olt, %285, %262 : vector<2x40xf32>
    %287 = arith.extui %286 : vector<2x40xi1> to vector<2x40xi32>
    %288 = arith.sitofp %287 : vector<2x40xi32> to vector<2x40xf32>
    %289 = arith.addf %282, %288 : vector<2x40xf32>
    %290 = vector.extract_strided_slice %262 {offsets = [0, 15], sizes = [2, 25], strides = [1, 1]} : vector<2x40xf32> to vector<2x25xf32>
    %291 = vector.extract_strided_slice %262 {offsets = [0, 0], sizes = [2, 15], strides = [1, 1]} : vector<2x40xf32> to vector<2x15xf32>
    %292 = tpu.concatenate %290, %291 in 1 : vector<2x25xf32>, vector<2x15xf32> -> vector<2x40xf32>
    %293 = arith.cmpf olt, %292, %262 : vector<2x40xf32>
    %294 = arith.extui %293 : vector<2x40xi1> to vector<2x40xi32>
    %295 = arith.sitofp %294 : vector<2x40xi32> to vector<2x40xf32>
    %296 = arith.addf %289, %295 : vector<2x40xf32>
    %297 = vector.extract_strided_slice %262 {offsets = [0, 10], sizes = [2, 30], strides = [1, 1]} : vector<2x40xf32> to vector<2x30xf32>
    %298 = vector.extract_strided_slice %262 {offsets = [0, 0], sizes = [2, 10], strides = [1, 1]} : vector<2x40xf32> to vector<2x10xf32>
    %299 = tpu.concatenate %297, %298 in 1 : vector<2x30xf32>, vector<2x10xf32> -> vector<2x40xf32>
    %300 = arith.cmpf olt, %299, %262 : vector<2x40xf32>
    %301 = arith.extui %300 : vector<2x40xi1> to vector<2x40xi32>
    %302 = arith.sitofp %301 : vector<2x40xi32> to vector<2x40xf32>
    %303 = arith.addf %296, %302 : vector<2x40xf32>
    %304 = vector.extract_strided_slice %262 {offsets = [0, 5], sizes = [2, 35], strides = [1, 1]} : vector<2x40xf32> to vector<2x35xf32>
    %305 = vector.extract_strided_slice %262 {offsets = [0, 0], sizes = [2, 5], strides = [1, 1]} : vector<2x40xf32> to vector<2x5xf32>
    %306 = tpu.concatenate %304, %305 in 1 : vector<2x35xf32>, vector<2x5xf32> -> vector<2x40xf32>
    %307 = arith.cmpf olt, %306, %262 : vector<2x40xf32>
    %308 = arith.extui %307 : vector<2x40xi1> to vector<2x40xi32>
    %309 = arith.sitofp %308 : vector<2x40xi32> to vector<2x40xf32>
    %310 = arith.addf %303, %309 : vector<2x40xf32>
    %cst_29 = arith.constant 5.000000e+00 : f32
    %311 = vector.broadcast %cst_29 : f32 to vector<2x40xf32>
    %312 = arith.cmpf ole, %310, %311 : vector<2x40xf32>
    %cst_30 = arith.constant -1.000000e+30 : f32
    %313 = vector.broadcast %cst_30 : f32 to vector<2x40xf32>
    %314 = arith.select %312, %262, %313 : vector<2x40xi1>, vector<2x40xf32>
    %315 = vector.extract_strided_slice %314 {offsets = [0, 35], sizes = [2, 5], strides = [1, 1]} : vector<2x40xf32> to vector<2x5xf32>
    %316 = vector.extract_strided_slice %314 {offsets = [0, 0], sizes = [2, 35], strides = [1, 1]} : vector<2x40xf32> to vector<2x35xf32>
    %317 = tpu.concatenate %315, %316 in 1 : vector<2x5xf32>, vector<2x35xf32> -> vector<2x40xf32>
    %318 = arith.maximumf %314, %317 : vector<2x40xf32>
    %319 = vector.extract_strided_slice %318 {offsets = [0, 30], sizes = [2, 10], strides = [1, 1]} : vector<2x40xf32> to vector<2x10xf32>
    %320 = vector.extract_strided_slice %318 {offsets = [0, 0], sizes = [2, 30], strides = [1, 1]} : vector<2x40xf32> to vector<2x30xf32>
    %321 = tpu.concatenate %319, %320 in 1 : vector<2x10xf32>, vector<2x30xf32> -> vector<2x40xf32>
    %322 = arith.maximumf %318, %321 : vector<2x40xf32>
    %323 = vector.extract_strided_slice %322 {offsets = [0, 20], sizes = [2, 20], strides = [1, 1]} : vector<2x40xf32> to vector<2x20xf32>
    %324 = vector.extract_strided_slice %322 {offsets = [0, 0], sizes = [2, 20], strides = [1, 1]} : vector<2x40xf32> to vector<2x20xf32>
    %325 = tpu.concatenate %323, %324 in 1 : vector<2x20xf32>, vector<2x20xf32> -> vector<2x40xf32>
    %326 = arith.maximumf %322, %325 : vector<2x40xf32>
    %cst_31 = arith.constant 6.000000e+00 : f32
    %327 = vector.broadcast %cst_31 : f32 to vector<2x40xf32>
    %328 = arith.cmpf ole, %310, %327 : vector<2x40xf32>
    %cst_32 = arith.constant -1.000000e+30 : f32
    %329 = vector.broadcast %cst_32 : f32 to vector<2x40xf32>
    %330 = arith.select %328, %262, %329 : vector<2x40xi1>, vector<2x40xf32>
    %331 = vector.extract_strided_slice %330 {offsets = [0, 35], sizes = [2, 5], strides = [1, 1]} : vector<2x40xf32> to vector<2x5xf32>
    %332 = vector.extract_strided_slice %330 {offsets = [0, 0], sizes = [2, 35], strides = [1, 1]} : vector<2x40xf32> to vector<2x35xf32>
    %333 = tpu.concatenate %331, %332 in 1 : vector<2x5xf32>, vector<2x35xf32> -> vector<2x40xf32>
    %334 = arith.maximumf %330, %333 : vector<2x40xf32>
    %335 = vector.extract_strided_slice %334 {offsets = [0, 30], sizes = [2, 10], strides = [1, 1]} : vector<2x40xf32> to vector<2x10xf32>
    %336 = vector.extract_strided_slice %334 {offsets = [0, 0], sizes = [2, 30], strides = [1, 1]} : vector<2x40xf32> to vector<2x30xf32>
    %337 = tpu.concatenate %335, %336 in 1 : vector<2x10xf32>, vector<2x30xf32> -> vector<2x40xf32>
    %338 = arith.maximumf %334, %337 : vector<2x40xf32>
    %339 = vector.extract_strided_slice %338 {offsets = [0, 20], sizes = [2, 20], strides = [1, 1]} : vector<2x40xf32> to vector<2x20xf32>
    %340 = vector.extract_strided_slice %338 {offsets = [0, 0], sizes = [2, 20], strides = [1, 1]} : vector<2x40xf32> to vector<2x20xf32>
    %341 = tpu.concatenate %339, %340 in 1 : vector<2x20xf32>, vector<2x20xf32> -> vector<2x40xf32>
    %342 = arith.maximumf %338, %341 : vector<2x40xf32>
    %343 = arith.subf %342, %326 : vector<2x40xf32>
    %cst_33 = arith.constant 6.000000e-01 : f32
    %344 = vector.broadcast %cst_33 : f32 to vector<2x40xf32>
    %345 = arith.mulf %344, %343 : vector<2x40xf32>
    %346 = arith.addf %326, %345 : vector<2x40xf32>
    %347 = arith.subf %262, %346 : vector<2x40xf32>
    %cst_34 = arith.constant 0.000000e+00 : f32
    %348 = vector.broadcast %cst_34 : f32 to vector<2x40xf32>
    %349 = arith.maximumf %347, %348 : vector<2x40xf32>
    %350 = arith.subf %349, %251 : vector<2x40xf32>
    %cst_35 = arith.constant 0.000000e+00 : f32
    %351 = vector.broadcast %cst_35 : f32 to vector<2x40xf32>
    %352 = arith.cmpf ogt, %350, %351 : vector<2x40xf32>
    %353 = arith.extui %352 : vector<2x40xi1> to vector<2x40xi32>
    %354 = arith.sitofp %353 : vector<2x40xi32> to vector<2x40xf32>
    %355 = arith.mulf %245, %10 : vector<2x40xf32>
    %356 = arith.addf %355, %354 : vector<2x40xf32>
    %357 = arith.mulf %247, %16 : vector<2x40xf32>
    %358 = arith.addf %357, %354 : vector<2x40xf32>
    %359 = arith.addf %248, %354 : vector<2x40xf32>
    %360 = arith.mulf %356, %7 : vector<2x40xf32>
    %cst_36 = arith.constant 5.000000e-01 : f32
    %361 = vector.broadcast %cst_36 : f32 to vector<2x40xf32>
    %362 = arith.addf %361, %360 : vector<2x40xf32>
    %363 = arith.mulf %358, %13 : vector<2x40xf32>
    %cst_37 = arith.constant dense<0.000000e+00> : vector<2x40xf32>
    %364 = tpu.matmul %354, %0, %cst_37 {dimension_numbers = #tpu.dot_dimension_numbers<[1], [0], [0], [1], [0, 0, 1, 1], [], []>, precision = #tpu.contract_precision<fp32>} : vector<2x40xf32>, vector<40x40xf32>, vector<2x40xf32> -> vector<2x40xf32>
    %365 = arith.addf %364, %19 : vector<2x40xf32>
    %366 = vector.extract_strided_slice %25 {offsets = [6, 0], sizes = [2, 40], strides = [1, 1]} : vector<18x40xf32> to vector<2x40xf32>
    %367 = arith.addf %366, %365 : vector<2x40xf32>
    %cst_38 = arith.constant 5.000000e-01 : f32
    %368 = vector.broadcast %cst_38 : f32 to vector<2x40xf32>
    %369 = arith.mulf %354, %368 : vector<2x40xf32>
    %370 = arith.subf %349, %369 : vector<2x40xf32>
    %371 = arith.mulf %370, %4 : vector<2x40xf32>
    %372 = arith.addf %371, %367 : vector<2x40xf32>
    %373 = arith.addf %372, %363 : vector<2x40xf32>
    %374 = vector.extract_strided_slice %373 {offsets = [0, 35], sizes = [2, 5], strides = [1, 1]} : vector<2x40xf32> to vector<2x5xf32>
    %375 = vector.extract_strided_slice %373 {offsets = [0, 0], sizes = [2, 35], strides = [1, 1]} : vector<2x40xf32> to vector<2x35xf32>
    %376 = tpu.concatenate %374, %375 in 1 : vector<2x5xf32>, vector<2x35xf32> -> vector<2x40xf32>
    %377 = arith.cmpf olt, %376, %373 : vector<2x40xf32>
    %378 = arith.extui %377 : vector<2x40xi1> to vector<2x40xi32>
    %379 = arith.sitofp %378 : vector<2x40xi32> to vector<2x40xf32>
    %380 = vector.extract_strided_slice %373 {offsets = [0, 30], sizes = [2, 10], strides = [1, 1]} : vector<2x40xf32> to vector<2x10xf32>
    %381 = vector.extract_strided_slice %373 {offsets = [0, 0], sizes = [2, 30], strides = [1, 1]} : vector<2x40xf32> to vector<2x30xf32>
    %382 = tpu.concatenate %380, %381 in 1 : vector<2x10xf32>, vector<2x30xf32> -> vector<2x40xf32>
    %383 = arith.cmpf olt, %382, %373 : vector<2x40xf32>
    %384 = arith.extui %383 : vector<2x40xi1> to vector<2x40xi32>
    %385 = arith.sitofp %384 : vector<2x40xi32> to vector<2x40xf32>
    %386 = arith.addf %379, %385 : vector<2x40xf32>
    %387 = vector.extract_strided_slice %373 {offsets = [0, 25], sizes = [2, 15], strides = [1, 1]} : vector<2x40xf32> to vector<2x15xf32>
    %388 = vector.extract_strided_slice %373 {offsets = [0, 0], sizes = [2, 25], strides = [1, 1]} : vector<2x40xf32> to vector<2x25xf32>
    %389 = tpu.concatenate %387, %388 in 1 : vector<2x15xf32>, vector<2x25xf32> -> vector<2x40xf32>
    %390 = arith.cmpf olt, %389, %373 : vector<2x40xf32>
    %391 = arith.extui %390 : vector<2x40xi1> to vector<2x40xi32>
    %392 = arith.sitofp %391 : vector<2x40xi32> to vector<2x40xf32>
    %393 = arith.addf %386, %392 : vector<2x40xf32>
    %394 = vector.extract_strided_slice %373 {offsets = [0, 20], sizes = [2, 20], strides = [1, 1]} : vector<2x40xf32> to vector<2x20xf32>
    %395 = vector.extract_strided_slice %373 {offsets = [0, 0], sizes = [2, 20], strides = [1, 1]} : vector<2x40xf32> to vector<2x20xf32>
    %396 = tpu.concatenate %394, %395 in 1 : vector<2x20xf32>, vector<2x20xf32> -> vector<2x40xf32>
    %397 = arith.cmpf olt, %396, %373 : vector<2x40xf32>
    %398 = arith.extui %397 : vector<2x40xi1> to vector<2x40xi32>
    %399 = arith.sitofp %398 : vector<2x40xi32> to vector<2x40xf32>
    %400 = arith.addf %393, %399 : vector<2x40xf32>
    %401 = vector.extract_strided_slice %373 {offsets = [0, 15], sizes = [2, 25], strides = [1, 1]} : vector<2x40xf32> to vector<2x25xf32>
    %402 = vector.extract_strided_slice %373 {offsets = [0, 0], sizes = [2, 15], strides = [1, 1]} : vector<2x40xf32> to vector<2x15xf32>
    %403 = tpu.concatenate %401, %402 in 1 : vector<2x25xf32>, vector<2x15xf32> -> vector<2x40xf32>
    %404 = arith.cmpf olt, %403, %373 : vector<2x40xf32>
    %405 = arith.extui %404 : vector<2x40xi1> to vector<2x40xi32>
    %406 = arith.sitofp %405 : vector<2x40xi32> to vector<2x40xf32>
    %407 = arith.addf %400, %406 : vector<2x40xf32>
    %408 = vector.extract_strided_slice %373 {offsets = [0, 10], sizes = [2, 30], strides = [1, 1]} : vector<2x40xf32> to vector<2x30xf32>
    %409 = vector.extract_strided_slice %373 {offsets = [0, 0], sizes = [2, 10], strides = [1, 1]} : vector<2x40xf32> to vector<2x10xf32>
    %410 = tpu.concatenate %408, %409 in 1 : vector<2x30xf32>, vector<2x10xf32> -> vector<2x40xf32>
    %411 = arith.cmpf olt, %410, %373 : vector<2x40xf32>
    %412 = arith.extui %411 : vector<2x40xi1> to vector<2x40xi32>
    %413 = arith.sitofp %412 : vector<2x40xi32> to vector<2x40xf32>
    %414 = arith.addf %407, %413 : vector<2x40xf32>
    %415 = vector.extract_strided_slice %373 {offsets = [0, 5], sizes = [2, 35], strides = [1, 1]} : vector<2x40xf32> to vector<2x35xf32>
    %416 = vector.extract_strided_slice %373 {offsets = [0, 0], sizes = [2, 5], strides = [1, 1]} : vector<2x40xf32> to vector<2x5xf32>
    %417 = tpu.concatenate %415, %416 in 1 : vector<2x35xf32>, vector<2x5xf32> -> vector<2x40xf32>
    %418 = arith.cmpf olt, %417, %373 : vector<2x40xf32>
    %419 = arith.extui %418 : vector<2x40xi1> to vector<2x40xi32>
    %420 = arith.sitofp %419 : vector<2x40xi32> to vector<2x40xf32>
    %421 = arith.addf %414, %420 : vector<2x40xf32>
    %cst_39 = arith.constant 5.000000e+00 : f32
    %422 = vector.broadcast %cst_39 : f32 to vector<2x40xf32>
    %423 = arith.cmpf ole, %421, %422 : vector<2x40xf32>
    %cst_40 = arith.constant -1.000000e+30 : f32
    %424 = vector.broadcast %cst_40 : f32 to vector<2x40xf32>
    %425 = arith.select %423, %373, %424 : vector<2x40xi1>, vector<2x40xf32>
    %426 = vector.extract_strided_slice %425 {offsets = [0, 35], sizes = [2, 5], strides = [1, 1]} : vector<2x40xf32> to vector<2x5xf32>
    %427 = vector.extract_strided_slice %425 {offsets = [0, 0], sizes = [2, 35], strides = [1, 1]} : vector<2x40xf32> to vector<2x35xf32>
    %428 = tpu.concatenate %426, %427 in 1 : vector<2x5xf32>, vector<2x35xf32> -> vector<2x40xf32>
    %429 = arith.maximumf %425, %428 : vector<2x40xf32>
    %430 = vector.extract_strided_slice %429 {offsets = [0, 30], sizes = [2, 10], strides = [1, 1]} : vector<2x40xf32> to vector<2x10xf32>
    %431 = vector.extract_strided_slice %429 {offsets = [0, 0], sizes = [2, 30], strides = [1, 1]} : vector<2x40xf32> to vector<2x30xf32>
    %432 = tpu.concatenate %430, %431 in 1 : vector<2x10xf32>, vector<2x30xf32> -> vector<2x40xf32>
    %433 = arith.maximumf %429, %432 : vector<2x40xf32>
    %434 = vector.extract_strided_slice %433 {offsets = [0, 20], sizes = [2, 20], strides = [1, 1]} : vector<2x40xf32> to vector<2x20xf32>
    %435 = vector.extract_strided_slice %433 {offsets = [0, 0], sizes = [2, 20], strides = [1, 1]} : vector<2x40xf32> to vector<2x20xf32>
    %436 = tpu.concatenate %434, %435 in 1 : vector<2x20xf32>, vector<2x20xf32> -> vector<2x40xf32>
    %437 = arith.maximumf %433, %436 : vector<2x40xf32>
    %cst_41 = arith.constant 6.000000e+00 : f32
    %438 = vector.broadcast %cst_41 : f32 to vector<2x40xf32>
    %439 = arith.cmpf ole, %421, %438 : vector<2x40xf32>
    %cst_42 = arith.constant -1.000000e+30 : f32
    %440 = vector.broadcast %cst_42 : f32 to vector<2x40xf32>
    %441 = arith.select %439, %373, %440 : vector<2x40xi1>, vector<2x40xf32>
    %442 = vector.extract_strided_slice %441 {offsets = [0, 35], sizes = [2, 5], strides = [1, 1]} : vector<2x40xf32> to vector<2x5xf32>
    %443 = vector.extract_strided_slice %441 {offsets = [0, 0], sizes = [2, 35], strides = [1, 1]} : vector<2x40xf32> to vector<2x35xf32>
    %444 = tpu.concatenate %442, %443 in 1 : vector<2x5xf32>, vector<2x35xf32> -> vector<2x40xf32>
    %445 = arith.maximumf %441, %444 : vector<2x40xf32>
    %446 = vector.extract_strided_slice %445 {offsets = [0, 30], sizes = [2, 10], strides = [1, 1]} : vector<2x40xf32> to vector<2x10xf32>
    %447 = vector.extract_strided_slice %445 {offsets = [0, 0], sizes = [2, 30], strides = [1, 1]} : vector<2x40xf32> to vector<2x30xf32>
    %448 = tpu.concatenate %446, %447 in 1 : vector<2x10xf32>, vector<2x30xf32> -> vector<2x40xf32>
    %449 = arith.maximumf %445, %448 : vector<2x40xf32>
    %450 = vector.extract_strided_slice %449 {offsets = [0, 20], sizes = [2, 20], strides = [1, 1]} : vector<2x40xf32> to vector<2x20xf32>
    %451 = vector.extract_strided_slice %449 {offsets = [0, 0], sizes = [2, 20], strides = [1, 1]} : vector<2x40xf32> to vector<2x20xf32>
    %452 = tpu.concatenate %450, %451 in 1 : vector<2x20xf32>, vector<2x20xf32> -> vector<2x40xf32>
    %453 = arith.maximumf %449, %452 : vector<2x40xf32>
    %454 = arith.subf %453, %437 : vector<2x40xf32>
    %cst_43 = arith.constant 6.000000e-01 : f32
    %455 = vector.broadcast %cst_43 : f32 to vector<2x40xf32>
    %456 = arith.mulf %455, %454 : vector<2x40xf32>
    %457 = arith.addf %437, %456 : vector<2x40xf32>
    %458 = arith.subf %373, %457 : vector<2x40xf32>
    %cst_44 = arith.constant 0.000000e+00 : f32
    %459 = vector.broadcast %cst_44 : f32 to vector<2x40xf32>
    %460 = arith.maximumf %458, %459 : vector<2x40xf32>
    %461 = arith.subf %460, %362 : vector<2x40xf32>
    %cst_45 = arith.constant 0.000000e+00 : f32
    %462 = vector.broadcast %cst_45 : f32 to vector<2x40xf32>
    %463 = arith.cmpf ogt, %461, %462 : vector<2x40xf32>
    %464 = arith.extui %463 : vector<2x40xi1> to vector<2x40xi32>
    %465 = arith.sitofp %464 : vector<2x40xi32> to vector<2x40xf32>
    %466 = arith.mulf %356, %10 : vector<2x40xf32>
    %467 = arith.addf %466, %465 : vector<2x40xf32>
    %468 = arith.mulf %358, %16 : vector<2x40xf32>
    %469 = arith.addf %468, %465 : vector<2x40xf32>
    %470 = arith.addf %359, %465 : vector<2x40xf32>
    %471 = arith.mulf %467, %7 : vector<2x40xf32>
    %cst_46 = arith.constant 5.000000e-01 : f32
    %472 = vector.broadcast %cst_46 : f32 to vector<2x40xf32>
    %473 = arith.addf %472, %471 : vector<2x40xf32>
    %474 = arith.mulf %469, %13 : vector<2x40xf32>
    %cst_47 = arith.constant dense<0.000000e+00> : vector<2x40xf32>
    %475 = tpu.matmul %465, %0, %cst_47 {dimension_numbers = #tpu.dot_dimension_numbers<[1], [0], [0], [1], [0, 0, 1, 1], [], []>, precision = #tpu.contract_precision<fp32>} : vector<2x40xf32>, vector<40x40xf32>, vector<2x40xf32> -> vector<2x40xf32>
    %476 = arith.addf %475, %19 : vector<2x40xf32>
    %477 = vector.extract_strided_slice %25 {offsets = [8, 0], sizes = [2, 40], strides = [1, 1]} : vector<18x40xf32> to vector<2x40xf32>
    %478 = arith.addf %477, %476 : vector<2x40xf32>
    %cst_48 = arith.constant 5.000000e-01 : f32
    %479 = vector.broadcast %cst_48 : f32 to vector<2x40xf32>
    %480 = arith.mulf %465, %479 : vector<2x40xf32>
    %481 = arith.subf %460, %480 : vector<2x40xf32>
    %482 = arith.mulf %481, %4 : vector<2x40xf32>
    %483 = arith.addf %482, %478 : vector<2x40xf32>
    %484 = arith.addf %483, %474 : vector<2x40xf32>
    %485 = vector.extract_strided_slice %484 {offsets = [0, 35], sizes = [2, 5], strides = [1, 1]} : vector<2x40xf32> to vector<2x5xf32>
    %486 = vector.extract_strided_slice %484 {offsets = [0, 0], sizes = [2, 35], strides = [1, 1]} : vector<2x40xf32> to vector<2x35xf32>
    %487 = tpu.concatenate %485, %486 in 1 : vector<2x5xf32>, vector<2x35xf32> -> vector<2x40xf32>
    %488 = arith.cmpf olt, %487, %484 : vector<2x40xf32>
    %489 = arith.extui %488 : vector<2x40xi1> to vector<2x40xi32>
    %490 = arith.sitofp %489 : vector<2x40xi32> to vector<2x40xf32>
    %491 = vector.extract_strided_slice %484 {offsets = [0, 30], sizes = [2, 10], strides = [1, 1]} : vector<2x40xf32> to vector<2x10xf32>
    %492 = vector.extract_strided_slice %484 {offsets = [0, 0], sizes = [2, 30], strides = [1, 1]} : vector<2x40xf32> to vector<2x30xf32>
    %493 = tpu.concatenate %491, %492 in 1 : vector<2x10xf32>, vector<2x30xf32> -> vector<2x40xf32>
    %494 = arith.cmpf olt, %493, %484 : vector<2x40xf32>
    %495 = arith.extui %494 : vector<2x40xi1> to vector<2x40xi32>
    %496 = arith.sitofp %495 : vector<2x40xi32> to vector<2x40xf32>
    %497 = arith.addf %490, %496 : vector<2x40xf32>
    %498 = vector.extract_strided_slice %484 {offsets = [0, 25], sizes = [2, 15], strides = [1, 1]} : vector<2x40xf32> to vector<2x15xf32>
    %499 = vector.extract_strided_slice %484 {offsets = [0, 0], sizes = [2, 25], strides = [1, 1]} : vector<2x40xf32> to vector<2x25xf32>
    %500 = tpu.concatenate %498, %499 in 1 : vector<2x15xf32>, vector<2x25xf32> -> vector<2x40xf32>
    %501 = arith.cmpf olt, %500, %484 : vector<2x40xf32>
    %502 = arith.extui %501 : vector<2x40xi1> to vector<2x40xi32>
    %503 = arith.sitofp %502 : vector<2x40xi32> to vector<2x40xf32>
    %504 = arith.addf %497, %503 : vector<2x40xf32>
    %505 = vector.extract_strided_slice %484 {offsets = [0, 20], sizes = [2, 20], strides = [1, 1]} : vector<2x40xf32> to vector<2x20xf32>
    %506 = vector.extract_strided_slice %484 {offsets = [0, 0], sizes = [2, 20], strides = [1, 1]} : vector<2x40xf32> to vector<2x20xf32>
    %507 = tpu.concatenate %505, %506 in 1 : vector<2x20xf32>, vector<2x20xf32> -> vector<2x40xf32>
    %508 = arith.cmpf olt, %507, %484 : vector<2x40xf32>
    %509 = arith.extui %508 : vector<2x40xi1> to vector<2x40xi32>
    %510 = arith.sitofp %509 : vector<2x40xi32> to vector<2x40xf32>
    %511 = arith.addf %504, %510 : vector<2x40xf32>
    %512 = vector.extract_strided_slice %484 {offsets = [0, 15], sizes = [2, 25], strides = [1, 1]} : vector<2x40xf32> to vector<2x25xf32>
    %513 = vector.extract_strided_slice %484 {offsets = [0, 0], sizes = [2, 15], strides = [1, 1]} : vector<2x40xf32> to vector<2x15xf32>
    %514 = tpu.concatenate %512, %513 in 1 : vector<2x25xf32>, vector<2x15xf32> -> vector<2x40xf32>
    %515 = arith.cmpf olt, %514, %484 : vector<2x40xf32>
    %516 = arith.extui %515 : vector<2x40xi1> to vector<2x40xi32>
    %517 = arith.sitofp %516 : vector<2x40xi32> to vector<2x40xf32>
    %518 = arith.addf %511, %517 : vector<2x40xf32>
    %519 = vector.extract_strided_slice %484 {offsets = [0, 10], sizes = [2, 30], strides = [1, 1]} : vector<2x40xf32> to vector<2x30xf32>
    %520 = vector.extract_strided_slice %484 {offsets = [0, 0], sizes = [2, 10], strides = [1, 1]} : vector<2x40xf32> to vector<2x10xf32>
    %521 = tpu.concatenate %519, %520 in 1 : vector<2x30xf32>, vector<2x10xf32> -> vector<2x40xf32>
    %522 = arith.cmpf olt, %521, %484 : vector<2x40xf32>
    %523 = arith.extui %522 : vector<2x40xi1> to vector<2x40xi32>
    %524 = arith.sitofp %523 : vector<2x40xi32> to vector<2x40xf32>
    %525 = arith.addf %518, %524 : vector<2x40xf32>
    %526 = vector.extract_strided_slice %484 {offsets = [0, 5], sizes = [2, 35], strides = [1, 1]} : vector<2x40xf32> to vector<2x35xf32>
    %527 = vector.extract_strided_slice %484 {offsets = [0, 0], sizes = [2, 5], strides = [1, 1]} : vector<2x40xf32> to vector<2x5xf32>
    %528 = tpu.concatenate %526, %527 in 1 : vector<2x35xf32>, vector<2x5xf32> -> vector<2x40xf32>
    %529 = arith.cmpf olt, %528, %484 : vector<2x40xf32>
    %530 = arith.extui %529 : vector<2x40xi1> to vector<2x40xi32>
    %531 = arith.sitofp %530 : vector<2x40xi32> to vector<2x40xf32>
    %532 = arith.addf %525, %531 : vector<2x40xf32>
    %cst_49 = arith.constant 5.000000e+00 : f32
    %533 = vector.broadcast %cst_49 : f32 to vector<2x40xf32>
    %534 = arith.cmpf ole, %532, %533 : vector<2x40xf32>
    %cst_50 = arith.constant -1.000000e+30 : f32
    %535 = vector.broadcast %cst_50 : f32 to vector<2x40xf32>
    %536 = arith.select %534, %484, %535 : vector<2x40xi1>, vector<2x40xf32>
    %537 = vector.extract_strided_slice %536 {offsets = [0, 35], sizes = [2, 5], strides = [1, 1]} : vector<2x40xf32> to vector<2x5xf32>
    %538 = vector.extract_strided_slice %536 {offsets = [0, 0], sizes = [2, 35], strides = [1, 1]} : vector<2x40xf32> to vector<2x35xf32>
    %539 = tpu.concatenate %537, %538 in 1 : vector<2x5xf32>, vector<2x35xf32> -> vector<2x40xf32>
    %540 = arith.maximumf %536, %539 : vector<2x40xf32>
    %541 = vector.extract_strided_slice %540 {offsets = [0, 30], sizes = [2, 10], strides = [1, 1]} : vector<2x40xf32> to vector<2x10xf32>
    %542 = vector.extract_strided_slice %540 {offsets = [0, 0], sizes = [2, 30], strides = [1, 1]} : vector<2x40xf32> to vector<2x30xf32>
    %543 = tpu.concatenate %541, %542 in 1 : vector<2x10xf32>, vector<2x30xf32> -> vector<2x40xf32>
    %544 = arith.maximumf %540, %543 : vector<2x40xf32>
    %545 = vector.extract_strided_slice %544 {offsets = [0, 20], sizes = [2, 20], strides = [1, 1]} : vector<2x40xf32> to vector<2x20xf32>
    %546 = vector.extract_strided_slice %544 {offsets = [0, 0], sizes = [2, 20], strides = [1, 1]} : vector<2x40xf32> to vector<2x20xf32>
    %547 = tpu.concatenate %545, %546 in 1 : vector<2x20xf32>, vector<2x20xf32> -> vector<2x40xf32>
    %548 = arith.maximumf %544, %547 : vector<2x40xf32>
    %cst_51 = arith.constant 6.000000e+00 : f32
    %549 = vector.broadcast %cst_51 : f32 to vector<2x40xf32>
    %550 = arith.cmpf ole, %532, %549 : vector<2x40xf32>
    %cst_52 = arith.constant -1.000000e+30 : f32
    %551 = vector.broadcast %cst_52 : f32 to vector<2x40xf32>
    %552 = arith.select %550, %484, %551 : vector<2x40xi1>, vector<2x40xf32>
    %553 = vector.extract_strided_slice %552 {offsets = [0, 35], sizes = [2, 5], strides = [1, 1]} : vector<2x40xf32> to vector<2x5xf32>
    %554 = vector.extract_strided_slice %552 {offsets = [0, 0], sizes = [2, 35], strides = [1, 1]} : vector<2x40xf32> to vector<2x35xf32>
    %555 = tpu.concatenate %553, %554 in 1 : vector<2x5xf32>, vector<2x35xf32> -> vector<2x40xf32>
    %556 = arith.maximumf %552, %555 : vector<2x40xf32>
    %557 = vector.extract_strided_slice %556 {offsets = [0, 30], sizes = [2, 10], strides = [1, 1]} : vector<2x40xf32> to vector<2x10xf32>
    %558 = vector.extract_strided_slice %556 {offsets = [0, 0], sizes = [2, 30], strides = [1, 1]} : vector<2x40xf32> to vector<2x30xf32>
    %559 = tpu.concatenate %557, %558 in 1 : vector<2x10xf32>, vector<2x30xf32> -> vector<2x40xf32>
    %560 = arith.maximumf %556, %559 : vector<2x40xf32>
    %561 = vector.extract_strided_slice %560 {offsets = [0, 20], sizes = [2, 20], strides = [1, 1]} : vector<2x40xf32> to vector<2x20xf32>
    %562 = vector.extract_strided_slice %560 {offsets = [0, 0], sizes = [2, 20], strides = [1, 1]} : vector<2x40xf32> to vector<2x20xf32>
    %563 = tpu.concatenate %561, %562 in 1 : vector<2x20xf32>, vector<2x20xf32> -> vector<2x40xf32>
    %564 = arith.maximumf %560, %563 : vector<2x40xf32>
    %565 = arith.subf %564, %548 : vector<2x40xf32>
    %cst_53 = arith.constant 6.000000e-01 : f32
    %566 = vector.broadcast %cst_53 : f32 to vector<2x40xf32>
    %567 = arith.mulf %566, %565 : vector<2x40xf32>
    %568 = arith.addf %548, %567 : vector<2x40xf32>
    %569 = arith.subf %484, %568 : vector<2x40xf32>
    %cst_54 = arith.constant 0.000000e+00 : f32
    %570 = vector.broadcast %cst_54 : f32 to vector<2x40xf32>
    %571 = arith.maximumf %569, %570 : vector<2x40xf32>
    %572 = arith.subf %571, %473 : vector<2x40xf32>
    %cst_55 = arith.constant 0.000000e+00 : f32
    %573 = vector.broadcast %cst_55 : f32 to vector<2x40xf32>
    %574 = arith.cmpf ogt, %572, %573 : vector<2x40xf32>
    %575 = arith.extui %574 : vector<2x40xi1> to vector<2x40xi32>
    %576 = arith.sitofp %575 : vector<2x40xi32> to vector<2x40xf32>
    %577 = arith.mulf %467, %10 : vector<2x40xf32>
    %578 = arith.addf %577, %576 : vector<2x40xf32>
    %579 = arith.mulf %469, %16 : vector<2x40xf32>
    %580 = arith.addf %579, %576 : vector<2x40xf32>
    %581 = arith.addf %470, %576 : vector<2x40xf32>
    %582 = arith.mulf %578, %7 : vector<2x40xf32>
    %cst_56 = arith.constant 5.000000e-01 : f32
    %583 = vector.broadcast %cst_56 : f32 to vector<2x40xf32>
    %584 = arith.addf %583, %582 : vector<2x40xf32>
    %585 = arith.mulf %580, %13 : vector<2x40xf32>
    %cst_57 = arith.constant dense<0.000000e+00> : vector<2x40xf32>
    %586 = tpu.matmul %576, %0, %cst_57 {dimension_numbers = #tpu.dot_dimension_numbers<[1], [0], [0], [1], [0, 0, 1, 1], [], []>, precision = #tpu.contract_precision<fp32>} : vector<2x40xf32>, vector<40x40xf32>, vector<2x40xf32> -> vector<2x40xf32>
    %587 = arith.addf %586, %19 : vector<2x40xf32>
    %588 = vector.extract_strided_slice %25 {offsets = [10, 0], sizes = [2, 40], strides = [1, 1]} : vector<18x40xf32> to vector<2x40xf32>
    %589 = arith.addf %588, %587 : vector<2x40xf32>
    %cst_58 = arith.constant 5.000000e-01 : f32
    %590 = vector.broadcast %cst_58 : f32 to vector<2x40xf32>
    %591 = arith.mulf %576, %590 : vector<2x40xf32>
    %592 = arith.subf %571, %591 : vector<2x40xf32>
    %593 = arith.mulf %592, %4 : vector<2x40xf32>
    %594 = arith.addf %593, %589 : vector<2x40xf32>
    %595 = arith.addf %594, %585 : vector<2x40xf32>
    %596 = vector.extract_strided_slice %595 {offsets = [0, 35], sizes = [2, 5], strides = [1, 1]} : vector<2x40xf32> to vector<2x5xf32>
    %597 = vector.extract_strided_slice %595 {offsets = [0, 0], sizes = [2, 35], strides = [1, 1]} : vector<2x40xf32> to vector<2x35xf32>
    %598 = tpu.concatenate %596, %597 in 1 : vector<2x5xf32>, vector<2x35xf32> -> vector<2x40xf32>
    %599 = arith.cmpf olt, %598, %595 : vector<2x40xf32>
    %600 = arith.extui %599 : vector<2x40xi1> to vector<2x40xi32>
    %601 = arith.sitofp %600 : vector<2x40xi32> to vector<2x40xf32>
    %602 = vector.extract_strided_slice %595 {offsets = [0, 30], sizes = [2, 10], strides = [1, 1]} : vector<2x40xf32> to vector<2x10xf32>
    %603 = vector.extract_strided_slice %595 {offsets = [0, 0], sizes = [2, 30], strides = [1, 1]} : vector<2x40xf32> to vector<2x30xf32>
    %604 = tpu.concatenate %602, %603 in 1 : vector<2x10xf32>, vector<2x30xf32> -> vector<2x40xf32>
    %605 = arith.cmpf olt, %604, %595 : vector<2x40xf32>
    %606 = arith.extui %605 : vector<2x40xi1> to vector<2x40xi32>
    %607 = arith.sitofp %606 : vector<2x40xi32> to vector<2x40xf32>
    %608 = arith.addf %601, %607 : vector<2x40xf32>
    %609 = vector.extract_strided_slice %595 {offsets = [0, 25], sizes = [2, 15], strides = [1, 1]} : vector<2x40xf32> to vector<2x15xf32>
    %610 = vector.extract_strided_slice %595 {offsets = [0, 0], sizes = [2, 25], strides = [1, 1]} : vector<2x40xf32> to vector<2x25xf32>
    %611 = tpu.concatenate %609, %610 in 1 : vector<2x15xf32>, vector<2x25xf32> -> vector<2x40xf32>
    %612 = arith.cmpf olt, %611, %595 : vector<2x40xf32>
    %613 = arith.extui %612 : vector<2x40xi1> to vector<2x40xi32>
    %614 = arith.sitofp %613 : vector<2x40xi32> to vector<2x40xf32>
    %615 = arith.addf %608, %614 : vector<2x40xf32>
    %616 = vector.extract_strided_slice %595 {offsets = [0, 20], sizes = [2, 20], strides = [1, 1]} : vector<2x40xf32> to vector<2x20xf32>
    %617 = vector.extract_strided_slice %595 {offsets = [0, 0], sizes = [2, 20], strides = [1, 1]} : vector<2x40xf32> to vector<2x20xf32>
    %618 = tpu.concatenate %616, %617 in 1 : vector<2x20xf32>, vector<2x20xf32> -> vector<2x40xf32>
    %619 = arith.cmpf olt, %618, %595 : vector<2x40xf32>
    %620 = arith.extui %619 : vector<2x40xi1> to vector<2x40xi32>
    %621 = arith.sitofp %620 : vector<2x40xi32> to vector<2x40xf32>
    %622 = arith.addf %615, %621 : vector<2x40xf32>
    %623 = vector.extract_strided_slice %595 {offsets = [0, 15], sizes = [2, 25], strides = [1, 1]} : vector<2x40xf32> to vector<2x25xf32>
    %624 = vector.extract_strided_slice %595 {offsets = [0, 0], sizes = [2, 15], strides = [1, 1]} : vector<2x40xf32> to vector<2x15xf32>
    %625 = tpu.concatenate %623, %624 in 1 : vector<2x25xf32>, vector<2x15xf32> -> vector<2x40xf32>
    %626 = arith.cmpf olt, %625, %595 : vector<2x40xf32>
    %627 = arith.extui %626 : vector<2x40xi1> to vector<2x40xi32>
    %628 = arith.sitofp %627 : vector<2x40xi32> to vector<2x40xf32>
    %629 = arith.addf %622, %628 : vector<2x40xf32>
    %630 = vector.extract_strided_slice %595 {offsets = [0, 10], sizes = [2, 30], strides = [1, 1]} : vector<2x40xf32> to vector<2x30xf32>
    %631 = vector.extract_strided_slice %595 {offsets = [0, 0], sizes = [2, 10], strides = [1, 1]} : vector<2x40xf32> to vector<2x10xf32>
    %632 = tpu.concatenate %630, %631 in 1 : vector<2x30xf32>, vector<2x10xf32> -> vector<2x40xf32>
    %633 = arith.cmpf olt, %632, %595 : vector<2x40xf32>
    %634 = arith.extui %633 : vector<2x40xi1> to vector<2x40xi32>
    %635 = arith.sitofp %634 : vector<2x40xi32> to vector<2x40xf32>
    %636 = arith.addf %629, %635 : vector<2x40xf32>
    %637 = vector.extract_strided_slice %595 {offsets = [0, 5], sizes = [2, 35], strides = [1, 1]} : vector<2x40xf32> to vector<2x35xf32>
    %638 = vector.extract_strided_slice %595 {offsets = [0, 0], sizes = [2, 5], strides = [1, 1]} : vector<2x40xf32> to vector<2x5xf32>
    %639 = tpu.concatenate %637, %638 in 1 : vector<2x35xf32>, vector<2x5xf32> -> vector<2x40xf32>
    %640 = arith.cmpf olt, %639, %595 : vector<2x40xf32>
    %641 = arith.extui %640 : vector<2x40xi1> to vector<2x40xi32>
    %642 = arith.sitofp %641 : vector<2x40xi32> to vector<2x40xf32>
    %643 = arith.addf %636, %642 : vector<2x40xf32>
    %cst_59 = arith.constant 5.000000e+00 : f32
    %644 = vector.broadcast %cst_59 : f32 to vector<2x40xf32>
    %645 = arith.cmpf ole, %643, %644 : vector<2x40xf32>
    %cst_60 = arith.constant -1.000000e+30 : f32
    %646 = vector.broadcast %cst_60 : f32 to vector<2x40xf32>
    %647 = arith.select %645, %595, %646 : vector<2x40xi1>, vector<2x40xf32>
    %648 = vector.extract_strided_slice %647 {offsets = [0, 35], sizes = [2, 5], strides = [1, 1]} : vector<2x40xf32> to vector<2x5xf32>
    %649 = vector.extract_strided_slice %647 {offsets = [0, 0], sizes = [2, 35], strides = [1, 1]} : vector<2x40xf32> to vector<2x35xf32>
    %650 = tpu.concatenate %648, %649 in 1 : vector<2x5xf32>, vector<2x35xf32> -> vector<2x40xf32>
    %651 = arith.maximumf %647, %650 : vector<2x40xf32>
    %652 = vector.extract_strided_slice %651 {offsets = [0, 30], sizes = [2, 10], strides = [1, 1]} : vector<2x40xf32> to vector<2x10xf32>
    %653 = vector.extract_strided_slice %651 {offsets = [0, 0], sizes = [2, 30], strides = [1, 1]} : vector<2x40xf32> to vector<2x30xf32>
    %654 = tpu.concatenate %652, %653 in 1 : vector<2x10xf32>, vector<2x30xf32> -> vector<2x40xf32>
    %655 = arith.maximumf %651, %654 : vector<2x40xf32>
    %656 = vector.extract_strided_slice %655 {offsets = [0, 20], sizes = [2, 20], strides = [1, 1]} : vector<2x40xf32> to vector<2x20xf32>
    %657 = vector.extract_strided_slice %655 {offsets = [0, 0], sizes = [2, 20], strides = [1, 1]} : vector<2x40xf32> to vector<2x20xf32>
    %658 = tpu.concatenate %656, %657 in 1 : vector<2x20xf32>, vector<2x20xf32> -> vector<2x40xf32>
    %659 = arith.maximumf %655, %658 : vector<2x40xf32>
    %cst_61 = arith.constant 6.000000e+00 : f32
    %660 = vector.broadcast %cst_61 : f32 to vector<2x40xf32>
    %661 = arith.cmpf ole, %643, %660 : vector<2x40xf32>
    %cst_62 = arith.constant -1.000000e+30 : f32
    %662 = vector.broadcast %cst_62 : f32 to vector<2x40xf32>
    %663 = arith.select %661, %595, %662 : vector<2x40xi1>, vector<2x40xf32>
    %664 = vector.extract_strided_slice %663 {offsets = [0, 35], sizes = [2, 5], strides = [1, 1]} : vector<2x40xf32> to vector<2x5xf32>
    %665 = vector.extract_strided_slice %663 {offsets = [0, 0], sizes = [2, 35], strides = [1, 1]} : vector<2x40xf32> to vector<2x35xf32>
    %666 = tpu.concatenate %664, %665 in 1 : vector<2x5xf32>, vector<2x35xf32> -> vector<2x40xf32>
    %667 = arith.maximumf %663, %666 : vector<2x40xf32>
    %668 = vector.extract_strided_slice %667 {offsets = [0, 30], sizes = [2, 10], strides = [1, 1]} : vector<2x40xf32> to vector<2x10xf32>
    %669 = vector.extract_strided_slice %667 {offsets = [0, 0], sizes = [2, 30], strides = [1, 1]} : vector<2x40xf32> to vector<2x30xf32>
    %670 = tpu.concatenate %668, %669 in 1 : vector<2x10xf32>, vector<2x30xf32> -> vector<2x40xf32>
    %671 = arith.maximumf %667, %670 : vector<2x40xf32>
    %672 = vector.extract_strided_slice %671 {offsets = [0, 20], sizes = [2, 20], strides = [1, 1]} : vector<2x40xf32> to vector<2x20xf32>
    %673 = vector.extract_strided_slice %671 {offsets = [0, 0], sizes = [2, 20], strides = [1, 1]} : vector<2x40xf32> to vector<2x20xf32>
    %674 = tpu.concatenate %672, %673 in 1 : vector<2x20xf32>, vector<2x20xf32> -> vector<2x40xf32>
    %675 = arith.maximumf %671, %674 : vector<2x40xf32>
    %676 = arith.subf %675, %659 : vector<2x40xf32>
    %cst_63 = arith.constant 6.000000e-01 : f32
    %677 = vector.broadcast %cst_63 : f32 to vector<2x40xf32>
    %678 = arith.mulf %677, %676 : vector<2x40xf32>
    %679 = arith.addf %659, %678 : vector<2x40xf32>
    %680 = arith.subf %595, %679 : vector<2x40xf32>
    %cst_64 = arith.constant 0.000000e+00 : f32
    %681 = vector.broadcast %cst_64 : f32 to vector<2x40xf32>
    %682 = arith.maximumf %680, %681 : vector<2x40xf32>
    %683 = arith.subf %682, %584 : vector<2x40xf32>
    %cst_65 = arith.constant 0.000000e+00 : f32
    %684 = vector.broadcast %cst_65 : f32 to vector<2x40xf32>
    %685 = arith.cmpf ogt, %683, %684 : vector<2x40xf32>
    %686 = arith.extui %685 : vector<2x40xi1> to vector<2x40xi32>
    %687 = arith.sitofp %686 : vector<2x40xi32> to vector<2x40xf32>
    %688 = arith.mulf %578, %10 : vector<2x40xf32>
    %689 = arith.addf %688, %687 : vector<2x40xf32>
    %690 = arith.mulf %580, %16 : vector<2x40xf32>
    %691 = arith.addf %690, %687 : vector<2x40xf32>
    %692 = arith.addf %581, %687 : vector<2x40xf32>
    %693 = arith.mulf %689, %7 : vector<2x40xf32>
    %cst_66 = arith.constant 5.000000e-01 : f32
    %694 = vector.broadcast %cst_66 : f32 to vector<2x40xf32>
    %695 = arith.addf %694, %693 : vector<2x40xf32>
    %696 = arith.mulf %691, %13 : vector<2x40xf32>
    %cst_67 = arith.constant dense<0.000000e+00> : vector<2x40xf32>
    %697 = tpu.matmul %687, %0, %cst_67 {dimension_numbers = #tpu.dot_dimension_numbers<[1], [0], [0], [1], [0, 0, 1, 1], [], []>, precision = #tpu.contract_precision<fp32>} : vector<2x40xf32>, vector<40x40xf32>, vector<2x40xf32> -> vector<2x40xf32>
    %698 = arith.addf %697, %19 : vector<2x40xf32>
    %699 = vector.extract_strided_slice %25 {offsets = [12, 0], sizes = [2, 40], strides = [1, 1]} : vector<18x40xf32> to vector<2x40xf32>
    %700 = arith.addf %699, %698 : vector<2x40xf32>
    %cst_68 = arith.constant 5.000000e-01 : f32
    %701 = vector.broadcast %cst_68 : f32 to vector<2x40xf32>
    %702 = arith.mulf %687, %701 : vector<2x40xf32>
    %703 = arith.subf %682, %702 : vector<2x40xf32>
    %704 = arith.mulf %703, %4 : vector<2x40xf32>
    %705 = arith.addf %704, %700 : vector<2x40xf32>
    %706 = arith.addf %705, %696 : vector<2x40xf32>
    %707 = vector.extract_strided_slice %706 {offsets = [0, 35], sizes = [2, 5], strides = [1, 1]} : vector<2x40xf32> to vector<2x5xf32>
    %708 = vector.extract_strided_slice %706 {offsets = [0, 0], sizes = [2, 35], strides = [1, 1]} : vector<2x40xf32> to vector<2x35xf32>
    %709 = tpu.concatenate %707, %708 in 1 : vector<2x5xf32>, vector<2x35xf32> -> vector<2x40xf32>
    %710 = arith.cmpf olt, %709, %706 : vector<2x40xf32>
    %711 = arith.extui %710 : vector<2x40xi1> to vector<2x40xi32>
    %712 = arith.sitofp %711 : vector<2x40xi32> to vector<2x40xf32>
    %713 = vector.extract_strided_slice %706 {offsets = [0, 30], sizes = [2, 10], strides = [1, 1]} : vector<2x40xf32> to vector<2x10xf32>
    %714 = vector.extract_strided_slice %706 {offsets = [0, 0], sizes = [2, 30], strides = [1, 1]} : vector<2x40xf32> to vector<2x30xf32>
    %715 = tpu.concatenate %713, %714 in 1 : vector<2x10xf32>, vector<2x30xf32> -> vector<2x40xf32>
    %716 = arith.cmpf olt, %715, %706 : vector<2x40xf32>
    %717 = arith.extui %716 : vector<2x40xi1> to vector<2x40xi32>
    %718 = arith.sitofp %717 : vector<2x40xi32> to vector<2x40xf32>
    %719 = arith.addf %712, %718 : vector<2x40xf32>
    %720 = vector.extract_strided_slice %706 {offsets = [0, 25], sizes = [2, 15], strides = [1, 1]} : vector<2x40xf32> to vector<2x15xf32>
    %721 = vector.extract_strided_slice %706 {offsets = [0, 0], sizes = [2, 25], strides = [1, 1]} : vector<2x40xf32> to vector<2x25xf32>
    %722 = tpu.concatenate %720, %721 in 1 : vector<2x15xf32>, vector<2x25xf32> -> vector<2x40xf32>
    %723 = arith.cmpf olt, %722, %706 : vector<2x40xf32>
    %724 = arith.extui %723 : vector<2x40xi1> to vector<2x40xi32>
    %725 = arith.sitofp %724 : vector<2x40xi32> to vector<2x40xf32>
    %726 = arith.addf %719, %725 : vector<2x40xf32>
    %727 = vector.extract_strided_slice %706 {offsets = [0, 20], sizes = [2, 20], strides = [1, 1]} : vector<2x40xf32> to vector<2x20xf32>
    %728 = vector.extract_strided_slice %706 {offsets = [0, 0], sizes = [2, 20], strides = [1, 1]} : vector<2x40xf32> to vector<2x20xf32>
    %729 = tpu.concatenate %727, %728 in 1 : vector<2x20xf32>, vector<2x20xf32> -> vector<2x40xf32>
    %730 = arith.cmpf olt, %729, %706 : vector<2x40xf32>
    %731 = arith.extui %730 : vector<2x40xi1> to vector<2x40xi32>
    %732 = arith.sitofp %731 : vector<2x40xi32> to vector<2x40xf32>
    %733 = arith.addf %726, %732 : vector<2x40xf32>
    %734 = vector.extract_strided_slice %706 {offsets = [0, 15], sizes = [2, 25], strides = [1, 1]} : vector<2x40xf32> to vector<2x25xf32>
    %735 = vector.extract_strided_slice %706 {offsets = [0, 0], sizes = [2, 15], strides = [1, 1]} : vector<2x40xf32> to vector<2x15xf32>
    %736 = tpu.concatenate %734, %735 in 1 : vector<2x25xf32>, vector<2x15xf32> -> vector<2x40xf32>
    %737 = arith.cmpf olt, %736, %706 : vector<2x40xf32>
    %738 = arith.extui %737 : vector<2x40xi1> to vector<2x40xi32>
    %739 = arith.sitofp %738 : vector<2x40xi32> to vector<2x40xf32>
    %740 = arith.addf %733, %739 : vector<2x40xf32>
    %741 = vector.extract_strided_slice %706 {offsets = [0, 10], sizes = [2, 30], strides = [1, 1]} : vector<2x40xf32> to vector<2x30xf32>
    %742 = vector.extract_strided_slice %706 {offsets = [0, 0], sizes = [2, 10], strides = [1, 1]} : vector<2x40xf32> to vector<2x10xf32>
    %743 = tpu.concatenate %741, %742 in 1 : vector<2x30xf32>, vector<2x10xf32> -> vector<2x40xf32>
    %744 = arith.cmpf olt, %743, %706 : vector<2x40xf32>
    %745 = arith.extui %744 : vector<2x40xi1> to vector<2x40xi32>
    %746 = arith.sitofp %745 : vector<2x40xi32> to vector<2x40xf32>
    %747 = arith.addf %740, %746 : vector<2x40xf32>
    %748 = vector.extract_strided_slice %706 {offsets = [0, 5], sizes = [2, 35], strides = [1, 1]} : vector<2x40xf32> to vector<2x35xf32>
    %749 = vector.extract_strided_slice %706 {offsets = [0, 0], sizes = [2, 5], strides = [1, 1]} : vector<2x40xf32> to vector<2x5xf32>
    %750 = tpu.concatenate %748, %749 in 1 : vector<2x35xf32>, vector<2x5xf32> -> vector<2x40xf32>
    %751 = arith.cmpf olt, %750, %706 : vector<2x40xf32>
    %752 = arith.extui %751 : vector<2x40xi1> to vector<2x40xi32>
    %753 = arith.sitofp %752 : vector<2x40xi32> to vector<2x40xf32>
    %754 = arith.addf %747, %753 : vector<2x40xf32>
    %cst_69 = arith.constant 5.000000e+00 : f32
    %755 = vector.broadcast %cst_69 : f32 to vector<2x40xf32>
    %756 = arith.cmpf ole, %754, %755 : vector<2x40xf32>
    %cst_70 = arith.constant -1.000000e+30 : f32
    %757 = vector.broadcast %cst_70 : f32 to vector<2x40xf32>
    %758 = arith.select %756, %706, %757 : vector<2x40xi1>, vector<2x40xf32>
    %759 = vector.extract_strided_slice %758 {offsets = [0, 35], sizes = [2, 5], strides = [1, 1]} : vector<2x40xf32> to vector<2x5xf32>
    %760 = vector.extract_strided_slice %758 {offsets = [0, 0], sizes = [2, 35], strides = [1, 1]} : vector<2x40xf32> to vector<2x35xf32>
    %761 = tpu.concatenate %759, %760 in 1 : vector<2x5xf32>, vector<2x35xf32> -> vector<2x40xf32>
    %762 = arith.maximumf %758, %761 : vector<2x40xf32>
    %763 = vector.extract_strided_slice %762 {offsets = [0, 30], sizes = [2, 10], strides = [1, 1]} : vector<2x40xf32> to vector<2x10xf32>
    %764 = vector.extract_strided_slice %762 {offsets = [0, 0], sizes = [2, 30], strides = [1, 1]} : vector<2x40xf32> to vector<2x30xf32>
    %765 = tpu.concatenate %763, %764 in 1 : vector<2x10xf32>, vector<2x30xf32> -> vector<2x40xf32>
    %766 = arith.maximumf %762, %765 : vector<2x40xf32>
    %767 = vector.extract_strided_slice %766 {offsets = [0, 20], sizes = [2, 20], strides = [1, 1]} : vector<2x40xf32> to vector<2x20xf32>
    %768 = vector.extract_strided_slice %766 {offsets = [0, 0], sizes = [2, 20], strides = [1, 1]} : vector<2x40xf32> to vector<2x20xf32>
    %769 = tpu.concatenate %767, %768 in 1 : vector<2x20xf32>, vector<2x20xf32> -> vector<2x40xf32>
    %770 = arith.maximumf %766, %769 : vector<2x40xf32>
    %cst_71 = arith.constant 6.000000e+00 : f32
    %771 = vector.broadcast %cst_71 : f32 to vector<2x40xf32>
    %772 = arith.cmpf ole, %754, %771 : vector<2x40xf32>
    %cst_72 = arith.constant -1.000000e+30 : f32
    %773 = vector.broadcast %cst_72 : f32 to vector<2x40xf32>
    %774 = arith.select %772, %706, %773 : vector<2x40xi1>, vector<2x40xf32>
    %775 = vector.extract_strided_slice %774 {offsets = [0, 35], sizes = [2, 5], strides = [1, 1]} : vector<2x40xf32> to vector<2x5xf32>
    %776 = vector.extract_strided_slice %774 {offsets = [0, 0], sizes = [2, 35], strides = [1, 1]} : vector<2x40xf32> to vector<2x35xf32>
    %777 = tpu.concatenate %775, %776 in 1 : vector<2x5xf32>, vector<2x35xf32> -> vector<2x40xf32>
    %778 = arith.maximumf %774, %777 : vector<2x40xf32>
    %779 = vector.extract_strided_slice %778 {offsets = [0, 30], sizes = [2, 10], strides = [1, 1]} : vector<2x40xf32> to vector<2x10xf32>
    %780 = vector.extract_strided_slice %778 {offsets = [0, 0], sizes = [2, 30], strides = [1, 1]} : vector<2x40xf32> to vector<2x30xf32>
    %781 = tpu.concatenate %779, %780 in 1 : vector<2x10xf32>, vector<2x30xf32> -> vector<2x40xf32>
    %782 = arith.maximumf %778, %781 : vector<2x40xf32>
    %783 = vector.extract_strided_slice %782 {offsets = [0, 20], sizes = [2, 20], strides = [1, 1]} : vector<2x40xf32> to vector<2x20xf32>
    %784 = vector.extract_strided_slice %782 {offsets = [0, 0], sizes = [2, 20], strides = [1, 1]} : vector<2x40xf32> to vector<2x20xf32>
    %785 = tpu.concatenate %783, %784 in 1 : vector<2x20xf32>, vector<2x20xf32> -> vector<2x40xf32>
    %786 = arith.maximumf %782, %785 : vector<2x40xf32>
    %787 = arith.subf %786, %770 : vector<2x40xf32>
    %cst_73 = arith.constant 6.000000e-01 : f32
    %788 = vector.broadcast %cst_73 : f32 to vector<2x40xf32>
    %789 = arith.mulf %788, %787 : vector<2x40xf32>
    %790 = arith.addf %770, %789 : vector<2x40xf32>
    %791 = arith.subf %706, %790 : vector<2x40xf32>
    %cst_74 = arith.constant 0.000000e+00 : f32
    %792 = vector.broadcast %cst_74 : f32 to vector<2x40xf32>
    %793 = arith.maximumf %791, %792 : vector<2x40xf32>
    %794 = arith.subf %793, %695 : vector<2x40xf32>
    %cst_75 = arith.constant 0.000000e+00 : f32
    %795 = vector.broadcast %cst_75 : f32 to vector<2x40xf32>
    %796 = arith.cmpf ogt, %794, %795 : vector<2x40xf32>
    %797 = arith.extui %796 : vector<2x40xi1> to vector<2x40xi32>
    %798 = arith.sitofp %797 : vector<2x40xi32> to vector<2x40xf32>
    %799 = arith.mulf %689, %10 : vector<2x40xf32>
    %800 = arith.addf %799, %798 : vector<2x40xf32>
    %801 = arith.mulf %691, %16 : vector<2x40xf32>
    %802 = arith.addf %801, %798 : vector<2x40xf32>
    %803 = arith.addf %692, %798 : vector<2x40xf32>
    %804 = arith.mulf %800, %7 : vector<2x40xf32>
    %cst_76 = arith.constant 5.000000e-01 : f32
    %805 = vector.broadcast %cst_76 : f32 to vector<2x40xf32>
    %806 = arith.addf %805, %804 : vector<2x40xf32>
    %807 = arith.mulf %802, %13 : vector<2x40xf32>
    %cst_77 = arith.constant dense<0.000000e+00> : vector<2x40xf32>
    %808 = tpu.matmul %798, %0, %cst_77 {dimension_numbers = #tpu.dot_dimension_numbers<[1], [0], [0], [1], [0, 0, 1, 1], [], []>, precision = #tpu.contract_precision<fp32>} : vector<2x40xf32>, vector<40x40xf32>, vector<2x40xf32> -> vector<2x40xf32>
    %809 = arith.addf %808, %19 : vector<2x40xf32>
    %810 = vector.extract_strided_slice %25 {offsets = [14, 0], sizes = [2, 40], strides = [1, 1]} : vector<18x40xf32> to vector<2x40xf32>
    %811 = arith.addf %810, %809 : vector<2x40xf32>
    %cst_78 = arith.constant 5.000000e-01 : f32
    %812 = vector.broadcast %cst_78 : f32 to vector<2x40xf32>
    %813 = arith.mulf %798, %812 : vector<2x40xf32>
    %814 = arith.subf %793, %813 : vector<2x40xf32>
    %815 = arith.mulf %814, %4 : vector<2x40xf32>
    %816 = arith.addf %815, %811 : vector<2x40xf32>
    %817 = arith.addf %816, %807 : vector<2x40xf32>
    %818 = vector.extract_strided_slice %817 {offsets = [0, 35], sizes = [2, 5], strides = [1, 1]} : vector<2x40xf32> to vector<2x5xf32>
    %819 = vector.extract_strided_slice %817 {offsets = [0, 0], sizes = [2, 35], strides = [1, 1]} : vector<2x40xf32> to vector<2x35xf32>
    %820 = tpu.concatenate %818, %819 in 1 : vector<2x5xf32>, vector<2x35xf32> -> vector<2x40xf32>
    %821 = arith.cmpf olt, %820, %817 : vector<2x40xf32>
    %822 = arith.extui %821 : vector<2x40xi1> to vector<2x40xi32>
    %823 = arith.sitofp %822 : vector<2x40xi32> to vector<2x40xf32>
    %824 = vector.extract_strided_slice %817 {offsets = [0, 30], sizes = [2, 10], strides = [1, 1]} : vector<2x40xf32> to vector<2x10xf32>
    %825 = vector.extract_strided_slice %817 {offsets = [0, 0], sizes = [2, 30], strides = [1, 1]} : vector<2x40xf32> to vector<2x30xf32>
    %826 = tpu.concatenate %824, %825 in 1 : vector<2x10xf32>, vector<2x30xf32> -> vector<2x40xf32>
    %827 = arith.cmpf olt, %826, %817 : vector<2x40xf32>
    %828 = arith.extui %827 : vector<2x40xi1> to vector<2x40xi32>
    %829 = arith.sitofp %828 : vector<2x40xi32> to vector<2x40xf32>
    %830 = arith.addf %823, %829 : vector<2x40xf32>
    %831 = vector.extract_strided_slice %817 {offsets = [0, 25], sizes = [2, 15], strides = [1, 1]} : vector<2x40xf32> to vector<2x15xf32>
    %832 = vector.extract_strided_slice %817 {offsets = [0, 0], sizes = [2, 25], strides = [1, 1]} : vector<2x40xf32> to vector<2x25xf32>
    %833 = tpu.concatenate %831, %832 in 1 : vector<2x15xf32>, vector<2x25xf32> -> vector<2x40xf32>
    %834 = arith.cmpf olt, %833, %817 : vector<2x40xf32>
    %835 = arith.extui %834 : vector<2x40xi1> to vector<2x40xi32>
    %836 = arith.sitofp %835 : vector<2x40xi32> to vector<2x40xf32>
    %837 = arith.addf %830, %836 : vector<2x40xf32>
    %838 = vector.extract_strided_slice %817 {offsets = [0, 20], sizes = [2, 20], strides = [1, 1]} : vector<2x40xf32> to vector<2x20xf32>
    %839 = vector.extract_strided_slice %817 {offsets = [0, 0], sizes = [2, 20], strides = [1, 1]} : vector<2x40xf32> to vector<2x20xf32>
    %840 = tpu.concatenate %838, %839 in 1 : vector<2x20xf32>, vector<2x20xf32> -> vector<2x40xf32>
    %841 = arith.cmpf olt, %840, %817 : vector<2x40xf32>
    %842 = arith.extui %841 : vector<2x40xi1> to vector<2x40xi32>
    %843 = arith.sitofp %842 : vector<2x40xi32> to vector<2x40xf32>
    %844 = arith.addf %837, %843 : vector<2x40xf32>
    %845 = vector.extract_strided_slice %817 {offsets = [0, 15], sizes = [2, 25], strides = [1, 1]} : vector<2x40xf32> to vector<2x25xf32>
    %846 = vector.extract_strided_slice %817 {offsets = [0, 0], sizes = [2, 15], strides = [1, 1]} : vector<2x40xf32> to vector<2x15xf32>
    %847 = tpu.concatenate %845, %846 in 1 : vector<2x25xf32>, vector<2x15xf32> -> vector<2x40xf32>
    %848 = arith.cmpf olt, %847, %817 : vector<2x40xf32>
    %849 = arith.extui %848 : vector<2x40xi1> to vector<2x40xi32>
    %850 = arith.sitofp %849 : vector<2x40xi32> to vector<2x40xf32>
    %851 = arith.addf %844, %850 : vector<2x40xf32>
    %852 = vector.extract_strided_slice %817 {offsets = [0, 10], sizes = [2, 30], strides = [1, 1]} : vector<2x40xf32> to vector<2x30xf32>
    %853 = vector.extract_strided_slice %817 {offsets = [0, 0], sizes = [2, 10], strides = [1, 1]} : vector<2x40xf32> to vector<2x10xf32>
    %854 = tpu.concatenate %852, %853 in 1 : vector<2x30xf32>, vector<2x10xf32> -> vector<2x40xf32>
    %855 = arith.cmpf olt, %854, %817 : vector<2x40xf32>
    %856 = arith.extui %855 : vector<2x40xi1> to vector<2x40xi32>
    %857 = arith.sitofp %856 : vector<2x40xi32> to vector<2x40xf32>
    %858 = arith.addf %851, %857 : vector<2x40xf32>
    %859 = vector.extract_strided_slice %817 {offsets = [0, 5], sizes = [2, 35], strides = [1, 1]} : vector<2x40xf32> to vector<2x35xf32>
    %860 = vector.extract_strided_slice %817 {offsets = [0, 0], sizes = [2, 5], strides = [1, 1]} : vector<2x40xf32> to vector<2x5xf32>
    %861 = tpu.concatenate %859, %860 in 1 : vector<2x35xf32>, vector<2x5xf32> -> vector<2x40xf32>
    %862 = arith.cmpf olt, %861, %817 : vector<2x40xf32>
    %863 = arith.extui %862 : vector<2x40xi1> to vector<2x40xi32>
    %864 = arith.sitofp %863 : vector<2x40xi32> to vector<2x40xf32>
    %865 = arith.addf %858, %864 : vector<2x40xf32>
    %cst_79 = arith.constant 5.000000e+00 : f32
    %866 = vector.broadcast %cst_79 : f32 to vector<2x40xf32>
    %867 = arith.cmpf ole, %865, %866 : vector<2x40xf32>
    %cst_80 = arith.constant -1.000000e+30 : f32
    %868 = vector.broadcast %cst_80 : f32 to vector<2x40xf32>
    %869 = arith.select %867, %817, %868 : vector<2x40xi1>, vector<2x40xf32>
    %870 = vector.extract_strided_slice %869 {offsets = [0, 35], sizes = [2, 5], strides = [1, 1]} : vector<2x40xf32> to vector<2x5xf32>
    %871 = vector.extract_strided_slice %869 {offsets = [0, 0], sizes = [2, 35], strides = [1, 1]} : vector<2x40xf32> to vector<2x35xf32>
    %872 = tpu.concatenate %870, %871 in 1 : vector<2x5xf32>, vector<2x35xf32> -> vector<2x40xf32>
    %873 = arith.maximumf %869, %872 : vector<2x40xf32>
    %874 = vector.extract_strided_slice %873 {offsets = [0, 30], sizes = [2, 10], strides = [1, 1]} : vector<2x40xf32> to vector<2x10xf32>
    %875 = vector.extract_strided_slice %873 {offsets = [0, 0], sizes = [2, 30], strides = [1, 1]} : vector<2x40xf32> to vector<2x30xf32>
    %876 = tpu.concatenate %874, %875 in 1 : vector<2x10xf32>, vector<2x30xf32> -> vector<2x40xf32>
    %877 = arith.maximumf %873, %876 : vector<2x40xf32>
    %878 = vector.extract_strided_slice %877 {offsets = [0, 20], sizes = [2, 20], strides = [1, 1]} : vector<2x40xf32> to vector<2x20xf32>
    %879 = vector.extract_strided_slice %877 {offsets = [0, 0], sizes = [2, 20], strides = [1, 1]} : vector<2x40xf32> to vector<2x20xf32>
    %880 = tpu.concatenate %878, %879 in 1 : vector<2x20xf32>, vector<2x20xf32> -> vector<2x40xf32>
    %881 = arith.maximumf %877, %880 : vector<2x40xf32>
    %cst_81 = arith.constant 6.000000e+00 : f32
    %882 = vector.broadcast %cst_81 : f32 to vector<2x40xf32>
    %883 = arith.cmpf ole, %865, %882 : vector<2x40xf32>
    %cst_82 = arith.constant -1.000000e+30 : f32
    %884 = vector.broadcast %cst_82 : f32 to vector<2x40xf32>
    %885 = arith.select %883, %817, %884 : vector<2x40xi1>, vector<2x40xf32>
    %886 = vector.extract_strided_slice %885 {offsets = [0, 35], sizes = [2, 5], strides = [1, 1]} : vector<2x40xf32> to vector<2x5xf32>
    %887 = vector.extract_strided_slice %885 {offsets = [0, 0], sizes = [2, 35], strides = [1, 1]} : vector<2x40xf32> to vector<2x35xf32>
    %888 = tpu.concatenate %886, %887 in 1 : vector<2x5xf32>, vector<2x35xf32> -> vector<2x40xf32>
    %889 = arith.maximumf %885, %888 : vector<2x40xf32>
    %890 = vector.extract_strided_slice %889 {offsets = [0, 30], sizes = [2, 10], strides = [1, 1]} : vector<2x40xf32> to vector<2x10xf32>
    %891 = vector.extract_strided_slice %889 {offsets = [0, 0], sizes = [2, 30], strides = [1, 1]} : vector<2x40xf32> to vector<2x30xf32>
    %892 = tpu.concatenate %890, %891 in 1 : vector<2x10xf32>, vector<2x30xf32> -> vector<2x40xf32>
    %893 = arith.maximumf %889, %892 : vector<2x40xf32>
    %894 = vector.extract_strided_slice %893 {offsets = [0, 20], sizes = [2, 20], strides = [1, 1]} : vector<2x40xf32> to vector<2x20xf32>
    %895 = vector.extract_strided_slice %893 {offsets = [0, 0], sizes = [2, 20], strides = [1, 1]} : vector<2x40xf32> to vector<2x20xf32>
    %896 = tpu.concatenate %894, %895 in 1 : vector<2x20xf32>, vector<2x20xf32> -> vector<2x40xf32>
    %897 = arith.maximumf %893, %896 : vector<2x40xf32>
    %898 = arith.subf %897, %881 : vector<2x40xf32>
    %cst_83 = arith.constant 6.000000e-01 : f32
    %899 = vector.broadcast %cst_83 : f32 to vector<2x40xf32>
    %900 = arith.mulf %899, %898 : vector<2x40xf32>
    %901 = arith.addf %881, %900 : vector<2x40xf32>
    %902 = arith.subf %817, %901 : vector<2x40xf32>
    %cst_84 = arith.constant 0.000000e+00 : f32
    %903 = vector.broadcast %cst_84 : f32 to vector<2x40xf32>
    %904 = arith.maximumf %902, %903 : vector<2x40xf32>
    %905 = arith.subf %904, %806 : vector<2x40xf32>
    %cst_85 = arith.constant 0.000000e+00 : f32
    %906 = vector.broadcast %cst_85 : f32 to vector<2x40xf32>
    %907 = arith.cmpf ogt, %905, %906 : vector<2x40xf32>
    %908 = arith.extui %907 : vector<2x40xi1> to vector<2x40xi32>
    %909 = arith.sitofp %908 : vector<2x40xi32> to vector<2x40xf32>
    %910 = arith.mulf %800, %10 : vector<2x40xf32>
    %911 = arith.addf %910, %909 : vector<2x40xf32>
    %912 = arith.mulf %802, %16 : vector<2x40xf32>
    %913 = arith.addf %912, %909 : vector<2x40xf32>
    %914 = arith.addf %803, %909 : vector<2x40xf32>
    %915 = arith.mulf %911, %7 : vector<2x40xf32>
    %cst_86 = arith.constant 5.000000e-01 : f32
    %916 = vector.broadcast %cst_86 : f32 to vector<2x40xf32>
    %917 = arith.addf %916, %915 : vector<2x40xf32>
    %918 = arith.mulf %913, %13 : vector<2x40xf32>
    %cst_87 = arith.constant dense<0.000000e+00> : vector<2x40xf32>
    %919 = tpu.matmul %909, %0, %cst_87 {dimension_numbers = #tpu.dot_dimension_numbers<[1], [0], [0], [1], [0, 0, 1, 1], [], []>, precision = #tpu.contract_precision<fp32>} : vector<2x40xf32>, vector<40x40xf32>, vector<2x40xf32> -> vector<2x40xf32>
    %920 = arith.addf %919, %19 : vector<2x40xf32>
    %921 = vector.extract_strided_slice %25 {offsets = [16, 0], sizes = [2, 40], strides = [1, 1]} : vector<18x40xf32> to vector<2x40xf32>
    %922 = arith.addf %921, %920 : vector<2x40xf32>
    %cst_88 = arith.constant 5.000000e-01 : f32
    %923 = vector.broadcast %cst_88 : f32 to vector<2x40xf32>
    %924 = arith.mulf %909, %923 : vector<2x40xf32>
    %925 = arith.subf %904, %924 : vector<2x40xf32>
    %926 = arith.mulf %925, %4 : vector<2x40xf32>
    %927 = arith.addf %926, %922 : vector<2x40xf32>
    %928 = arith.addf %927, %918 : vector<2x40xf32>
    %929 = vector.extract_strided_slice %928 {offsets = [0, 35], sizes = [2, 5], strides = [1, 1]} : vector<2x40xf32> to vector<2x5xf32>
    %930 = vector.extract_strided_slice %928 {offsets = [0, 0], sizes = [2, 35], strides = [1, 1]} : vector<2x40xf32> to vector<2x35xf32>
    %931 = tpu.concatenate %929, %930 in 1 : vector<2x5xf32>, vector<2x35xf32> -> vector<2x40xf32>
    %932 = arith.cmpf olt, %931, %928 : vector<2x40xf32>
    %933 = arith.extui %932 : vector<2x40xi1> to vector<2x40xi32>
    %934 = arith.sitofp %933 : vector<2x40xi32> to vector<2x40xf32>
    %935 = vector.extract_strided_slice %928 {offsets = [0, 30], sizes = [2, 10], strides = [1, 1]} : vector<2x40xf32> to vector<2x10xf32>
    %936 = vector.extract_strided_slice %928 {offsets = [0, 0], sizes = [2, 30], strides = [1, 1]} : vector<2x40xf32> to vector<2x30xf32>
    %937 = tpu.concatenate %935, %936 in 1 : vector<2x10xf32>, vector<2x30xf32> -> vector<2x40xf32>
    %938 = arith.cmpf olt, %937, %928 : vector<2x40xf32>
    %939 = arith.extui %938 : vector<2x40xi1> to vector<2x40xi32>
    %940 = arith.sitofp %939 : vector<2x40xi32> to vector<2x40xf32>
    %941 = arith.addf %934, %940 : vector<2x40xf32>
    %942 = vector.extract_strided_slice %928 {offsets = [0, 25], sizes = [2, 15], strides = [1, 1]} : vector<2x40xf32> to vector<2x15xf32>
    %943 = vector.extract_strided_slice %928 {offsets = [0, 0], sizes = [2, 25], strides = [1, 1]} : vector<2x40xf32> to vector<2x25xf32>
    %944 = tpu.concatenate %942, %943 in 1 : vector<2x15xf32>, vector<2x25xf32> -> vector<2x40xf32>
    %945 = arith.cmpf olt, %944, %928 : vector<2x40xf32>
    %946 = arith.extui %945 : vector<2x40xi1> to vector<2x40xi32>
    %947 = arith.sitofp %946 : vector<2x40xi32> to vector<2x40xf32>
    %948 = arith.addf %941, %947 : vector<2x40xf32>
    %949 = vector.extract_strided_slice %928 {offsets = [0, 20], sizes = [2, 20], strides = [1, 1]} : vector<2x40xf32> to vector<2x20xf32>
    %950 = vector.extract_strided_slice %928 {offsets = [0, 0], sizes = [2, 20], strides = [1, 1]} : vector<2x40xf32> to vector<2x20xf32>
    %951 = tpu.concatenate %949, %950 in 1 : vector<2x20xf32>, vector<2x20xf32> -> vector<2x40xf32>
    %952 = arith.cmpf olt, %951, %928 : vector<2x40xf32>
    %953 = arith.extui %952 : vector<2x40xi1> to vector<2x40xi32>
    %954 = arith.sitofp %953 : vector<2x40xi32> to vector<2x40xf32>
    %955 = arith.addf %948, %954 : vector<2x40xf32>
    %956 = vector.extract_strided_slice %928 {offsets = [0, 15], sizes = [2, 25], strides = [1, 1]} : vector<2x40xf32> to vector<2x25xf32>
    %957 = vector.extract_strided_slice %928 {offsets = [0, 0], sizes = [2, 15], strides = [1, 1]} : vector<2x40xf32> to vector<2x15xf32>
    %958 = tpu.concatenate %956, %957 in 1 : vector<2x25xf32>, vector<2x15xf32> -> vector<2x40xf32>
    %959 = arith.cmpf olt, %958, %928 : vector<2x40xf32>
    %960 = arith.extui %959 : vector<2x40xi1> to vector<2x40xi32>
    %961 = arith.sitofp %960 : vector<2x40xi32> to vector<2x40xf32>
    %962 = arith.addf %955, %961 : vector<2x40xf32>
    %963 = vector.extract_strided_slice %928 {offsets = [0, 10], sizes = [2, 30], strides = [1, 1]} : vector<2x40xf32> to vector<2x30xf32>
    %964 = vector.extract_strided_slice %928 {offsets = [0, 0], sizes = [2, 10], strides = [1, 1]} : vector<2x40xf32> to vector<2x10xf32>
    %965 = tpu.concatenate %963, %964 in 1 : vector<2x30xf32>, vector<2x10xf32> -> vector<2x40xf32>
    %966 = arith.cmpf olt, %965, %928 : vector<2x40xf32>
    %967 = arith.extui %966 : vector<2x40xi1> to vector<2x40xi32>
    %968 = arith.sitofp %967 : vector<2x40xi32> to vector<2x40xf32>
    %969 = arith.addf %962, %968 : vector<2x40xf32>
    %970 = vector.extract_strided_slice %928 {offsets = [0, 5], sizes = [2, 35], strides = [1, 1]} : vector<2x40xf32> to vector<2x35xf32>
    %971 = vector.extract_strided_slice %928 {offsets = [0, 0], sizes = [2, 5], strides = [1, 1]} : vector<2x40xf32> to vector<2x5xf32>
    %972 = tpu.concatenate %970, %971 in 1 : vector<2x35xf32>, vector<2x5xf32> -> vector<2x40xf32>
    %973 = arith.cmpf olt, %972, %928 : vector<2x40xf32>
    %974 = arith.extui %973 : vector<2x40xi1> to vector<2x40xi32>
    %975 = arith.sitofp %974 : vector<2x40xi32> to vector<2x40xf32>
    %976 = arith.addf %969, %975 : vector<2x40xf32>
    %cst_89 = arith.constant 5.000000e+00 : f32
    %977 = vector.broadcast %cst_89 : f32 to vector<2x40xf32>
    %978 = arith.cmpf ole, %976, %977 : vector<2x40xf32>
    %cst_90 = arith.constant -1.000000e+30 : f32
    %979 = vector.broadcast %cst_90 : f32 to vector<2x40xf32>
    %980 = arith.select %978, %928, %979 : vector<2x40xi1>, vector<2x40xf32>
    %981 = vector.extract_strided_slice %980 {offsets = [0, 35], sizes = [2, 5], strides = [1, 1]} : vector<2x40xf32> to vector<2x5xf32>
    %982 = vector.extract_strided_slice %980 {offsets = [0, 0], sizes = [2, 35], strides = [1, 1]} : vector<2x40xf32> to vector<2x35xf32>
    %983 = tpu.concatenate %981, %982 in 1 : vector<2x5xf32>, vector<2x35xf32> -> vector<2x40xf32>
    %984 = arith.maximumf %980, %983 : vector<2x40xf32>
    %985 = vector.extract_strided_slice %984 {offsets = [0, 30], sizes = [2, 10], strides = [1, 1]} : vector<2x40xf32> to vector<2x10xf32>
    %986 = vector.extract_strided_slice %984 {offsets = [0, 0], sizes = [2, 30], strides = [1, 1]} : vector<2x40xf32> to vector<2x30xf32>
    %987 = tpu.concatenate %985, %986 in 1 : vector<2x10xf32>, vector<2x30xf32> -> vector<2x40xf32>
    %988 = arith.maximumf %984, %987 : vector<2x40xf32>
    %989 = vector.extract_strided_slice %988 {offsets = [0, 20], sizes = [2, 20], strides = [1, 1]} : vector<2x40xf32> to vector<2x20xf32>
    %990 = vector.extract_strided_slice %988 {offsets = [0, 0], sizes = [2, 20], strides = [1, 1]} : vector<2x40xf32> to vector<2x20xf32>
    %991 = tpu.concatenate %989, %990 in 1 : vector<2x20xf32>, vector<2x20xf32> -> vector<2x40xf32>
    %992 = arith.maximumf %988, %991 : vector<2x40xf32>
    %cst_91 = arith.constant 6.000000e+00 : f32
    %993 = vector.broadcast %cst_91 : f32 to vector<2x40xf32>
    %994 = arith.cmpf ole, %976, %993 : vector<2x40xf32>
    %cst_92 = arith.constant -1.000000e+30 : f32
    %995 = vector.broadcast %cst_92 : f32 to vector<2x40xf32>
    %996 = arith.select %994, %928, %995 : vector<2x40xi1>, vector<2x40xf32>
    %997 = vector.extract_strided_slice %996 {offsets = [0, 35], sizes = [2, 5], strides = [1, 1]} : vector<2x40xf32> to vector<2x5xf32>
    %998 = vector.extract_strided_slice %996 {offsets = [0, 0], sizes = [2, 35], strides = [1, 1]} : vector<2x40xf32> to vector<2x35xf32>
    %999 = tpu.concatenate %997, %998 in 1 : vector<2x5xf32>, vector<2x35xf32> -> vector<2x40xf32>
    %1000 = arith.maximumf %996, %999 : vector<2x40xf32>
    %1001 = vector.extract_strided_slice %1000 {offsets = [0, 30], sizes = [2, 10], strides = [1, 1]} : vector<2x40xf32> to vector<2x10xf32>
    %1002 = vector.extract_strided_slice %1000 {offsets = [0, 0], sizes = [2, 30], strides = [1, 1]} : vector<2x40xf32> to vector<2x30xf32>
    %1003 = tpu.concatenate %1001, %1002 in 1 : vector<2x10xf32>, vector<2x30xf32> -> vector<2x40xf32>
    %1004 = arith.maximumf %1000, %1003 : vector<2x40xf32>
    %1005 = vector.extract_strided_slice %1004 {offsets = [0, 20], sizes = [2, 20], strides = [1, 1]} : vector<2x40xf32> to vector<2x20xf32>
    %1006 = vector.extract_strided_slice %1004 {offsets = [0, 0], sizes = [2, 20], strides = [1, 1]} : vector<2x40xf32> to vector<2x20xf32>
    %1007 = tpu.concatenate %1005, %1006 in 1 : vector<2x20xf32>, vector<2x20xf32> -> vector<2x40xf32>
    %1008 = arith.maximumf %1004, %1007 : vector<2x40xf32>
    %1009 = arith.subf %1008, %992 : vector<2x40xf32>
    %cst_93 = arith.constant 6.000000e-01 : f32
    %1010 = vector.broadcast %cst_93 : f32 to vector<2x40xf32>
    %1011 = arith.mulf %1010, %1009 : vector<2x40xf32>
    %1012 = arith.addf %992, %1011 : vector<2x40xf32>
    %1013 = arith.subf %928, %1012 : vector<2x40xf32>
    %cst_94 = arith.constant 0.000000e+00 : f32
    %1014 = vector.broadcast %cst_94 : f32 to vector<2x40xf32>
    %1015 = arith.maximumf %1013, %1014 : vector<2x40xf32>
    %1016 = arith.subf %1015, %917 : vector<2x40xf32>
    %cst_95 = arith.constant 0.000000e+00 : f32
    %1017 = vector.broadcast %cst_95 : f32 to vector<2x40xf32>
    %1018 = arith.cmpf ogt, %1016, %1017 : vector<2x40xf32>
    %1019 = arith.extui %1018 : vector<2x40xi1> to vector<2x40xi32>
    %1020 = arith.sitofp %1019 : vector<2x40xi32> to vector<2x40xf32>
    %1021 = arith.addf %914, %1020 : vector<2x40xf32>
    %c0_96 = arith.constant 0 : index
    %c0_97 = arith.constant 0 : index
    %1022 = vector.load %arg3[%c0_96, %c0_97] : memref<2x40xf32, #tpu.memory_space<vmem>>, vector<2x40xf32>
    tpu.vector_store %arg3[%c0_96, %c0_97], %1021 {strides = array<i32>} : memref<2x40xf32, #tpu.memory_space<vmem>>, vector<2x40xf32>,
    %c128 = arith.constant 128 : index
    %c0_98 = arith.constant 0 : index
    %1023 = vector.load %arg1[%c128, %c0_98] : memref<168x40xf32, #tpu.memory_space<vmem>>, vector<40x40xf32>
    %cst_99 = arith.constant dense<0.000000e+00> : vector<2x40xf32>
    %1024 = tpu.matmul %1021, %1023, %cst_99 {dimension_numbers = #tpu.dot_dimension_numbers<[1], [0], [0], [1], [0, 0, 1, 1], [], []>, precision = #tpu.contract_precision<fp32>} : vector<2x40xf32>, vector<40x40xf32>, vector<2x40xf32> -> vector<2x40xf32>
    %c127 = arith.constant 127 : index
    %c0_100 = arith.constant 0 : index
    %1025 = vector.load %arg1[%c127, %c0_100] : memref<168x40xf32, #tpu.memory_space<vmem>>, vector<1x40xf32>
    %1026 = vector.broadcast %1025 : vector<1x40xf32> to vector<2x40xf32>
    %1027 = arith.addf %1024, %1026 : vector<2x40xf32>
    %1028 = vector.extract_strided_slice %1027 {offsets = [0, 0], sizes = [2, 10], strides = [1, 1]} : vector<2x40xf32> to vector<2x10xf32>
    %c0_101 = arith.constant 0 : index
    %c0_102 = arith.constant 0 : index
    %1029 = vector.load %arg2[%c0_101, %c0_102] : memref<2x10xf32, #tpu.memory_space<vmem>>, vector<2x10xf32>
    tpu.vector_store %arg2[%c0_101, %c0_102], %1028 {strides = array<i32>} : memref<2x10xf32, #tpu.memory_space<vmem>>, vector<2x10xf32>,
    return
  }
}

</mosaic_0001>

<llo_original>
// kernel: tpu_custom_call.1
$region0: #{tpu_custom_call.1}
  #allocation0 [shape = 'u32[]', space=smem, size = 0x4, offset = 0x4, fixed_abs, tag = 'smem constant byte address 0x4 - core index']
  #allocation1 [shape = 'u32[72,128]{1,0:T(1,128)}', space=vmem, size = 0x9000, scoped, tag = 'internal scratch']
  %s0 = inlined_call_operand.vmem [shape: f32[18,80], index: 0, kind: input, shape index: {}]
  %s1 = inlined_call_operand.vmem [shape: f32[168,40], index: 1, kind: input, shape index: {}]
  %s2 = inlined_call_operand.hbm [shape: f32[2,10], index: 2, kind: output, shape index: {0}]
  %s3 = inlined_call_operand.hbm [shape: f32[2,40], index: 3, kind: output, shape index: {1}]
  %4 = xla_tuple %s2, %s3
  %s5 = sld [smem:[#allocation0]]
  $region26: #{tpu_custom_call.1} parent=0
    _
  %s7 = ssub.s32 1, %s5
  %s8 = scalar_select 0, %s7, %s5
  $region1: #{tpu_custom_call.1} parent=0
    #allocation2 [shape = 'u8[1024]{0}', space=vmem, size = 0x400, scoped, tag = 'output window, operand 0, single buffered']
    #allocation3 [shape = 's32[1]{0}', space=sflag, size = 0x4, scoped, tag = 'scoped memory for tpu_custom_call.1']
    #allocation4 [shape = 'u8[1024]{0}', space=vmem, size = 0x400, scoped, tag = 'output window, operand 1, single buffered']
    #allocation5 [shape = 's32[1]{0}', space=sflag, size = 0x4, scoped, tag = 'scoped memory for tpu_custom_call.1']
    %9 = vsyncpa [#allocation3], 0
    %10 = vsyncpa [#allocation5], 0
    // Predicated region
    $region2: #{tpu_custom_call.1} parent=1 // pred_check
      _
    $region3: #{tpu_custom_call.1} parent=1 // pred_check_branch
      %12 = sbr.rel (0) target = $region5
    $region4: #{tpu_custom_call.1} parent=1 // pred_region
      _
    $region5: #{tpu_custom_call.1} parent=1 // pred_fallthru
      _
    // Predicated region
    $region6: #{tpu_custom_call.1} parent=1 // pred_check
      _
    $region7: #{tpu_custom_call.1} parent=1 // pred_check_branch
      %14 = sbr.rel (0) target = $region9
    $region8: #{tpu_custom_call.1} parent=1 // pred_region
      _
    $region9: #{tpu_custom_call.1} parent=1 // pred_fallthru
      _
    %v15 = vld [vmem:[%s1 + $0x50] sm:$0xff]
    %v16 = vld [vmem:[%s1 + $0x58] sm:$0xff]
    %v17 = vld [vmem:[%s1 + $0x60] sm:$0xff]
    %v18 = vld [vmem:[%s1 + $0x68] sm:$0xff]
    %v19 = vld [vmem:[%s1 + $0x70] sm:$0xff]
    %v20 = vld [vmem:[%s1 + $0x78] sm:$0x7f]
    %v21 = vperm.slane %v20, 0
    %v22 = vperm.slane %v20, 1
    %v23 = vperm.slane %v20, 2
    %v24 = vperm.slane %v20, 3
    %v25 = vperm.slane %v20, 4
    %v26 = vperm.slane %v20, 6
    %v27 = vld [vmem:[%s0] sm:$0xff]
    %v28 = vld [vmem:[%s0 + $0x8] sm:$0xff]
    %v29 = vld [vmem:[%s0 + $0x10] sm:$0x3]
    %v30 = vld [vmem:[%s1] sm:$0xff]
    %v31 = vld [vmem:[%s1 + $0x8] sm:$0xff]
    %v32 = vld [vmem:[%s1 + $0x10] sm:$0xff]
    %v33 = vld [vmem:[%s1 + $0x18] sm:$0xff]
    %v34 = vld [vmem:[%s1 + $0x20] sm:$0xff]
    %v35 = vld [vmem:[%s1 + $0x28] sm:$0xff]
    %v36 = vld [vmem:[%s1 + $0x30] sm:$0xff]
    %v37 = vld [vmem:[%s1 + $0x38] sm:$0xff]
    %v38 = vld [vmem:[%s1 + $0x40] sm:$0xff]
    %v39 = vld [vmem:[%s1 + $0x48] sm:$0xff]
    %v40 = vperm.slane %v20, 5
    %vm41 = vcmask 654336
    %v43 = vsel %vm41, %v27, 0
    %v46 = vsel %vm41, %v28, 0
    %v49 = vsel %vm41, %v29, 0
    %51 = vmatpush.msra.mxu0 0.0
    %52 = vmatpush.msra.mxu0 0.0
    %53 = vmatpush.msra.mxu0 0.0
    %54 = vmatpush.msra.mxu0 0.0
    %55 = vmatpush.msra.mxu0 0.0
    %56 = vmatpush.msra.mxu0 0.0
    %v57 = vand.u32 %v39, 4294901760
    %58 = vmatpush.msra.mxu0 %v57
    %v59 = vand.u32 %v38, 4294901760
    %60 = vmatpush.msra.mxu0 %v59
    %v61 = vand.u32 %v37, 4294901760
    %62 = vmatpush.msra.mxu0 %v61
    %v63 = vand.u32 %v36, 4294901760
    %64 = vmatpush.msra.mxu0 %v63
    %v65 = vand.u32 %v35, 4294901760
    %66 = vmatpush.msra.mxu0 %v65
    %v67 = vand.u32 %v34, 4294901760
    %68 = vmatpush.msra.mxu0 %v67
    %v69 = vand.u32 %v33, 4294901760
    %70 = vmatpush.msra.mxu0 %v69
    %v71 = vand.u32 %v32, 4294901760
    %72 = vmatpush.msra.mxu0 %v71
    %v73 = vand.u32 %v31, 4294901760
    %74 = vmatpush.msra.mxu0 %v73
    %v75 = vand.u32 %v30, 4294901760
    %76 = vmatpush.msra.mxu0 %v75
    %v77 = vand.u32 %v43, 4294901760
    %v78 = vsub.f32 %v43, %v77
    %v79 = vand.u32 %v78, 4294901760
    %v80 = vsub.f32 %v78, %v79
    %v81 = vand.u32 %v80, 4294901760
    %82 = vmatmul.f32.gmra.mxu0 %v81
    %v83 = vpop.f32.mrf.mxu0
    %v84 = vadd.f32 %v40, %v83
    %v85 = vand.u32 %v46, 4294901760
    %v86 = vsub.f32 %v46, %v85
    %v87 = vand.u32 %v86, 4294901760
    %v88 = vsub.f32 %v86, %v87
    %v89 = vand.u32 %v88, 4294901760
    %90 = vmatmul.f32.gmra.mxu0 %v89
    %v91 = vpop.f32.mrf.mxu0
    %v92 = vadd.f32 %v40, %v91
    %v93 = vand.u32 %v49, 4294901760
    %v94 = vsub.f32 %v49, %v93
    %v95 = vand.u32 %v94, 4294901760
    %v96 = vsub.f32 %v94, %v95
    %v97 = vand.u32 %v96, 4294901760
    %98 = vmatmul.f32.gmra.mxu0 %v97
    %v99 = vpop.f32.mrf.mxu0
    %v100 = vadd.f32 %v40, %v99
    %101 = vdwg.mxu0
    %102 = vmatpush.msra.mxu0 0.0
    %103 = vmatpush.msra.mxu0 0.0
    %104 = vmatpush.msra.mxu0 0.0
    %105 = vmatpush.msra.mxu0 0.0
    %106 = vmatpush.msra.mxu0 0.0
    %107 = vmatpush.msra.mxu0 0.0
    %v108 = vand.u32 %v39, 4294901760
    %v109 = vsub.f32 %v39, %v108
    %v110 = vand.u32 %v109, 4294901760
    %v111 = vsub.f32 %v109, %v110
    %v112 = vand.u32 %v111, 4294901760
    %113 = vmatpush.msra.mxu0 %v112
    %v114 = vand.u32 %v38, 4294901760
    %v115 = vsub.f32 %v38, %v114
    %v116 = vand.u32 %v115, 4294901760
    %v117 = vsub.f32 %v115, %v116
    %v118 = vand.u32 %v117, 4294901760
    %119 = vmatpush.msra.mxu0 %v118
    %v120 = vand.u32 %v37, 4294901760
    %v121 = vsub.f32 %v37, %v120
    %v122 = vand.u32 %v121, 4294901760
    %v123 = vsub.f32 %v121, %v122
    %v124 = vand.u32 %v123, 4294901760
    %125 = vmatpush.msra.mxu0 %v124
    %v126 = vand.u32 %v36, 4294901760
    %v127 = vsub.f32 %v36, %v126
    %v128 = vand.u32 %v127, 4294901760
    %v129 = vsub.f32 %v127, %v128
    %v130 = vand.u32 %v129, 4294901760
    %131 = vmatpush.msra.mxu0 %v130
    %v132 = vand.u32 %v35, 4294901760
    %v133 = vsub.f32 %v35, %v132
    %v134 = vand.u32 %v133, 4294901760
    %v135 = vsub.f32 %v133, %v134
    %v136 = vand.u32 %v135, 4294901760
    %137 = vmatpush.msra.mxu0 %v136
    %v138 = vand.u32 %v34, 4294901760
    %v139 = vsub.f32 %v34, %v138
    %v140 = vand.u32 %v139, 4294901760
    %v141 = vsub.f32 %v139, %v140
    %v142 = vand.u32 %v141, 4294901760
    %143 = vmatpush.msra.mxu0 %v142
    %v144 = vand.u32 %v33, 4294901760
    %v145 = vsub.f32 %v33, %v144
    %v146 = vand.u32 %v145, 4294901760
    %v147 = vsub.f32 %v145, %v146
    %v148 = vand.u32 %v147, 4294901760
    %149 = vmatpush.msra.mxu0 %v148
    %v150 = vand.u32 %v32, 4294901760
    %v151 = vsub.f32 %v32, %v150
    %v152 = vand.u32 %v151, 4294901760
    %v153 = vsub.f32 %v151, %v152
    %v154 = vand.u32 %v153, 4294901760
    %155 = vmatpush.msra.mxu0 %v154
    %v156 = vand.u32 %v31, 4294901760
    %v157 = vsub.f32 %v31, %v156
    %v158 = vand.u32 %v157, 4294901760
    %v159 = vsub.f32 %v157, %v158
    %v160 = vand.u32 %v159, 4294901760
    %161 = vmatpush.msra.mxu0 %v160
    %v162 = vand.u32 %v30, 4294901760
    %v163 = vsub.f32 %v30, %v162
    %v164 = vand.u32 %v163, 4294901760
    %v165 = vsub.f32 %v163, %v164
    %v166 = vand.u32 %v165, 4294901760
    %167 = vmatpush.msra.mxu0 %v166
    %v168 = vand.u32 %v43, 4294901760
    %169 = vmatmul.f32.gmra.mxu0 %v168
    %v170 = vpop.f32.mrf.mxu0
    %v171 = vadd.f32 %v84, %v170
    %v172 = vand.u32 %v46, 4294901760
    %173 = vmatmul.f32.gmra.mxu0 %v172
    %v174 = vpop.f32.mrf.mxu0
    %v175 = vadd.f32 %v92, %v174
    %v176 = vand.u32 %v49, 4294901760
    %177 = vmatmul.f32.gmra.mxu0 %v176
    %v178 = vpop.f32.mrf.mxu0
    %v179 = vadd.f32 %v100, %v178
    %180 = vdwg.mxu0
    %181 = vmatpush.msra.mxu0 0.0
    %182 = vmatpush.msra.mxu0 0.0
    %183 = vmatpush.msra.mxu0 0.0
    %184 = vmatpush.msra.mxu0 0.0
    %185 = vmatpush.msra.mxu0 0.0
    %186 = vmatpush.msra.mxu0 0.0
    %v187 = vand.u32 %v39, 4294901760
    %v188 = vsub.f32 %v39, %v187
    %189 = vmatpush.msra.mxu0 %v188
    %v190 = vand.u32 %v38, 4294901760
    %v191 = vsub.f32 %v38, %v190
    %192 = vmatpush.msra.mxu0 %v191
    %v193 = vand.u32 %v37, 4294901760
    %v194 = vsub.f32 %v37, %v193
    %195 = vmatpush.msra.mxu0 %v194
    %v196 = vand.u32 %v36, 4294901760
    %v197 = vsub.f32 %v36, %v196
    %198 = vmatpush.msra.mxu0 %v197
    %v199 = vand.u32 %v35, 4294901760
    %v200 = vsub.f32 %v35, %v199
    %201 = vmatpush.msra.mxu0 %v200
    %v202 = vand.u32 %v34, 4294901760
    %v203 = vsub.f32 %v34, %v202
    %204 = vmatpush.msra.mxu0 %v203
    %v205 = vand.u32 %v33, 4294901760
    %v206 = vsub.f32 %v33, %v205
    %207 = vmatpush.msra.mxu0 %v206
    %v208 = vand.u32 %v32, 4294901760
    %v209 = vsub.f32 %v32, %v208
    %210 = vmatpush.msra.mxu0 %v209
    %v211 = vand.u32 %v31, 4294901760
    %v212 = vsub.f32 %v31, %v211
    %213 = vmatpush.msra.mxu0 %v212
    %v214 = vand.u32 %v30, 4294901760
    %v215 = vsub.f32 %v30, %v214
    %216 = vmatpush.msra.mxu0 %v215
    %v217 = vand.u32 %v43, 4294901760
    %v218 = vsub.f32 %v43, %v217
    %219 = vmatmul.f32.gmra.mxu0 %v218
    %v220 = vpop.f32.mrf.mxu0
    %v221 = vadd.f32 %v171, %v220
    %v222 = vand.u32 %v46, 4294901760
    %v223 = vsub.f32 %v46, %v222
    %224 = vmatmul.f32.gmra.mxu0 %v223
    %v225 = vpop.f32.mrf.mxu0
    %v226 = vadd.f32 %v175, %v225
    %v227 = vand.u32 %v49, 4294901760
    %v228 = vsub.f32 %v49, %v227
    %229 = vmatmul.f32.gmra.mxu0 %v228
    %v230 = vpop.f32.mrf.mxu0
    %v231 = vadd.f32 %v179, %v230
    %232 = vdwg.mxu0
    %233 = vmatpush.msra.mxu0 0.0
    %234 = vmatpush.msra.mxu0 0.0
    %235 = vmatpush.msra.mxu0 0.0
    %236 = vmatpush.msra.mxu0 0.0
    %237 = vmatpush.msra.mxu0 0.0
    %238 = vmatpush.msra.mxu0 0.0
    %v239 = vand.u32 %v39, 4294901760
    %240 = vmatpush.msra.mxu0 %v239
    %v241 = vand.u32 %v38, 4294901760
    %242 = vmatpush.msra.mxu0 %v241
    %v243 = vand.u32 %v37, 4294901760
    %244 = vmatpush.msra.mxu0 %v243
    %v245 = vand.u32 %v36, 4294901760
    %246 = vmatpush.msra.mxu0 %v245
    %v247 = vand.u32 %v35, 4294901760
    %248 = vmatpush.msra.mxu0 %v247
    %v249 = vand.u32 %v34, 4294901760
    %250 = vmatpush.msra.mxu0 %v249
    %v251 = vand.u32 %v33, 4294901760
    %252 = vmatpush.msra.mxu0 %v251
    %v253 = vand.u32 %v32, 4294901760
    %254 = vmatpush.msra.mxu0 %v253
    %v255 = vand.u32 %v31, 4294901760
    %256 = vmatpush.msra.mxu0 %v255
    %v257 = vand.u32 %v30, 4294901760
    %258 = vmatpush.msra.mxu0 %v257
    %v259 = vand.u32 %v43, 4294901760
    %v260 = vsub.f32 %v43, %v259
    %v261 = vand.u32 %v260, 4294901760
    %262 = vmatmul.f32.gmra.mxu0 %v261
    %v263 = vpop.f32.mrf.mxu0
    %v264 = vadd.f32 %v221, %v263
    %v265 = vand.u32 %v46, 4294901760
    %v266 = vsub.f32 %v46, %v265
    %v267 = vand.u32 %v266, 4294901760
    %268 = vmatmul.f32.gmra.mxu0 %v267
    %v269 = vpop.f32.mrf.mxu0
    %v270 = vadd.f32 %v226, %v269
    %v271 = vand.u32 %v49, 4294901760
    %v272 = vsub.f32 %v49, %v271
    %v273 = vand.u32 %v272, 4294901760
    %274 = vmatmul.f32.gmra.mxu0 %v273
    %v275 = vpop.f32.mrf.mxu0
    %v276 = vadd.f32 %v231, %v275
    %277 = vdwg.mxu0
    %278 = vmatpush.msra.mxu0 0.0
    %279 = vmatpush.msra.mxu0 0.0
    %280 = vmatpush.msra.mxu0 0.0
    %281 = vmatpush.msra.mxu0 0.0
    %282 = vmatpush.msra.mxu0 0.0
    %283 = vmatpush.msra.mxu0 0.0
    %v284 = vand.u32 %v39, 4294901760
    %v285 = vsub.f32 %v39, %v284
    %v286 = vand.u32 %v285, 4294901760
    %287 = vmatpush.msra.mxu0 %v286
    %v288 = vand.u32 %v38, 4294901760
    %v289 = vsub.f32 %v38, %v288
    %v290 = vand.u32 %v289, 4294901760
    %291 = vmatpush.msra.mxu0 %v290
    %v292 = vand.u32 %v37, 4294901760
    %v293 = vsub.f32 %v37, %v292
    %v294 = vand.u32 %v293, 4294901760
    %295 = vmatpush.msra.mxu0 %v294
    %v296 = vand.u32 %v36, 4294901760
    %v297 = vsub.f32 %v36, %v296
    %v298 = vand.u32 %v297, 4294901760
    %299 = vmatpush.msra.mxu0 %v298
    %v300 = vand.u32 %v35, 4294901760
    %v301 = vsub.f32 %v35, %v300
    %v302 = vand.u32 %v301, 4294901760
    %303 = vmatpush.msra.mxu0 %v302
    %v304 = vand.u32 %v34, 4294901760
    %v305 = vsub.f32 %v34, %v304
    %v306 = vand.u32 %v305, 4294901760
    %307 = vmatpush.msra.mxu0 %v306
    %v308 = vand.u32 %v33, 4294901760
    %v309 = vsub.f32 %v33, %v308
    %v310 = vand.u32 %v309, 4294901760
    %311 = vmatpush.msra.mxu0 %v310
    %v312 = vand.u32 %v32, 4294901760
    %v313 = vsub.f32 %v32, %v312
    %v314 = vand.u32 %v313, 4294901760
    %315 = vmatpush.msra.mxu0 %v314
    %v316 = vand.u32 %v31, 4294901760
    %v317 = vsub.f32 %v31, %v316
    %v318 = vand.u32 %v317, 4294901760
    %319 = vmatpush.msra.mxu0 %v318
    %v320 = vand.u32 %v30, 4294901760
    %v321 = vsub.f32 %v30, %v320
    %v322 = vand.u32 %v321, 4294901760
    %323 = vmatpush.msra.mxu0 %v322
    %v324 = vand.u32 %v43, 4294901760
    %325 = vmatmul.f32.gmra.mxu0 %v324
    %v326 = vpop.f32.mrf.mxu0
    %v327 = vadd.f32 %v264, %v326
    %v328 = vand.u32 %v46, 4294901760
    %329 = vmatmul.f32.gmra.mxu0 %v328
    %v330 = vpop.f32.mrf.mxu0
    %v331 = vadd.f32 %v270, %v330
    %v332 = vand.u32 %v49, 4294901760
    %333 = vmatmul.f32.gmra.mxu0 %v332
    %v334 = vpop.f32.mrf.mxu0
    %v335 = vadd.f32 %v276, %v334
    %336 = vdwg.mxu0
    %337 = vmatpush.msra.mxu0 0.0
    %338 = vmatpush.msra.mxu0 0.0
    %339 = vmatpush.msra.mxu0 0.0
    %340 = vmatpush.msra.mxu0 0.0
    %341 = vmatpush.msra.mxu0 0.0
    %342 = vmatpush.msra.mxu0 0.0
    %v343 = vand.u32 %v39, 4294901760
    %344 = vmatpush.msra.mxu0 %v343
    %v345 = vand.u32 %v38, 4294901760
    %346 = vmatpush.msra.mxu0 %v345
    %v347 = vand.u32 %v37, 4294901760
    %348 = vmatpush.msra.mxu0 %v347
    %v349 = vand.u32 %v36, 4294901760
    %350 = vmatpush.msra.mxu0 %v349
    %v351 = vand.u32 %v35, 4294901760
    %352 = vmatpush.msra.mxu0 %v351
    %v353 = vand.u32 %v34, 4294901760
    %354 = vmatpush.msra.mxu0 %v353
    %v355 = vand.u32 %v33, 4294901760
    %356 = vmatpush.msra.mxu0 %v355
    %v357 = vand.u32 %v32, 4294901760
    %358 = vmatpush.msra.mxu0 %v357
    %v359 = vand.u32 %v31, 4294901760
    %360 = vmatpush.msra.mxu0 %v359
    %v361 = vand.u32 %v30, 4294901760
    %362 = vmatpush.msra.mxu0 %v361
    %v363 = vand.u32 %v43, 4294901760
    %364 = vmatmul.f32.gmra.mxu0 %v363
    %v365 = vpop.f32.mrf.mxu0
    %v366 = vadd.f32 %v327, %v365
    %v367 = vand.u32 %v46, 4294901760
    %368 = vmatmul.f32.gmra.mxu0 %v367
    %v369 = vpop.f32.mrf.mxu0
    %v370 = vadd.f32 %v331, %v369
    %v371 = vand.u32 %v49, 4294901760
    %372 = vmatmul.f32.gmra.mxu0 %v371
    %v373 = vpop.f32.mrf.mxu0
    %v374 = vadd.f32 %v335, %v373
    %375 = vdwg.mxu0
    %v376 = vmul.f32 %v22, 0.0
    %v377 = vadd.f32 %v376, 0.5
    %v378 = vmul.f32 %v24, 0.0
    %vm379 = vcmask 326656
    %v381 = vsel %vm379, 0.0, 0
    %383 = vmatpush.msra.mxu0 0.0
    %384 = vmatpush.msra.mxu0 0.0
    %385 = vmatpush.msra.mxu0 0.0
    %386 = vmatpush.msra.mxu0 0.0
    %387 = vmatpush.msra.mxu0 0.0
    %388 = vmatpush.msra.mxu0 0.0
    %389 = vmatpush.msra.mxu0 0.0
    %390 = vmatpush.msra.mxu0 0.0
    %391 = vmatpush.msra.mxu0 0.0
    %392 = vmatpush.msra.mxu0 0.0
    %393 = vmatpush.msra.mxu0 0.0
    %v394 = vand.u32 %v19, 4294901760
    %395 = vmatpush.msra.mxu0 %v394
    %v396 = vand.u32 %v18, 4294901760
    %397 = vmatpush.msra.mxu0 %v396
    %v398 = vand.u32 %v17, 4294901760
    %399 = vmatpush.msra.mxu0 %v398
    %v400 = vand.u32 %v16, 4294901760
    %401 = vmatpush.msra.mxu0 %v400
    %v402 = vand.u32 %v15, 4294901760
    %403 = vmatpush.msra.mxu0 %v402
    %v404 = vand.u32 %v381, 4294901760
    %v405 = vsub.f32 %v381, %v404
    %v406 = vand.u32 %v405, 4294901760
    %v407 = vsub.f32 %v405, %v406
    %v408 = vand.u32 %v407, 4294901760
    %409 = vmatmul.f32.gmra.mxu0 %v408
    %v410 = vpop.f32.mrf.mxu0
    %v411 = vadd.f32 %v26, %v410
    %412 = vdwg.mxu0
    %413 = vmatpush.msra.mxu0 0.0
    %414 = vmatpush.msra.mxu0 0.0
    %415 = vmatpush.msra.mxu0 0.0
    %416 = vmatpush.msra.mxu0 0.0
    %417 = vmatpush.msra.mxu0 0.0
    %418 = vmatpush.msra.mxu0 0.0
    %419 = vmatpush.msra.mxu0 0.0
    %420 = vmatpush.msra.mxu0 0.0
    %421 = vmatpush.msra.mxu0 0.0
    %422 = vmatpush.msra.mxu0 0.0
    %423 = vmatpush.msra.mxu0 0.0
    %v424 = vand.u32 %v19, 4294901760
    %v425 = vsub.f32 %v19, %v424
    %v426 = vand.u32 %v425, 4294901760
    %v427 = vsub.f32 %v425, %v426
    %v428 = vand.u32 %v427, 4294901760
    %429 = vmatpush.msra.mxu0 %v428
    %v430 = vand.u32 %v18, 4294901760
    %v431 = vsub.f32 %v18, %v430
    %v432 = vand.u32 %v431, 4294901760
    %v433 = vsub.f32 %v431, %v432
    %v434 = vand.u32 %v433, 4294901760
    %435 = vmatpush.msra.mxu0 %v434
    %v436 = vand.u32 %v17, 4294901760
    %v437 = vsub.f32 %v17, %v436
    %v438 = vand.u32 %v437, 4294901760
    %v439 = vsub.f32 %v437, %v438
    %v440 = vand.u32 %v439, 4294901760
    %441 = vmatpush.msra.mxu0 %v440
    %v442 = vand.u32 %v16, 4294901760
    %v443 = vsub.f32 %v16, %v442
    %v444 = vand.u32 %v443, 4294901760
    %v445 = vsub.f32 %v443, %v444
    %v446 = vand.u32 %v445, 4294901760
    %447 = vmatpush.msra.mxu0 %v446
    %v448 = vand.u32 %v15, 4294901760
    %v449 = vsub.f32 %v15, %v448
    %v450 = vand.u32 %v449, 4294901760
    %v451 = vsub.f32 %v449, %v450
    %v452 = vand.u32 %v451, 4294901760
    %453 = vmatpush.msra.mxu0 %v452
    %v454 = vand.u32 %v381, 4294901760
    %455 = vmatmul.f32.gmra.mxu0 %v454
    %v456 = vpop.f32.mrf.mxu0
    %v457 = vadd.f32 %v411, %v456
    %458 = vdwg.mxu0
    %459 = vmatpush.msra.mxu0 0.0
    %460 = vmatpush.msra.mxu0 0.0
    %461 = vmatpush.msra.mxu0 0.0
    %462 = vmatpush.msra.mxu0 0.0
    %463 = vmatpush.msra.mxu0 0.0
    %464 = vmatpush.msra.mxu0 0.0
    %465 = vmatpush.msra.mxu0 0.0
    %466 = vmatpush.msra.mxu0 0.0
    %467 = vmatpush.msra.mxu0 0.0
    %468 = vmatpush.msra.mxu0 0.0
    %469 = vmatpush.msra.mxu0 0.0
    %v470 = vand.u32 %v19, 4294901760
    %v471 = vsub.f32 %v19, %v470
    %472 = vmatpush.msra.mxu0 %v471
    %v473 = vand.u32 %v18, 4294901760
    %v474 = vsub.f32 %v18, %v473
    %475 = vmatpush.msra.mxu0 %v474
    %v476 = vand.u32 %v17, 4294901760
    %v477 = vsub.f32 %v17, %v476
    %478 = vmatpush.msra.mxu0 %v477
    %v479 = vand.u32 %v16, 4294901760
    %v480 = vsub.f32 %v16, %v479
    %481 = vmatpush.msra.mxu0 %v480
    %v482 = vand.u32 %v15, 4294901760
    %v483 = vsub.f32 %v15, %v482
    %484 = vmatpush.msra.mxu0 %v483
    %v485 = vand.u32 %v381, 4294901760
    %v486 = vsub.f32 %v381, %v485
    %487 = vmatmul.f32.gmra.mxu0 %v486
    %v488 = vpop.f32.mrf.mxu0
    %v489 = vadd.f32 %v457, %v488
    %490 = vdwg.mxu0
    %491 = vmatpush.msra.mxu0 0.0
    %492 = vmatpush.msra.mxu0 0.0
    %493 = vmatpush.msra.mxu0 0.0
    %494 = vmatpush.msra.mxu0 0.0
    %495 = vmatpush.msra.mxu0 0.0
    %496 = vmatpush.msra.mxu0 0.0
    %497 = vmatpush.msra.mxu0 0.0
    %498 = vmatpush.msra.mxu0 0.0
    %499 = vmatpush.msra.mxu0 0.0
    %500 = vmatpush.msra.mxu0 0.0
    %501 = vmatpush.msra.mxu0 0.0
    %v502 = vand.u32 %v19, 4294901760
    %503 = vmatpush.msra.mxu0 %v502
    %v504 = vand.u32 %v18, 4294901760
    %505 = vmatpush.msra.mxu0 %v504
    %v506 = vand.u32 %v17, 4294901760
    %507 = vmatpush.msra.mxu0 %v506
    %v508 = vand.u32 %v16, 4294901760
    %509 = vmatpush.msra.mxu0 %v508
    %v510 = vand.u32 %v15, 4294901760
    %511 = vmatpush.msra.mxu0 %v510
    %v512 = vand.u32 %v381, 4294901760
    %v513 = vsub.f32 %v381, %v512
    %v514 = vand.u32 %v513, 4294901760
    %515 = vmatmul.f32.gmra.mxu0 %v514
    %v516 = vpop.f32.mrf.mxu0
    %v517 = vadd.f32 %v489, %v516
    %518 = vdwg.mxu0
    %519 = vmatpush.msra.mxu0 0.0
    %520 = vmatpush.msra.mxu0 0.0
    %521 = vmatpush.msra.mxu0 0.0
    %522 = vmatpush.msra.mxu0 0.0
    %523 = vmatpush.msra.mxu0 0.0
    %524 = vmatpush.msra.mxu0 0.0
    %525 = vmatpush.msra.mxu0 0.0
    %526 = vmatpush.msra.mxu0 0.0
    %527 = vmatpush.msra.mxu0 0.0
    %528 = vmatpush.msra.mxu0 0.0
    %529 = vmatpush.msra.mxu0 0.0
    %v530 = vand.u32 %v19, 4294901760
    %v531 = vsub.f32 %v19, %v530
    %v532 = vand.u32 %v531, 4294901760
    %533 = vmatpush.msra.mxu0 %v532
    %v534 = vand.u32 %v18, 4294901760
    %v535 = vsub.f32 %v18, %v534
    %v536 = vand.u32 %v535, 4294901760
    %537 = vmatpush.msra.mxu0 %v536
    %v538 = vand.u32 %v17, 4294901760
    %v539 = vsub.f32 %v17, %v538
    %v540 = vand.u32 %v539, 4294901760
    %541 = vmatpush.msra.mxu0 %v540
    %v542 = vand.u32 %v16, 4294901760
    %v543 = vsub.f32 %v16, %v542
    %v544 = vand.u32 %v543, 4294901760
    %545 = vmatpush.msra.mxu0 %v544
    %v546 = vand.u32 %v15, 4294901760
    %v547 = vsub.f32 %v15, %v546
    %v548 = vand.u32 %v547, 4294901760
    %549 = vmatpush.msra.mxu0 %v548
    %v550 = vand.u32 %v381, 4294901760
    %551 = vmatmul.f32.gmra.mxu0 %v550
    %v552 = vpop.f32.mrf.mxu0
    %v553 = vadd.f32 %v517, %v552
    %554 = vdwg.mxu0
    %555 = vmatpush.msra.mxu0 0.0
    %556 = vmatpush.msra.mxu0 0.0
    %557 = vmatpush.msra.mxu0 0.0
    %558 = vmatpush.msra.mxu0 0.0
    %559 = vmatpush.msra.mxu0 0.0
    %560 = vmatpush.msra.mxu0 0.0
    %561 = vmatpush.msra.mxu0 0.0
    %562 = vmatpush.msra.mxu0 0.0
    %563 = vmatpush.msra.mxu0 0.0
    %564 = vmatpush.msra.mxu0 0.0
    %565 = vmatpush.msra.mxu0 0.0
    %v566 = vand.u32 %v19, 4294901760
    %567 = vmatpush.msra.mxu0 %v566
    %v568 = vand.u32 %v18, 4294901760
    %569 = vmatpush.msra.mxu0 %v568
    %v570 = vand.u32 %v17, 4294901760
    %571 = vmatpush.msra.mxu0 %v570
    %v572 = vand.u32 %v16, 4294901760
    %573 = vmatpush.msra.mxu0 %v572
    %v574 = vand.u32 %v15, 4294901760
    %575 = vmatpush.msra.mxu0 %v574
    %v576 = vand.u32 %v381, 4294901760
    %577 = vmatmul.f32.gmra.mxu0 %v576
    %v578 = vpop.f32.mrf.mxu0
    %v579 = vadd.f32 %v553, %v578
    %580 = vdwg.mxu0
    %v581 = vadd.f32 %v366, %v579
    %v582 = vmul.f32 %v21, 0.0
    %v583 = vadd.f32 %v582, %v581
    %v584 = vadd.f32 %v583, %v378
    %586 = vrot.lane.b32.xlu0 %v584, 93
    %v587 = vpop.permute.xlu0 %586
    %589 = vrot.lane.b32.xlu0 %v584, 5
    %v590 = vpop.permute.xlu0 %589
    %vm592 = vcmask 39936
    %v593 = vsel %vm592, %v587, %v590
    %vm594 = vcmp.lt.f32.partialorder %v593, %v584
    %v595 = vsel %vm594, 1, 0
    %v596 = vcvt.s32.f32 %v595
    %597 = vrot.lane.b32.xlu0 %v584, 98
    %v598 = vpop.permute.xlu0 %597
    %600 = vrot.lane.b32.xlu0 %v584, 10
    %v601 = vpop.permute.xlu0 %600
    %vm603 = vcmask 80896
    %v604 = vsel %vm603, %v598, %v601
    %vm605 = vcmp.lt.f32.partialorder %v604, %v584
    %v606 = vsel %vm605, 1, 0
    %v607 = vcvt.s32.f32 %v606
    %v608 = vadd.f32 %v596, %v607
    %609 = vrot.lane.b32.xlu0 %v584, 103
    %v610 = vpop.permute.xlu0 %609
    %612 = vrot.lane.b32.xlu0 %v584, 15
    %v613 = vpop.permute.xlu0 %612
    %vm615 = vcmask 121856
    %v616 = vsel %vm615, %v610, %v613
    %vm617 = vcmp.lt.f32.partialorder %v616, %v584
    %v618 = vsel %vm617, 1, 0
    %v619 = vcvt.s32.f32 %v618
    %v620 = vadd.f32 %v608, %v619
    %621 = vrot.lane.b32.xlu0 %v584, 108
    %v622 = vpop.permute.xlu0 %621
    %624 = vrot.lane.b32.xlu0 %v584, 20
    %v625 = vpop.permute.xlu0 %624
    %vm627 = vcmask 162816
    %v628 = vsel %vm627, %v622, %v625
    %vm629 = vcmp.lt.f32.partialorder %v628, %v584
    %v630 = vsel %vm629, 1, 0
    %v631 = vcvt.s32.f32 %v630
    %v632 = vadd.f32 %v620, %v631
    %633 = vrot.lane.b32.xlu0 %v584, 113
    %v634 = vpop.permute.xlu0 %633
    %636 = vrot.lane.b32.xlu0 %v584, 25
    %v637 = vpop.permute.xlu0 %636
    %vm639 = vcmask 203776
    %v640 = vsel %vm639, %v634, %v637
    %vm641 = vcmp.lt.f32.partialorder %v640, %v584
    %v642 = vsel %vm641, 1, 0
    %v643 = vcvt.s32.f32 %v642
    %v644 = vadd.f32 %v632, %v643
    %645 = vrot.lane.b32.xlu0 %v584, 118
    %v646 = vpop.permute.xlu0 %645
    %648 = vrot.lane.b32.xlu0 %v584, 30
    %v649 = vpop.permute.xlu0 %648
    %vm651 = vcmask 244736
    %v652 = vsel %vm651, %v646, %v649
    %vm653 = vcmp.lt.f32.partialorder %v652, %v584
    %v654 = vsel %vm653, 1, 0
    %v655 = vcvt.s32.f32 %v654
    %v656 = vadd.f32 %v644, %v655
    %657 = vrot.lane.b32.xlu0 %v584, 123
    %v658 = vpop.permute.xlu0 %657
    %660 = vrot.lane.b32.xlu0 %v584, 35
    %v661 = vpop.permute.xlu0 %660
    %vm663 = vcmask 285696
    %v664 = vsel %vm663, %v658, %v661
    %vm665 = vcmp.lt.f32.partialorder %v664, %v584
    %v666 = vsel %vm665, 1, 0
    %v667 = vcvt.s32.f32 %v666
    %v668 = vadd.f32 %v656, %v667
    %vm669 = vcmp.le.f32.partialorder %v668, 5.0
    %v670 = vsel %vm669, %v584, -1e+30
    %672 = vrot.lane.b32.xlu0 %v670, 93
    %v673 = vpop.permute.xlu0 %672
    %675 = vrot.lane.b32.xlu0 %v670, 5
    %v676 = vpop.permute.xlu0 %675
    %v678 = vsel %vm592, %v673, %v676
    %v679 = vmax.f32 %v670, %v678
    %681 = vrot.lane.b32.xlu0 %v679, 98
    %v682 = vpop.permute.xlu0 %681
    %684 = vrot.lane.b32.xlu0 %v679, 10
    %v685 = vpop.permute.xlu0 %684
    %v687 = vsel %vm603, %v682, %v685
    %v688 = vmax.f32 %v679, %v687
    %690 = vrot.lane.b32.xlu0 %v688, 108
    %v691 = vpop.permute.xlu0 %690
    %693 = vrot.lane.b32.xlu0 %v688, 20
    %v694 = vpop.permute.xlu0 %693
    %v696 = vsel %vm627, %v691, %v694
    %v697 = vmax.f32 %v688, %v696
    %vm698 = vcmp.le.f32.partialorder %v668, 6.0
    %v699 = vsel %vm698, %v584, -1e+30
    %701 = vrot.lane.b32.xlu0 %v699, 93
    %v702 = vpop.permute.xlu0 %701
    %704 = vrot.lane.b32.xlu0 %v699, 5
    %v705 = vpop.permute.xlu0 %704
    %v707 = vsel %vm592, %v702, %v705
    %v708 = vmax.f32 %v699, %v707
    %710 = vrot.lane.b32.xlu0 %v708, 98
    %v711 = vpop.permute.xlu0 %710
    %713 = vrot.lane.b32.xlu0 %v708, 10
    %v714 = vpop.permute.xlu0 %713
    %v716 = vsel %vm603, %v711, %v714
    %v717 = vmax.f32 %v708, %v716
    %719 = vrot.lane.b32.xlu0 %v717, 108
    %v720 = vpop.permute.xlu0 %719
    %722 = vrot.lane.b32.xlu0 %v717, 20
    %v723 = vpop.permute.xlu0 %722
    %v725 = vsel %vm627, %v720, %v723
    %v726 = vmax.f32 %v717, %v725
    %v727 = vsub.f32 %v726, %v697
    %v728 = vmul.f32 %v727, 0.6
    %v729 = vadd.f32 %v697, %v728
    %v730 = vsub.f32 %v584, %v729
    %v731 = vmax.f32 %v730, 0.0
    %v732 = vsub.f32 %v731, %v377
    %vm733 = vcmp.gt.f32.partialorder %v732, 0.0
    %v734 = vsel %vm733, 1, 0
    %v735 = vcvt.s32.f32 %v734
    %v736 = vmul.f32 %v23, 0.0
    %v737 = vadd.f32 %v736, %v735
    %v738 = vmul.f32 %v25, 0.0
    %v739 = vadd.f32 %v738, %v735
    %v740 = vadd.f32 %v735, 0.0
    %v741 = vmul.f32 %v737, %v22
    %v742 = vadd.f32 %v741, 0.5
    %v743 = vmul.f32 %v739, %v24
    %v745 = vsel %vm379, %v735, 0
    %747 = vmatpush.msra.mxu0 0.0
    %748 = vmatpush.msra.mxu0 0.0
    %749 = vmatpush.msra.mxu0 0.0
    %750 = vmatpush.msra.mxu0 0.0
    %751 = vmatpush.msra.mxu0 0.0
    %752 = vmatpush.msra.mxu0 0.0
    %753 = vmatpush.msra.mxu0 0.0
    %754 = vmatpush.msra.mxu0 0.0
    %755 = vmatpush.msra.mxu0 0.0
    %756 = vmatpush.msra.mxu0 0.0
    %757 = vmatpush.msra.mxu0 0.0
    %v758 = vand.u32 %v19, 4294901760
    %759 = vmatpush.msra.mxu0 %v758
    %v760 = vand.u32 %v18, 4294901760
    %761 = vmatpush.msra.mxu0 %v760
    %v762 = vand.u32 %v17, 4294901760
    %763 = vmatpush.msra.mxu0 %v762
    %v764 = vand.u32 %v16, 4294901760
    %765 = vmatpush.msra.mxu0 %v764
    %v766 = vand.u32 %v15, 4294901760
    %767 = vmatpush.msra.mxu0 %v766
    %v768 = vand.u32 %v745, 4294901760
    %v769 = vsub.f32 %v745, %v768
    %v770 = vand.u32 %v769, 4294901760
    %v771 = vsub.f32 %v769, %v770
    %v772 = vand.u32 %v771, 4294901760
    %773 = vmatmul.f32.gmra.mxu0 %v772
    %v774 = vpop.f32.mrf.mxu0
    %v775 = vadd.f32 %v26, %v774
    %776 = vdwg.mxu0
    %777 = vmatpush.msra.mxu0 0.0
    %778 = vmatpush.msra.mxu0 0.0
    %779 = vmatpush.msra.mxu0 0.0
    %780 = vmatpush.msra.mxu0 0.0
    %781 = vmatpush.msra.mxu0 0.0
    %782 = vmatpush.msra.mxu0 0.0
    %783 = vmatpush.msra.mxu0 0.0
    %784 = vmatpush.msra.mxu0 0.0
    %785 = vmatpush.msra.mxu0 0.0
    %786 = vmatpush.msra.mxu0 0.0
    %787 = vmatpush.msra.mxu0 0.0
    %v788 = vand.u32 %v19, 4294901760
    %v789 = vsub.f32 %v19, %v788
    %v790 = vand.u32 %v789, 4294901760
    %v791 = vsub.f32 %v789, %v790
    %v792 = vand.u32 %v791, 4294901760
    %793 = vmatpush.msra.mxu0 %v792
    %v794 = vand.u32 %v18, 4294901760
    %v795 = vsub.f32 %v18, %v794
    %v796 = vand.u32 %v795, 4294901760
    %v797 = vsub.f32 %v795, %v796
    %v798 = vand.u32 %v797, 4294901760
    %799 = vmatpush.msra.mxu0 %v798
    %v800 = vand.u32 %v17, 4294901760
    %v801 = vsub.f32 %v17, %v800
    %v802 = vand.u32 %v801, 4294901760
    %v803 = vsub.f32 %v801, %v802
    %v804 = vand.u32 %v803, 4294901760
    %805 = vmatpush.msra.mxu0 %v804
    %v806 = vand.u32 %v16, 4294901760
    %v807 = vsub.f32 %v16, %v806
    %v808 = vand.u32 %v807, 4294901760
    %v809 = vsub.f32 %v807, %v808
    %v810 = vand.u32 %v809, 4294901760
    %811 = vmatpush.msra.mxu0 %v810
    %v812 = vand.u32 %v15, 4294901760
    %v813 = vsub.f32 %v15, %v812
    %v814 = vand.u32 %v813, 4294901760
    %v815 = vsub.f32 %v813, %v814
    %v816 = vand.u32 %v815, 4294901760
    %817 = vmatpush.msra.mxu0 %v816
    %v818 = vand.u32 %v745, 4294901760
    %819 = vmatmul.f32.gmra.mxu0 %v818
    %v820 = vpop.f32.mrf.mxu0
    %v821 = vadd.f32 %v775, %v820
    %822 = vdwg.mxu0
    %823 = vmatpush.msra.mxu0 0.0
    %824 = vmatpush.msra.mxu0 0.0
    %825 = vmatpush.msra.mxu0 0.0
    %826 = vmatpush.msra.mxu0 0.0
    %827 = vmatpush.msra.mxu0 0.0
    %828 = vmatpush.msra.mxu0 0.0
    %829 = vmatpush.msra.mxu0 0.0
    %830 = vmatpush.msra.mxu0 0.0
    %831 = vmatpush.msra.mxu0 0.0
    %832 = vmatpush.msra.mxu0 0.0
    %833 = vmatpush.msra.mxu0 0.0
    %v834 = vand.u32 %v19, 4294901760
    %v835 = vsub.f32 %v19, %v834
    %836 = vmatpush.msra.mxu0 %v835
    %v837 = vand.u32 %v18, 4294901760
    %v838 = vsub.f32 %v18, %v837
    %839 = vmatpush.msra.mxu0 %v838
    %v840 = vand.u32 %v17, 4294901760
    %v841 = vsub.f32 %v17, %v840
    %842 = vmatpush.msra.mxu0 %v841
    %v843 = vand.u32 %v16, 4294901760
    %v844 = vsub.f32 %v16, %v843
    %845 = vmatpush.msra.mxu0 %v844
    %v846 = vand.u32 %v15, 4294901760
    %v847 = vsub.f32 %v15, %v846
    %848 = vmatpush.msra.mxu0 %v847
    %v849 = vand.u32 %v745, 4294901760
    %v850 = vsub.f32 %v745, %v849
    %851 = vmatmul.f32.gmra.mxu0 %v850
    %v852 = vpop.f32.mrf.mxu0
    %v853 = vadd.f32 %v821, %v852
    %854 = vdwg.mxu0
    %855 = vmatpush.msra.mxu0 0.0
    %856 = vmatpush.msra.mxu0 0.0
    %857 = vmatpush.msra.mxu0 0.0
    %858 = vmatpush.msra.mxu0 0.0
    %859 = vmatpush.msra.mxu0 0.0
    %860 = vmatpush.msra.mxu0 0.0
    %861 = vmatpush.msra.mxu0 0.0
    %862 = vmatpush.msra.mxu0 0.0
    %863 = vmatpush.msra.mxu0 0.0
    %864 = vmatpush.msra.mxu0 0.0
    %865 = vmatpush.msra.mxu0 0.0
    %v866 = vand.u32 %v19, 4294901760
    %867 = vmatpush.msra.mxu0 %v866
    %v868 = vand.u32 %v18, 4294901760
    %869 = vmatpush.msra.mxu0 %v868
    %v870 = vand.u32 %v17, 4294901760
    %871 = vmatpush.msra.mxu0 %v870
    %v872 = vand.u32 %v16, 4294901760
    %873 = vmatpush.msra.mxu0 %v872
    %v874 = vand.u32 %v15, 4294901760
    %875 = vmatpush.msra.mxu0 %v874
    %v876 = vand.u32 %v745, 4294901760
    %v877 = vsub.f32 %v745, %v876
    %v878 = vand.u32 %v877, 4294901760
    %879 = vmatmul.f32.gmra.mxu0 %v878
    %v880 = vpop.f32.mrf.mxu0
    %v881 = vadd.f32 %v853, %v880
    %882 = vdwg.mxu0
    %883 = vmatpush.msra.mxu0 0.0
    %884 = vmatpush.msra.mxu0 0.0
    %885 = vmatpush.msra.mxu0 0.0
    %886 = vmatpush.msra.mxu0 0.0
    %887 = vmatpush.msra.mxu0 0.0
    %888 = vmatpush.msra.mxu0 0.0
    %889 = vmatpush.msra.mxu0 0.0
    %890 = vmatpush.msra.mxu0 0.0
    %891 = vmatpush.msra.mxu0 0.0
    %892 = vmatpush.msra.mxu0 0.0
    %893 = vmatpush.msra.mxu0 0.0
    %v894 = vand.u32 %v19, 4294901760
    %v895 = vsub.f32 %v19, %v894
    %v896 = vand.u32 %v895, 4294901760
    %897 = vmatpush.msra.mxu0 %v896
    %v898 = vand.u32 %v18, 4294901760
    %v899 = vsub.f32 %v18, %v898
    %v900 = vand.u32 %v899, 4294901760
    %901 = vmatpush.msra.mxu0 %v900
    %v902 = vand.u32 %v17, 4294901760
    %v903 = vsub.f32 %v17, %v902
    %v904 = vand.u32 %v903, 4294901760
    %905 = vmatpush.msra.mxu0 %v904
    %v906 = vand.u32 %v16, 4294901760
    %v907 = vsub.f32 %v16, %v906
    %v908 = vand.u32 %v907, 4294901760
    %909 = vmatpush.msra.mxu0 %v908
    %v910 = vand.u32 %v15, 4294901760
    %v911 = vsub.f32 %v15, %v910
    %v912 = vand.u32 %v911, 4294901760
    %913 = vmatpush.msra.mxu0 %v912
    %v914 = vand.u32 %v745, 4294901760
    %915 = vmatmul.f32.gmra.mxu0 %v914
    %v916 = vpop.f32.mrf.mxu0
    %v917 = vadd.f32 %v881, %v916
    %918 = vdwg.mxu0
    %919 = vmatpush.msra.mxu0 0.0
    %920 = vmatpush.msra.mxu0 0.0
    %921 = vmatpush.msra.mxu0 0.0
    %922 = vmatpush.msra.mxu0 0.0
    %923 = vmatpush.msra.mxu0 0.0
    %924 = vmatpush.msra.mxu0 0.0
    %925 = vmatpush.msra.mxu0 0.0
    %926 = vmatpush.msra.mxu0 0.0
    %927 = vmatpush.msra.mxu0 0.0
    %928 = vmatpush.msra.mxu0 0.0
    %929 = vmatpush.msra.mxu0 0.0
    %v930 = vand.u32 %v19, 4294901760
    %931 = vmatpush.msra.mxu0 %v930
    %v932 = vand.u32 %v18, 4294901760
    %933 = vmatpush.msra.mxu0 %v932
    %v934 = vand.u32 %v17, 4294901760
    %935 = vmatpush.msra.mxu0 %v934
    %v936 = vand.u32 %v16, 4294901760
    %937 = vmatpush.msra.mxu0 %v936
    %v938 = vand.u32 %v15, 4294901760
    %939 = vmatpush.msra.mxu0 %v938
    %v940 = vand.u32 %v745, 4294901760
    %941 = vmatmul.f32.gmra.mxu0 %v940
    %v942 = vpop.f32.mrf.mxu0
    %v943 = vadd.f32 %v917, %v942
    %944 = vdwg.mxu0
    %v946 = vrot.slane %v943, 6
    %v948 = vadd.f32 %v366, %v946
    %v949 = vmul.f32 %v735, 0.5
    %v950 = vsub.f32 %v731, %v949
    %v951 = vmul.f32 %v950, %v21
    %v953 = vrot.slane %v948, 2
    %v955 = vadd.f32 %v951, %v953
    %v956 = vadd.f32 %v955, %v743
    %958 = vrot.lane.b32.xlu0 %v956, 93
    %v959 = vpop.permute.xlu0 %958
    %961 = vrot.lane.b32.xlu0 %v956, 5
    %v962 = vpop.permute.xlu0 %961
    %v964 = vsel %vm592, %v959, %v962
    %vm965 = vcmp.lt.f32.partialorder %v964, %v956
    %v966 = vsel %vm965, 1, 0
    %v967 = vcvt.s32.f32 %v966
    %968 = vrot.lane.b32.xlu0 %v956, 98
    %v969 = vpop.permute.xlu0 %968
    %971 = vrot.lane.b32.xlu0 %v956, 10
    %v972 = vpop.permute.xlu0 %971
    %v974 = vsel %vm603, %v969, %v972
    %vm975 = vcmp.lt.f32.partialorder %v974, %v956
    %v976 = vsel %vm975, 1, 0
    %v977 = vcvt.s32.f32 %v976
    %v978 = vadd.f32 %v967, %v977
    %979 = vrot.lane.b32.xlu0 %v956, 103
    %v980 = vpop.permute.xlu0 %979
    %982 = vrot.lane.b32.xlu0 %v956, 15
    %v983 = vpop.permute.xlu0 %982
    %v985 = vsel %vm615, %v980, %v983
    %vm986 = vcmp.lt.f32.partialorder %v985, %v956
    %v987 = vsel %vm986, 1, 0
    %v988 = vcvt.s32.f32 %v987
    %v989 = vadd.f32 %v978, %v988
    %990 = vrot.lane.b32.xlu0 %v956, 108
    %v991 = vpop.permute.xlu0 %990
    %993 = vrot.lane.b32.xlu0 %v956, 20
    %v994 = vpop.permute.xlu0 %993
    %v996 = vsel %vm627, %v991, %v994
    %vm997 = vcmp.lt.f32.partialorder %v996, %v956
    %v998 = vsel %vm997, 1, 0
    %v999 = vcvt.s32.f32 %v998
    %v1000 = vadd.f32 %v989, %v999
    %1001 = vrot.lane.b32.xlu0 %v956, 113
    %v1002 = vpop.permute.xlu0 %1001
    %1004 = vrot.lane.b32.xlu0 %v956, 25
    %v1005 = vpop.permute.xlu0 %1004
    %v1007 = vsel %vm639, %v1002, %v1005
    %vm1008 = vcmp.lt.f32.partialorder %v1007, %v956
    %v1009 = vsel %vm1008, 1, 0
    %v1010 = vcvt.s32.f32 %v1009
    %v1011 = vadd.f32 %v1000, %v1010
    %1012 = vrot.lane.b32.xlu0 %v956, 118
    %v1013 = vpop.permute.xlu0 %1012
    %1015 = vrot.lane.b32.xlu0 %v956, 30
    %v1016 = vpop.permute.xlu0 %1015
    %v1018 = vsel %vm651, %v1013, %v1016
    %vm1019 = vcmp.lt.f32.partialorder %v1018, %v956
    %v1020 = vsel %vm1019, 1, 0
    %v1021 = vcvt.s32.f32 %v1020
    %v1022 = vadd.f32 %v1011, %v1021
    %1023 = vrot.lane.b32.xlu0 %v956, 123
    %v1024 = vpop.permute.xlu0 %1023
    %1026 = vrot.lane.b32.xlu0 %v956, 35
    %v1027 = vpop.permute.xlu0 %1026
    %v1029 = vsel %vm663, %v1024, %v1027
    %vm1030 = vcmp.lt.f32.partialorder %v1029, %v956
    %v1031 = vsel %vm1030, 1, 0
    %v1032 = vcvt.s32.f32 %v1031
    %v1033 = vadd.f32 %v1022, %v1032
    %vm1034 = vcmp.le.f32.partialorder %v1033, 5.0
    %v1035 = vsel %vm1034, %v956, -1e+30
    %1037 = vrot.lane.b32.xlu0 %v1035, 93
    %v1038 = vpop.permute.xlu0 %1037
    %1040 = vrot.lane.b32.xlu0 %v1035, 5
    %v1041 = vpop.permute.xlu0 %1040
    %v1043 = vsel %vm592, %v1038, %v1041
    %v1044 = vmax.f32 %v1035, %v1043
    %1046 = vrot.lane.b32.xlu0 %v1044, 98
    %v1047 = vpop.permute.xlu0 %1046
    %1049 = vrot.lane.b32.xlu0 %v1044, 10
    %v1050 = vpop.permute.xlu0 %1049
    %v1052 = vsel %vm603, %v1047, %v1050
    %v1053 = vmax.f32 %v1044, %v1052
    %1055 = vrot.lane.b32.xlu0 %v1053, 108
    %v1056 = vpop.permute.xlu0 %1055
    %1058 = vrot.lane.b32.xlu0 %v1053, 20
    %v1059 = vpop.permute.xlu0 %1058
    %v1061 = vsel %vm627, %v1056, %v1059
    %v1062 = vmax.f32 %v1053, %v1061
    %vm1063 = vcmp.le.f32.partialorder %v1033, 6.0
    %v1064 = vsel %vm1063, %v956, -1e+30
    %1066 = vrot.lane.b32.xlu0 %v1064, 93
    %v1067 = vpop.permute.xlu0 %1066
    %1069 = vrot.lane.b32.xlu0 %v1064, 5
    %v1070 = vpop.permute.xlu0 %1069
    %v1072 = vsel %vm592, %v1067, %v1070
    %v1073 = vmax.f32 %v1064, %v1072
    %1075 = vrot.lane.b32.xlu0 %v1073, 98
    %v1076 = vpop.permute.xlu0 %1075
    %1078 = vrot.lane.b32.xlu0 %v1073, 10
    %v1079 = vpop.permute.xlu0 %1078
    %v1081 = vsel %vm603, %v1076, %v1079
    %v1082 = vmax.f32 %v1073, %v1081
    %1084 = vrot.lane.b32.xlu0 %v1082, 108
    %v1085 = vpop.permute.xlu0 %1084
    %1087 = vrot.lane.b32.xlu0 %v1082, 20
    %v1088 = vpop.permute.xlu0 %1087
    %v1090 = vsel %vm627, %v1085, %v1088
    %v1091 = vmax.f32 %v1082, %v1090
    %v1092 = vsub.f32 %v1091, %v1062
    %v1093 = vmul.f32 %v1092, 0.6
    %v1094 = vadd.f32 %v1062, %v1093
    %v1095 = vsub.f32 %v956, %v1094
    %v1096 = vmax.f32 %v1095, 0.0
    %v1097 = vsub.f32 %v1096, %v742
    %vm1098 = vcmp.gt.f32.partialorder %v1097, 0.0
    %v1099 = vsel %vm1098, 1, 0
    %v1100 = vcvt.s32.f32 %v1099
    %v1101 = vmul.f32 %v737, %v23
    %v1102 = vadd.f32 %v1101, %v1100
    %v1103 = vmul.f32 %v739, %v25
    %v1104 = vadd.f32 %v1103, %v1100
    %v1105 = vadd.f32 %v740, %v1100
    %v1106 = vmul.f32 %v1102, %v22
    %v1107 = vadd.f32 %v1106, 0.5
    %v1108 = vmul.f32 %v1104, %v24
    %v1110 = vsel %vm379, %v1100, 0
    %1112 = vmatpush.msra.mxu0 0.0
    %1113 = vmatpush.msra.mxu0 0.0
    %1114 = vmatpush.msra.mxu0 0.0
    %1115 = vmatpush.msra.mxu0 0.0
    %1116 = vmatpush.msra.mxu0 0.0
    %1117 = vmatpush.msra.mxu0 0.0
    %1118 = vmatpush.msra.mxu0 0.0
    %1119 = vmatpush.msra.mxu0 0.0
    %1120 = vmatpush.msra.mxu0 0.0
    %1121 = vmatpush.msra.mxu0 0.0
    %1122 = vmatpush.msra.mxu0 0.0
    %v1123 = vand.u32 %v19, 4294901760
    %1124 = vmatpush.msra.mxu0 %v1123
    %v1125 = vand.u32 %v18, 4294901760
    %1126 = vmatpush.msra.mxu0 %v1125
    %v1127 = vand.u32 %v17, 4294901760
    %1128 = vmatpush.msra.mxu0 %v1127
    %v1129 = vand.u32 %v16, 4294901760
    %1130 = vmatpush.msra.mxu0 %v1129
    %v1131 = vand.u32 %v15, 4294901760
    %1132 = vmatpush.msra.mxu0 %v1131
    %v1133 = vand.u32 %v1110, 4294901760
    %v1134 = vsub.f32 %v1110, %v1133
    %v1135 = vand.u32 %v1134, 4294901760
    %v1136 = vsub.f32 %v1134, %v1135
    %v1137 = vand.u32 %v1136, 4294901760
    %1138 = vmatmul.f32.gmra.mxu0 %v1137
    %v1139 = vpop.f32.mrf.mxu0
    %v1140 = vadd.f32 %v26, %v1139
    %1141 = vdwg.mxu0
    %1142 = vmatpush.msra.mxu0 0.0
    %1143 = vmatpush.msra.mxu0 0.0
    %1144 = vmatpush.msra.mxu0 0.0
    %1145 = vmatpush.msra.mxu0 0.0
    %1146 = vmatpush.msra.mxu0 0.0
    %1147 = vmatpush.msra.mxu0 0.0
    %1148 = vmatpush.msra.mxu0 0.0
    %1149 = vmatpush.msra.mxu0 0.0
    %1150 = vmatpush.msra.mxu0 0.0
    %1151 = vmatpush.msra.mxu0 0.0
    %1152 = vmatpush.msra.mxu0 0.0
    %v1153 = vand.u32 %v19, 4294901760
    %v1154 = vsub.f32 %v19, %v1153
    %v1155 = vand.u32 %v1154, 4294901760
    %v1156 = vsub.f32 %v1154, %v1155
    %v1157 = vand.u32 %v1156, 4294901760
    %1158 = vmatpush.msra.mxu0 %v1157
    %v1159 = vand.u32 %v18, 4294901760
    %v1160 = vsub.f32 %v18, %v1159
    %v1161 = vand.u32 %v1160, 4294901760
    %v1162 = vsub.f32 %v1160, %v1161
    %v1163 = vand.u32 %v1162, 4294901760
    %1164 = vmatpush.msra.mxu0 %v1163
    %v1165 = vand.u32 %v17, 4294901760
    %v1166 = vsub.f32 %v17, %v1165
    %v1167 = vand.u32 %v1166, 4294901760
    %v1168 = vsub.f32 %v1166, %v1167
    %v1169 = vand.u32 %v1168, 4294901760
    %1170 = vmatpush.msra.mxu0 %v1169
    %v1171 = vand.u32 %v16, 4294901760
    %v1172 = vsub.f32 %v16, %v1171
    %v1173 = vand.u32 %v1172, 4294901760
    %v1174 = vsub.f32 %v1172, %v1173
    %v1175 = vand.u32 %v1174, 4294901760
    %1176 = vmatpush.msra.mxu0 %v1175
    %v1177 = vand.u32 %v15, 4294901760
    %v1178 = vsub.f32 %v15, %v1177
    %v1179 = vand.u32 %v1178, 4294901760
    %v1180 = vsub.f32 %v1178, %v1179
    %v1181 = vand.u32 %v1180, 4294901760
    %1182 = vmatpush.msra.mxu0 %v1181
    %v1183 = vand.u32 %v1110, 4294901760
    %1184 = vmatmul.f32.gmra.mxu0 %v1183
    %v1185 = vpop.f32.mrf.mxu0
    %v1186 = vadd.f32 %v1140, %v1185
    %1187 = vdwg.mxu0
    %1188 = vmatpush.msra.mxu0 0.0
    %1189 = vmatpush.msra.mxu0 0.0
    %1190 = vmatpush.msra.mxu0 0.0
    %1191 = vmatpush.msra.mxu0 0.0
    %1192 = vmatpush.msra.mxu0 0.0
    %1193 = vmatpush.msra.mxu0 0.0
    %1194 = vmatpush.msra.mxu0 0.0
    %1195 = vmatpush.msra.mxu0 0.0
    %1196 = vmatpush.msra.mxu0 0.0
    %1197 = vmatpush.msra.mxu0 0.0
    %1198 = vmatpush.msra.mxu0 0.0
    %v1199 = vand.u32 %v19, 4294901760
    %v1200 = vsub.f32 %v19, %v1199
    %1201 = vmatpush.msra.mxu0 %v1200
    %v1202 = vand.u32 %v18, 4294901760
    %v1203 = vsub.f32 %v18, %v1202
    %1204 = vmatpush.msra.mxu0 %v1203
    %v1205 = vand.u32 %v17, 4294901760
    %v1206 = vsub.f32 %v17, %v1205
    %1207 = vmatpush.msra.mxu0 %v1206
    %v1208 = vand.u32 %v16, 4294901760
    %v1209 = vsub.f32 %v16, %v1208
    %1210 = vmatpush.msra.mxu0 %v1209
    %v1211 = vand.u32 %v15, 4294901760
    %v1212 = vsub.f32 %v15, %v1211
    %1213 = vmatpush.msra.mxu0 %v1212
    %v1214 = vand.u32 %v1110, 4294901760
    %v1215 = vsub.f32 %v1110, %v1214
    %1216 = vmatmul.f32.gmra.mxu0 %v1215
    %v1217 = vpop.f32.mrf.mxu0
    %v1218 = vadd.f32 %v1186, %v1217
    %1219 = vdwg.mxu0
    %1220 = vmatpush.msra.mxu0 0.0
    %1221 = vmatpush.msra.mxu0 0.0
    %1222 = vmatpush.msra.mxu0 0.0
    %1223 = vmatpush.msra.mxu0 0.0
    %1224 = vmatpush.msra.mxu0 0.0
    %1225 = vmatpush.msra.mxu0 0.0
    %1226 = vmatpush.msra.mxu0 0.0
    %1227 = vmatpush.msra.mxu0 0.0
    %1228 = vmatpush.msra.mxu0 0.0
    %1229 = vmatpush.msra.mxu0 0.0
    %1230 = vmatpush.msra.mxu0 0.0
    %v1231 = vand.u32 %v19, 4294901760
    %1232 = vmatpush.msra.mxu0 %v1231
    %v1233 = vand.u32 %v18, 4294901760
    %1234 = vmatpush.msra.mxu0 %v1233
    %v1235 = vand.u32 %v17, 4294901760
    %1236 = vmatpush.msra.mxu0 %v1235
    %v1237 = vand.u32 %v16, 4294901760
    %1238 = vmatpush.msra.mxu0 %v1237
    %v1239 = vand.u32 %v15, 4294901760
    %1240 = vmatpush.msra.mxu0 %v1239
    %v1241 = vand.u32 %v1110, 4294901760
    %v1242 = vsub.f32 %v1110, %v1241
    %v1243 = vand.u32 %v1242, 4294901760
    %1244 = vmatmul.f32.gmra.mxu0 %v1243
    %v1245 = vpop.f32.mrf.mxu0
    %v1246 = vadd.f32 %v1218, %v1245
    %1247 = vdwg.mxu0
    %1248 = vmatpush.msra.mxu0 0.0
    %1249 = vmatpush.msra.mxu0 0.0
    %1250 = vmatpush.msra.mxu0 0.0
    %1251 = vmatpush.msra.mxu0 0.0
    %1252 = vmatpush.msra.mxu0 0.0
    %1253 = vmatpush.msra.mxu0 0.0
    %1254 = vmatpush.msra.mxu0 0.0
    %1255 = vmatpush.msra.mxu0 0.0
    %1256 = vmatpush.msra.mxu0 0.0
    %1257 = vmatpush.msra.mxu0 0.0
    %1258 = vmatpush.msra.mxu0 0.0
    %v1259 = vand.u32 %v19, 4294901760
    %v1260 = vsub.f32 %v19, %v1259
    %v1261 = vand.u32 %v1260, 4294901760
    %1262 = vmatpush.msra.mxu0 %v1261
    %v1263 = vand.u32 %v18, 4294901760
    %v1264 = vsub.f32 %v18, %v1263
    %v1265 = vand.u32 %v1264, 4294901760
    %1266 = vmatpush.msra.mxu0 %v1265
    %v1267 = vand.u32 %v17, 4294901760
    %v1268 = vsub.f32 %v17, %v1267
    %v1269 = vand.u32 %v1268, 4294901760
    %1270 = vmatpush.msra.mxu0 %v1269
    %v1271 = vand.u32 %v16, 4294901760
    %v1272 = vsub.f32 %v16, %v1271
    %v1273 = vand.u32 %v1272, 4294901760
    %1274 = vmatpush.msra.mxu0 %v1273
    %v1275 = vand.u32 %v15, 4294901760
    %v1276 = vsub.f32 %v15, %v1275
    %v1277 = vand.u32 %v1276, 4294901760
    %1278 = vmatpush.msra.mxu0 %v1277
    %v1279 = vand.u32 %v1110, 4294901760
    %1280 = vmatmul.f32.gmra.mxu0 %v1279
    %v1281 = vpop.f32.mrf.mxu0
    %v1282 = vadd.f32 %v1246, %v1281
    %1283 = vdwg.mxu0
    %1284 = vmatpush.msra.mxu0 0.0
    %1285 = vmatpush.msra.mxu0 0.0
    %1286 = vmatpush.msra.mxu0 0.0
    %1287 = vmatpush.msra.mxu0 0.0
    %1288 = vmatpush.msra.mxu0 0.0
    %1289 = vmatpush.msra.mxu0 0.0
    %1290 = vmatpush.msra.mxu0 0.0
    %1291 = vmatpush.msra.mxu0 0.0
    %1292 = vmatpush.msra.mxu0 0.0
    %1293 = vmatpush.msra.mxu0 0.0
    %1294 = vmatpush.msra.mxu0 0.0
    %v1295 = vand.u32 %v19, 4294901760
    %1296 = vmatpush.msra.mxu0 %v1295
    %v1297 = vand.u32 %v18, 4294901760
    %1298 = vmatpush.msra.mxu0 %v1297
    %v1299 = vand.u32 %v17, 4294901760
    %1300 = vmatpush.msra.mxu0 %v1299
    %v1301 = vand.u32 %v16, 4294901760
    %1302 = vmatpush.msra.mxu0 %v1301
    %v1303 = vand.u32 %v15, 4294901760
    %1304 = vmatpush.msra.mxu0 %v1303
    %v1305 = vand.u32 %v1110, 4294901760
    %1306 = vmatmul.f32.gmra.mxu0 %v1305
    %v1307 = vpop.f32.mrf.mxu0
    %v1308 = vadd.f32 %v1282, %v1307
    %1309 = vdwg.mxu0
    %v1311 = vrot.slane %v1308, 4
    %v1313 = vadd.f32 %v366, %v1311
    %v1314 = vmul.f32 %v1100, 0.5
    %v1315 = vsub.f32 %v1096, %v1314
    %v1316 = vmul.f32 %v1315, %v21
    %v1318 = vrot.slane %v1313, 4
    %v1320 = vadd.f32 %v1316, %v1318
    %v1321 = vadd.f32 %v1320, %v1108
    %1323 = vrot.lane.b32.xlu0 %v1321, 93
    %v1324 = vpop.permute.xlu0 %1323
    %1326 = vrot.lane.b32.xlu0 %v1321, 5
    %v1327 = vpop.permute.xlu0 %1326
    %v1329 = vsel %vm592, %v1324, %v1327
    %vm1330 = vcmp.lt.f32.partialorder %v1329, %v1321
    %v1331 = vsel %vm1330, 1, 0
    %v1332 = vcvt.s32.f32 %v1331
    %1333 = vrot.lane.b32.xlu0 %v1321, 98
    %v1334 = vpop.permute.xlu0 %1333
    %1336 = vrot.lane.b32.xlu0 %v1321, 10
    %v1337 = vpop.permute.xlu0 %1336
    %v1339 = vsel %vm603, %v1334, %v1337
    %vm1340 = vcmp.lt.f32.partialorder %v1339, %v1321
    %v1341 = vsel %vm1340, 1, 0
    %v1342 = vcvt.s32.f32 %v1341
    %v1343 = vadd.f32 %v1332, %v1342
    %1344 = vrot.lane.b32.xlu0 %v1321, 103
    %v1345 = vpop.permute.xlu0 %1344
    %1347 = vrot.lane.b32.xlu0 %v1321, 15
    %v1348 = vpop.permute.xlu0 %1347
    %v1350 = vsel %vm615, %v1345, %v1348
    %vm1351 = vcmp.lt.f32.partialorder %v1350, %v1321
    %v1352 = vsel %vm1351, 1, 0
    %v1353 = vcvt.s32.f32 %v1352
    %v1354 = vadd.f32 %v1343, %v1353
    %1355 = vrot.lane.b32.xlu0 %v1321, 108
    %v1356 = vpop.permute.xlu0 %1355
    %1358 = vrot.lane.b32.xlu0 %v1321, 20
    %v1359 = vpop.permute.xlu0 %1358
    %v1361 = vsel %vm627, %v1356, %v1359
    %vm1362 = vcmp.lt.f32.partialorder %v1361, %v1321
    %v1363 = vsel %vm1362, 1, 0
    %v1364 = vcvt.s32.f32 %v1363
    %v1365 = vadd.f32 %v1354, %v1364
    %1366 = vrot.lane.b32.xlu0 %v1321, 113
    %v1367 = vpop.permute.xlu0 %1366
    %1369 = vrot.lane.b32.xlu0 %v1321, 25
    %v1370 = vpop.permute.xlu0 %1369
    %v1372 = vsel %vm639, %v1367, %v1370
    %vm1373 = vcmp.lt.f32.partialorder %v1372, %v1321
    %v1374 = vsel %vm1373, 1, 0
    %v1375 = vcvt.s32.f32 %v1374
    %v1376 = vadd.f32 %v1365, %v1375
    %1377 = vrot.lane.b32.xlu0 %v1321, 118
    %v1378 = vpop.permute.xlu0 %1377
    %1380 = vrot.lane.b32.xlu0 %v1321, 30
    %v1381 = vpop.permute.xlu0 %1380
    %v1383 = vsel %vm651, %v1378, %v1381
    %vm1384 = vcmp.lt.f32.partialorder %v1383, %v1321
    %v1385 = vsel %vm1384, 1, 0
    %v1386 = vcvt.s32.f32 %v1385
    %v1387 = vadd.f32 %v1376, %v1386
    %1388 = vrot.lane.b32.xlu0 %v1321, 123
    %v1389 = vpop.permute.xlu0 %1388
    %1391 = vrot.lane.b32.xlu0 %v1321, 35
    %v1392 = vpop.permute.xlu0 %1391
    %v1394 = vsel %vm663, %v1389, %v1392
    %vm1395 = vcmp.lt.f32.partialorder %v1394, %v1321
    %v1396 = vsel %vm1395, 1, 0
    %v1397 = vcvt.s32.f32 %v1396
    %v1398 = vadd.f32 %v1387, %v1397
    %vm1399 = vcmp.le.f32.partialorder %v1398, 5.0
    %v1400 = vsel %vm1399, %v1321, -1e+30
    %1402 = vrot.lane.b32.xlu0 %v1400, 93
    %v1403 = vpop.permute.xlu0 %1402
    %1405 = vrot.lane.b32.xlu0 %v1400, 5
    %v1406 = vpop.permute.xlu0 %1405
    %v1408 = vsel %vm592, %v1403, %v1406
    %v1409 = vmax.f32 %v1400, %v1408
    %1411 = vrot.lane.b32.xlu0 %v1409, 98
    %v1412 = vpop.permute.xlu0 %1411
    %1414 = vrot.lane.b32.xlu0 %v1409, 10
    %v1415 = vpop.permute.xlu0 %1414
    %v1417 = vsel %vm603, %v1412, %v1415
    %v1418 = vmax.f32 %v1409, %v1417
    %1420 = vrot.lane.b32.xlu0 %v1418, 108
    %v1421 = vpop.permute.xlu0 %1420
    %1423 = vrot.lane.b32.xlu0 %v1418, 20
    %v1424 = vpop.permute.xlu0 %1423
    %v1426 = vsel %vm627, %v1421, %v1424
    %v1427 = vmax.f32 %v1418, %v1426
    %vm1428 = vcmp.le.f32.partialorder %v1398, 6.0
    %v1429 = vsel %vm1428, %v1321, -1e+30
    %1431 = vrot.lane.b32.xlu0 %v1429, 93
    %v1432 = vpop.permute.xlu0 %1431
    %1434 = vrot.lane.b32.xlu0 %v1429, 5
    %v1435 = vpop.permute.xlu0 %1434
    %v1437 = vsel %vm592, %v1432, %v1435
    %v1438 = vmax.f32 %v1429, %v1437
    %1440 = vrot.lane.b32.xlu0 %v1438, 98
    %v1441 = vpop.permute.xlu0 %1440
    %1443 = vrot.lane.b32.xlu0 %v1438, 10
    %v1444 = vpop.permute.xlu0 %1443
    %v1446 = vsel %vm603, %v1441, %v1444
    %v1447 = vmax.f32 %v1438, %v1446
    %1449 = vrot.lane.b32.xlu0 %v1447, 108
    %v1450 = vpop.permute.xlu0 %1449
    %1452 = vrot.lane.b32.xlu0 %v1447, 20
    %v1453 = vpop.permute.xlu0 %1452
    %v1455 = vsel %vm627, %v1450, %v1453
    %v1456 = vmax.f32 %v1447, %v1455
    %v1457 = vsub.f32 %v1456, %v1427
    %v1458 = vmul.f32 %v1457, 0.6
    %v1459 = vadd.f32 %v1427, %v1458
    %v1460 = vsub.f32 %v1321, %v1459
    %v1461 = vmax.f32 %v1460, 0.0
    %v1462 = vsub.f32 %v1461, %v1107
    %vm1463 = vcmp.gt.f32.partialorder %v1462, 0.0
    %v1464 = vsel %vm1463, 1, 0
    %v1465 = vcvt.s32.f32 %v1464
    %v1466 = vmul.f32 %v1102, %v23
    %v1467 = vadd.f32 %v1466, %v1465
    %v1468 = vmul.f32 %v1104, %v25
    %v1469 = vadd.f32 %v1468, %v1465
    %v1470 = vadd.f32 %v1105, %v1465
    %v1471 = vmul.f32 %v1467, %v22
    %v1472 = vadd.f32 %v1471, 0.5
    %v1473 = vmul.f32 %v1469, %v24
    %v1475 = vsel %vm379, %v1465, 0
    %1477 = vmatpush.msra.mxu0 0.0
    %1478 = vmatpush.msra.mxu0 0.0
    %1479 = vmatpush.msra.mxu0 0.0
    %1480 = vmatpush.msra.mxu0 0.0
    %1481 = vmatpush.msra.mxu0 0.0
    %1482 = vmatpush.msra.mxu0 0.0
    %1483 = vmatpush.msra.mxu0 0.0
    %1484 = vmatpush.msra.mxu0 0.0
    %1485 = vmatpush.msra.mxu0 0.0
    %1486 = vmatpush.msra.mxu0 0.0
    %1487 = vmatpush.msra.mxu0 0.0
    %v1488 = vand.u32 %v19, 4294901760
    %1489 = vmatpush.msra.mxu0 %v1488
    %v1490 = vand.u32 %v18, 4294901760
    %1491 = vmatpush.msra.mxu0 %v1490
    %v1492 = vand.u32 %v17, 4294901760
    %1493 = vmatpush.msra.mxu0 %v1492
    %v1494 = vand.u32 %v16, 4294901760
    %1495 = vmatpush.msra.mxu0 %v1494
    %v1496 = vand.u32 %v15, 4294901760
    %1497 = vmatpush.msra.mxu0 %v1496
    %v1498 = vand.u32 %v1475, 4294901760
    %v1499 = vsub.f32 %v1475, %v1498
    %v1500 = vand.u32 %v1499, 4294901760
    %v1501 = vsub.f32 %v1499, %v1500
    %v1502 = vand.u32 %v1501, 4294901760
    %1503 = vmatmul.f32.gmra.mxu0 %v1502
    %v1504 = vpop.f32.mrf.mxu0
    %v1505 = vadd.f32 %v26, %v1504
    %1506 = vdwg.mxu0
    %1507 = vmatpush.msra.mxu0 0.0
    %1508 = vmatpush.msra.mxu0 0.0
    %1509 = vmatpush.msra.mxu0 0.0
    %1510 = vmatpush.msra.mxu0 0.0
    %1511 = vmatpush.msra.mxu0 0.0
    %1512 = vmatpush.msra.mxu0 0.0
    %1513 = vmatpush.msra.mxu0 0.0
    %1514 = vmatpush.msra.mxu0 0.0
    %1515 = vmatpush.msra.mxu0 0.0
    %1516 = vmatpush.msra.mxu0 0.0
    %1517 = vmatpush.msra.mxu0 0.0
    %v1518 = vand.u32 %v19, 4294901760
    %v1519 = vsub.f32 %v19, %v1518
    %v1520 = vand.u32 %v1519, 4294901760
    %v1521 = vsub.f32 %v1519, %v1520
    %v1522 = vand.u32 %v1521, 4294901760
    %1523 = vmatpush.msra.mxu0 %v1522
    %v1524 = vand.u32 %v18, 4294901760
    %v1525 = vsub.f32 %v18, %v1524
    %v1526 = vand.u32 %v1525, 4294901760
    %v1527 = vsub.f32 %v1525, %v1526
    %v1528 = vand.u32 %v1527, 4294901760
    %1529 = vmatpush.msra.mxu0 %v1528
    %v1530 = vand.u32 %v17, 4294901760
    %v1531 = vsub.f32 %v17, %v1530
    %v1532 = vand.u32 %v1531, 4294901760
    %v1533 = vsub.f32 %v1531, %v1532
    %v1534 = vand.u32 %v1533, 4294901760
    %1535 = vmatpush.msra.mxu0 %v1534
    %v1536 = vand.u32 %v16, 4294901760
    %v1537 = vsub.f32 %v16, %v1536
    %v1538 = vand.u32 %v1537, 4294901760
    %v1539 = vsub.f32 %v1537, %v1538
    %v1540 = vand.u32 %v1539, 4294901760
    %1541 = vmatpush.msra.mxu0 %v1540
    %v1542 = vand.u32 %v15, 4294901760
    %v1543 = vsub.f32 %v15, %v1542
    %v1544 = vand.u32 %v1543, 4294901760
    %v1545 = vsub.f32 %v1543, %v1544
    %v1546 = vand.u32 %v1545, 4294901760
    %1547 = vmatpush.msra.mxu0 %v1546
    %v1548 = vand.u32 %v1475, 4294901760
    %1549 = vmatmul.f32.gmra.mxu0 %v1548
    %v1550 = vpop.f32.mrf.mxu0
    %v1551 = vadd.f32 %v1505, %v1550
    %1552 = vdwg.mxu0
    %1553 = vmatpush.msra.mxu0 0.0
    %1554 = vmatpush.msra.mxu0 0.0
    %1555 = vmatpush.msra.mxu0 0.0
    %1556 = vmatpush.msra.mxu0 0.0
    %1557 = vmatpush.msra.mxu0 0.0
    %1558 = vmatpush.msra.mxu0 0.0
    %1559 = vmatpush.msra.mxu0 0.0
    %1560 = vmatpush.msra.mxu0 0.0
    %1561 = vmatpush.msra.mxu0 0.0
    %1562 = vmatpush.msra.mxu0 0.0
    %1563 = vmatpush.msra.mxu0 0.0
    %v1564 = vand.u32 %v19, 4294901760
    %v1565 = vsub.f32 %v19, %v1564
    %1566 = vmatpush.msra.mxu0 %v1565
    %v1567 = vand.u32 %v18, 4294901760
    %v1568 = vsub.f32 %v18, %v1567
    %1569 = vmatpush.msra.mxu0 %v1568
    %v1570 = vand.u32 %v17, 4294901760
    %v1571 = vsub.f32 %v17, %v1570
    %1572 = vmatpush.msra.mxu0 %v1571
    %v1573 = vand.u32 %v16, 4294901760
    %v1574 = vsub.f32 %v16, %v1573
    %1575 = vmatpush.msra.mxu0 %v1574
    %v1576 = vand.u32 %v15, 4294901760
    %v1577 = vsub.f32 %v15, %v1576
    %1578 = vmatpush.msra.mxu0 %v1577
    %v1579 = vand.u32 %v1475, 4294901760
    %v1580 = vsub.f32 %v1475, %v1579
    %1581 = vmatmul.f32.gmra.mxu0 %v1580
    %v1582 = vpop.f32.mrf.mxu0
    %v1583 = vadd.f32 %v1551, %v1582
    %1584 = vdwg.mxu0
    %1585 = vmatpush.msra.mxu0 0.0
    %1586 = vmatpush.msra.mxu0 0.0
    %1587 = vmatpush.msra.mxu0 0.0
    %1588 = vmatpush.msra.mxu0 0.0
    %1589 = vmatpush.msra.mxu0 0.0
    %1590 = vmatpush.msra.mxu0 0.0
    %1591 = vmatpush.msra.mxu0 0.0
    %1592 = vmatpush.msra.mxu0 0.0
    %1593 = vmatpush.msra.mxu0 0.0
    %1594 = vmatpush.msra.mxu0 0.0
    %1595 = vmatpush.msra.mxu0 0.0
    %v1596 = vand.u32 %v19, 4294901760
    %1597 = vmatpush.msra.mxu0 %v1596
    %v1598 = vand.u32 %v18, 4294901760
    %1599 = vmatpush.msra.mxu0 %v1598
    %v1600 = vand.u32 %v17, 4294901760
    %1601 = vmatpush.msra.mxu0 %v1600
    %v1602 = vand.u32 %v16, 4294901760
    %1603 = vmatpush.msra.mxu0 %v1602
    %v1604 = vand.u32 %v15, 4294901760
    %1605 = vmatpush.msra.mxu0 %v1604
    %v1606 = vand.u32 %v1475, 4294901760
    %v1607 = vsub.f32 %v1475, %v1606
    %v1608 = vand.u32 %v1607, 4294901760
    %1609 = vmatmul.f32.gmra.mxu0 %v1608
    %v1610 = vpop.f32.mrf.mxu0
    %v1611 = vadd.f32 %v1583, %v1610
    %1612 = vdwg.mxu0
    %1613 = vmatpush.msra.mxu0 0.0
    %1614 = vmatpush.msra.mxu0 0.0
    %1615 = vmatpush.msra.mxu0 0.0
    %1616 = vmatpush.msra.mxu0 0.0
    %1617 = vmatpush.msra.mxu0 0.0
    %1618 = vmatpush.msra.mxu0 0.0
    %1619 = vmatpush.msra.mxu0 0.0
    %1620 = vmatpush.msra.mxu0 0.0
    %1621 = vmatpush.msra.mxu0 0.0
    %1622 = vmatpush.msra.mxu0 0.0
    %1623 = vmatpush.msra.mxu0 0.0
    %v1624 = vand.u32 %v19, 4294901760
    %v1625 = vsub.f32 %v19, %v1624
    %v1626 = vand.u32 %v1625, 4294901760
    %1627 = vmatpush.msra.mxu0 %v1626
    %v1628 = vand.u32 %v18, 4294901760
    %v1629 = vsub.f32 %v18, %v1628
    %v1630 = vand.u32 %v1629, 4294901760
    %1631 = vmatpush.msra.mxu0 %v1630
    %v1632 = vand.u32 %v17, 4294901760
    %v1633 = vsub.f32 %v17, %v1632
    %v1634 = vand.u32 %v1633, 4294901760
    %1635 = vmatpush.msra.mxu0 %v1634
    %v1636 = vand.u32 %v16, 4294901760
    %v1637 = vsub.f32 %v16, %v1636
    %v1638 = vand.u32 %v1637, 4294901760
    %1639 = vmatpush.msra.mxu0 %v1638
    %v1640 = vand.u32 %v15, 4294901760
    %v1641 = vsub.f32 %v15, %v1640
    %v1642 = vand.u32 %v1641, 4294901760
    %1643 = vmatpush.msra.mxu0 %v1642
    %v1644 = vand.u32 %v1475, 4294901760
    %1645 = vmatmul.f32.gmra.mxu0 %v1644
    %v1646 = vpop.f32.mrf.mxu0
    %v1647 = vadd.f32 %v1611, %v1646
    %1648 = vdwg.mxu0
    %1649 = vmatpush.msra.mxu0 0.0
    %1650 = vmatpush.msra.mxu0 0.0
    %1651 = vmatpush.msra.mxu0 0.0
    %1652 = vmatpush.msra.mxu0 0.0
    %1653 = vmatpush.msra.mxu0 0.0
    %1654 = vmatpush.msra.mxu0 0.0
    %1655 = vmatpush.msra.mxu0 0.0
    %1656 = vmatpush.msra.mxu0 0.0
    %1657 = vmatpush.msra.mxu0 0.0
    %1658 = vmatpush.msra.mxu0 0.0
    %1659 = vmatpush.msra.mxu0 0.0
    %v1660 = vand.u32 %v19, 4294901760
    %1661 = vmatpush.msra.mxu0 %v1660
    %v1662 = vand.u32 %v18, 4294901760
    %1663 = vmatpush.msra.mxu0 %v1662
    %v1664 = vand.u32 %v17, 4294901760
    %1665 = vmatpush.msra.mxu0 %v1664
    %v1666 = vand.u32 %v16, 4294901760
    %1667 = vmatpush.msra.mxu0 %v1666
    %v1668 = vand.u32 %v15, 4294901760
    %1669 = vmatpush.msra.mxu0 %v1668
    %v1670 = vand.u32 %v1475, 4294901760
    %1671 = vmatmul.f32.gmra.mxu0 %v1670
    %v1672 = vpop.f32.mrf.mxu0
    %v1673 = vadd.f32 %v1647, %v1672
    %1674 = vdwg.mxu0
    %v1676 = vrot.slane %v1673, 2
    %v1678 = vadd.f32 %v366, %v1676
    %v1679 = vmul.f32 %v1465, 0.5
    %v1680 = vsub.f32 %v1461, %v1679
    %v1681 = vmul.f32 %v1680, %v21
    %v1683 = vrot.slane %v1678, 6
    %v1685 = vadd.f32 %v1681, %v1683
    %v1686 = vadd.f32 %v1685, %v1473
    %1688 = vrot.lane.b32.xlu0 %v1686, 93
    %v1689 = vpop.permute.xlu0 %1688
    %1691 = vrot.lane.b32.xlu0 %v1686, 5
    %v1692 = vpop.permute.xlu0 %1691
    %v1694 = vsel %vm592, %v1689, %v1692
    %vm1695 = vcmp.lt.f32.partialorder %v1694, %v1686
    %v1696 = vsel %vm1695, 1, 0
    %v1697 = vcvt.s32.f32 %v1696
    %1698 = vrot.lane.b32.xlu0 %v1686, 98
    %v1699 = vpop.permute.xlu0 %1698
    %1701 = vrot.lane.b32.xlu0 %v1686, 10
    %v1702 = vpop.permute.xlu0 %1701
    %v1704 = vsel %vm603, %v1699, %v1702
    %vm1705 = vcmp.lt.f32.partialorder %v1704, %v1686
    %v1706 = vsel %vm1705, 1, 0
    %v1707 = vcvt.s32.f32 %v1706
    %v1708 = vadd.f32 %v1697, %v1707
    %1709 = vrot.lane.b32.xlu0 %v1686, 103
    %v1710 = vpop.permute.xlu0 %1709
    %1712 = vrot.lane.b32.xlu0 %v1686, 15
    %v1713 = vpop.permute.xlu0 %1712
    %v1715 = vsel %vm615, %v1710, %v1713
    %vm1716 = vcmp.lt.f32.partialorder %v1715, %v1686
    %v1717 = vsel %vm1716, 1, 0
    %v1718 = vcvt.s32.f32 %v1717
    %v1719 = vadd.f32 %v1708, %v1718
    %1720 = vrot.lane.b32.xlu0 %v1686, 108
    %v1721 = vpop.permute.xlu0 %1720
    %1723 = vrot.lane.b32.xlu0 %v1686, 20
    %v1724 = vpop.permute.xlu0 %1723
    %v1726 = vsel %vm627, %v1721, %v1724
    %vm1727 = vcmp.lt.f32.partialorder %v1726, %v1686
    %v1728 = vsel %vm1727, 1, 0
    %v1729 = vcvt.s32.f32 %v1728
    %v1730 = vadd.f32 %v1719, %v1729
    %1731 = vrot.lane.b32.xlu0 %v1686, 113
    %v1732 = vpop.permute.xlu0 %1731
    %1734 = vrot.lane.b32.xlu0 %v1686, 25
    %v1735 = vpop.permute.xlu0 %1734
    %v1737 = vsel %vm639, %v1732, %v1735
    %vm1738 = vcmp.lt.f32.partialorder %v1737, %v1686
    %v1739 = vsel %vm1738, 1, 0
    %v1740 = vcvt.s32.f32 %v1739
    %v1741 = vadd.f32 %v1730, %v1740
    %1742 = vrot.lane.b32.xlu0 %v1686, 118
    %v1743 = vpop.permute.xlu0 %1742
    %1745 = vrot.lane.b32.xlu0 %v1686, 30
    %v1746 = vpop.permute.xlu0 %1745
    %v1748 = vsel %vm651, %v1743, %v1746
    %vm1749 = vcmp.lt.f32.partialorder %v1748, %v1686
    %v1750 = vsel %vm1749, 1, 0
    %v1751 = vcvt.s32.f32 %v1750
    %v1752 = vadd.f32 %v1741, %v1751
    %1753 = vrot.lane.b32.xlu0 %v1686, 123
    %v1754 = vpop.permute.xlu0 %1753
    %1756 = vrot.lane.b32.xlu0 %v1686, 35
    %v1757 = vpop.permute.xlu0 %1756
    %v1759 = vsel %vm663, %v1754, %v1757
    %vm1760 = vcmp.lt.f32.partialorder %v1759, %v1686
    %v1761 = vsel %vm1760, 1, 0
    %v1762 = vcvt.s32.f32 %v1761
    %v1763 = vadd.f32 %v1752, %v1762
    %vm1764 = vcmp.le.f32.partialorder %v1763, 5.0
    %v1765 = vsel %vm1764, %v1686, -1e+30
    %1767 = vrot.lane.b32.xlu0 %v1765, 93
    %v1768 = vpop.permute.xlu0 %1767
    %1770 = vrot.lane.b32.xlu0 %v1765, 5
    %v1771 = vpop.permute.xlu0 %1770
    %v1773 = vsel %vm592, %v1768, %v1771
    %v1774 = vmax.f32 %v1765, %v1773
    %1776 = vrot.lane.b32.xlu0 %v1774, 98
    %v1777 = vpop.permute.xlu0 %1776
    %1779 = vrot.lane.b32.xlu0 %v1774, 10
    %v1780 = vpop.permute.xlu0 %1779
    %v1782 = vsel %vm603, %v1777, %v1780
    %v1783 = vmax.f32 %v1774, %v1782
    %1785 = vrot.lane.b32.xlu0 %v1783, 108
    %v1786 = vpop.permute.xlu0 %1785
    %1788 = vrot.lane.b32.xlu0 %v1783, 20
    %v1789 = vpop.permute.xlu0 %1788
    %v1791 = vsel %vm627, %v1786, %v1789
    %v1792 = vmax.f32 %v1783, %v1791
    %vm1793 = vcmp.le.f32.partialorder %v1763, 6.0
    %v1794 = vsel %vm1793, %v1686, -1e+30
    %1796 = vrot.lane.b32.xlu0 %v1794, 93
    %v1797 = vpop.permute.xlu0 %1796
    %1799 = vrot.lane.b32.xlu0 %v1794, 5
    %v1800 = vpop.permute.xlu0 %1799
    %v1802 = vsel %vm592, %v1797, %v1800
    %v1803 = vmax.f32 %v1794, %v1802
    %1805 = vrot.lane.b32.xlu0 %v1803, 98
    %v1806 = vpop.permute.xlu0 %1805
    %1808 = vrot.lane.b32.xlu0 %v1803, 10
    %v1809 = vpop.permute.xlu0 %1808
    %v1811 = vsel %vm603, %v1806, %v1809
    %v1812 = vmax.f32 %v1803, %v1811
    %1814 = vrot.lane.b32.xlu0 %v1812, 108
    %v1815 = vpop.permute.xlu0 %1814
    %1817 = vrot.lane.b32.xlu0 %v1812, 20
    %v1818 = vpop.permute.xlu0 %1817
    %v1820 = vsel %vm627, %v1815, %v1818
    %v1821 = vmax.f32 %v1812, %v1820
    %v1822 = vsub.f32 %v1821, %v1792
    %v1823 = vmul.f32 %v1822, 0.6
    %v1824 = vadd.f32 %v1792, %v1823
    %v1825 = vsub.f32 %v1686, %v1824
    %v1826 = vmax.f32 %v1825, 0.0
    %v1827 = vsub.f32 %v1826, %v1472
    %vm1828 = vcmp.gt.f32.partialorder %v1827, 0.0
    %v1829 = vsel %vm1828, 1, 0
    %v1830 = vcvt.s32.f32 %v1829
    %v1831 = vmul.f32 %v1467, %v23
    %v1832 = vadd.f32 %v1831, %v1830
    %v1833 = vmul.f32 %v1469, %v25
    %v1834 = vadd.f32 %v1833, %v1830
    %v1835 = vadd.f32 %v1470, %v1830
    %v1836 = vmul.f32 %v1832, %v22
    %v1837 = vadd.f32 %v1836, 0.5
    %v1838 = vmul.f32 %v1834, %v24
    %v1840 = vsel %vm379, %v1830, 0
    %1842 = vmatpush.msra.mxu0 0.0
    %1843 = vmatpush.msra.mxu0 0.0
    %1844 = vmatpush.msra.mxu0 0.0
    %1845 = vmatpush.msra.mxu0 0.0
    %1846 = vmatpush.msra.mxu0 0.0
    %1847 = vmatpush.msra.mxu0 0.0
    %1848 = vmatpush.msra.mxu0 0.0
    %1849 = vmatpush.msra.mxu0 0.0
    %1850 = vmatpush.msra.mxu0 0.0
    %1851 = vmatpush.msra.mxu0 0.0
    %1852 = vmatpush.msra.mxu0 0.0
    %v1853 = vand.u32 %v19, 4294901760
    %1854 = vmatpush.msra.mxu0 %v1853
    %v1855 = vand.u32 %v18, 4294901760
    %1856 = vmatpush.msra.mxu0 %v1855
    %v1857 = vand.u32 %v17, 4294901760
    %1858 = vmatpush.msra.mxu0 %v1857
    %v1859 = vand.u32 %v16, 4294901760
    %1860 = vmatpush.msra.mxu0 %v1859
    %v1861 = vand.u32 %v15, 4294901760
    %1862 = vmatpush.msra.mxu0 %v1861
    %v1863 = vand.u32 %v1840, 4294901760
    %v1864 = vsub.f32 %v1840, %v1863
    %v1865 = vand.u32 %v1864, 4294901760
    %v1866 = vsub.f32 %v1864, %v1865
    %v1867 = vand.u32 %v1866, 4294901760
    %1868 = vmatmul.f32.gmra.mxu0 %v1867
    %v1869 = vpop.f32.mrf.mxu0
    %v1870 = vadd.f32 %v26, %v1869
    %1871 = vdwg.mxu0
    %1872 = vmatpush.msra.mxu0 0.0
    %1873 = vmatpush.msra.mxu0 0.0
    %1874 = vmatpush.msra.mxu0 0.0
    %1875 = vmatpush.msra.mxu0 0.0
    %1876 = vmatpush.msra.mxu0 0.0
    %1877 = vmatpush.msra.mxu0 0.0
    %1878 = vmatpush.msra.mxu0 0.0
    %1879 = vmatpush.msra.mxu0 0.0
    %1880 = vmatpush.msra.mxu0 0.0
    %1881 = vmatpush.msra.mxu0 0.0
    %1882 = vmatpush.msra.mxu0 0.0
    %v1883 = vand.u32 %v19, 4294901760
    %v1884 = vsub.f32 %v19, %v1883
    %v1885 = vand.u32 %v1884, 4294901760
    %v1886 = vsub.f32 %v1884, %v1885
    %v1887 = vand.u32 %v1886, 4294901760
    %1888 = vmatpush.msra.mxu0 %v1887
    %v1889 = vand.u32 %v18, 4294901760
    %v1890 = vsub.f32 %v18, %v1889
    %v1891 = vand.u32 %v1890, 4294901760
    %v1892 = vsub.f32 %v1890, %v1891
    %v1893 = vand.u32 %v1892, 4294901760
    %1894 = vmatpush.msra.mxu0 %v1893
    %v1895 = vand.u32 %v17, 4294901760
    %v1896 = vsub.f32 %v17, %v1895
    %v1897 = vand.u32 %v1896, 4294901760
    %v1898 = vsub.f32 %v1896, %v1897
    %v1899 = vand.u32 %v1898, 4294901760
    %1900 = vmatpush.msra.mxu0 %v1899
    %v1901 = vand.u32 %v16, 4294901760
    %v1902 = vsub.f32 %v16, %v1901
    %v1903 = vand.u32 %v1902, 4294901760
    %v1904 = vsub.f32 %v1902, %v1903
    %v1905 = vand.u32 %v1904, 4294901760
    %1906 = vmatpush.msra.mxu0 %v1905
    %v1907 = vand.u32 %v15, 4294901760
    %v1908 = vsub.f32 %v15, %v1907
    %v1909 = vand.u32 %v1908, 4294901760
    %v1910 = vsub.f32 %v1908, %v1909
    %v1911 = vand.u32 %v1910, 4294901760
    %1912 = vmatpush.msra.mxu0 %v1911
    %v1913 = vand.u32 %v1840, 4294901760
    %1914 = vmatmul.f32.gmra.mxu0 %v1913
    %v1915 = vpop.f32.mrf.mxu0
    %v1916 = vadd.f32 %v1870, %v1915
    %1917 = vdwg.mxu0
    %1918 = vmatpush.msra.mxu0 0.0
    %1919 = vmatpush.msra.mxu0 0.0
    %1920 = vmatpush.msra.mxu0 0.0
    %1921 = vmatpush.msra.mxu0 0.0
    %1922 = vmatpush.msra.mxu0 0.0
    %1923 = vmatpush.msra.mxu0 0.0
    %1924 = vmatpush.msra.mxu0 0.0
    %1925 = vmatpush.msra.mxu0 0.0
    %1926 = vmatpush.msra.mxu0 0.0
    %1927 = vmatpush.msra.mxu0 0.0
    %1928 = vmatpush.msra.mxu0 0.0
    %v1929 = vand.u32 %v19, 4294901760
    %v1930 = vsub.f32 %v19, %v1929
    %1931 = vmatpush.msra.mxu0 %v1930
    %v1932 = vand.u32 %v18, 4294901760
    %v1933 = vsub.f32 %v18, %v1932
    %1934 = vmatpush.msra.mxu0 %v1933
    %v1935 = vand.u32 %v17, 4294901760
    %v1936 = vsub.f32 %v17, %v1935
    %1937 = vmatpush.msra.mxu0 %v1936
    %v1938 = vand.u32 %v16, 4294901760
    %v1939 = vsub.f32 %v16, %v1938
    %1940 = vmatpush.msra.mxu0 %v1939
    %v1941 = vand.u32 %v15, 4294901760
    %v1942 = vsub.f32 %v15, %v1941
    %1943 = vmatpush.msra.mxu0 %v1942
    %v1944 = vand.u32 %v1840, 4294901760
    %v1945 = vsub.f32 %v1840, %v1944
    %1946 = vmatmul.f32.gmra.mxu0 %v1945
    %v1947 = vpop.f32.mrf.mxu0
    %v1948 = vadd.f32 %v1916, %v1947
    %1949 = vdwg.mxu0
    %1950 = vmatpush.msra.mxu0 0.0
    %1951 = vmatpush.msra.mxu0 0.0
    %1952 = vmatpush.msra.mxu0 0.0
    %1953 = vmatpush.msra.mxu0 0.0
    %1954 = vmatpush.msra.mxu0 0.0
    %1955 = vmatpush.msra.mxu0 0.0
    %1956 = vmatpush.msra.mxu0 0.0
    %1957 = vmatpush.msra.mxu0 0.0
    %1958 = vmatpush.msra.mxu0 0.0
    %1959 = vmatpush.msra.mxu0 0.0
    %1960 = vmatpush.msra.mxu0 0.0
    %v1961 = vand.u32 %v19, 4294901760
    %1962 = vmatpush.msra.mxu0 %v1961
    %v1963 = vand.u32 %v18, 4294901760
    %1964 = vmatpush.msra.mxu0 %v1963
    %v1965 = vand.u32 %v17, 4294901760
    %1966 = vmatpush.msra.mxu0 %v1965
    %v1967 = vand.u32 %v16, 4294901760
    %1968 = vmatpush.msra.mxu0 %v1967
    %v1969 = vand.u32 %v15, 4294901760
    %1970 = vmatpush.msra.mxu0 %v1969
    %v1971 = vand.u32 %v1840, 4294901760
    %v1972 = vsub.f32 %v1840, %v1971
    %v1973 = vand.u32 %v1972, 4294901760
    %1974 = vmatmul.f32.gmra.mxu0 %v1973
    %v1975 = vpop.f32.mrf.mxu0
    %v1976 = vadd.f32 %v1948, %v1975
    %1977 = vdwg.mxu0
    %1978 = vmatpush.msra.mxu0 0.0
    %1979 = vmatpush.msra.mxu0 0.0
    %1980 = vmatpush.msra.mxu0 0.0
    %1981 = vmatpush.msra.mxu0 0.0
    %1982 = vmatpush.msra.mxu0 0.0
    %1983 = vmatpush.msra.mxu0 0.0
    %1984 = vmatpush.msra.mxu0 0.0
    %1985 = vmatpush.msra.mxu0 0.0
    %1986 = vmatpush.msra.mxu0 0.0
    %1987 = vmatpush.msra.mxu0 0.0
    %1988 = vmatpush.msra.mxu0 0.0
    %v1989 = vand.u32 %v19, 4294901760
    %v1990 = vsub.f32 %v19, %v1989
    %v1991 = vand.u32 %v1990, 4294901760
    %1992 = vmatpush.msra.mxu0 %v1991
    %v1993 = vand.u32 %v18, 4294901760
    %v1994 = vsub.f32 %v18, %v1993
    %v1995 = vand.u32 %v1994, 4294901760
    %1996 = vmatpush.msra.mxu0 %v1995
    %v1997 = vand.u32 %v17, 4294901760
    %v1998 = vsub.f32 %v17, %v1997
    %v1999 = vand.u32 %v1998, 4294901760
    %2000 = vmatpush.msra.mxu0 %v1999
    %v2001 = vand.u32 %v16, 4294901760
    %v2002 = vsub.f32 %v16, %v2001
    %v2003 = vand.u32 %v2002, 4294901760
    %2004 = vmatpush.msra.mxu0 %v2003
    %v2005 = vand.u32 %v15, 4294901760
    %v2006 = vsub.f32 %v15, %v2005
    %v2007 = vand.u32 %v2006, 4294901760
    %2008 = vmatpush.msra.mxu0 %v2007
    %v2009 = vand.u32 %v1840, 4294901760
    %2010 = vmatmul.f32.gmra.mxu0 %v2009
    %v2011 = vpop.f32.mrf.mxu0
    %v2012 = vadd.f32 %v1976, %v2011
    %2013 = vdwg.mxu0
    %2014 = vmatpush.msra.mxu0 0.0
    %2015 = vmatpush.msra.mxu0 0.0
    %2016 = vmatpush.msra.mxu0 0.0
    %2017 = vmatpush.msra.mxu0 0.0
    %2018 = vmatpush.msra.mxu0 0.0
    %2019 = vmatpush.msra.mxu0 0.0
    %2020 = vmatpush.msra.mxu0 0.0
    %2021 = vmatpush.msra.mxu0 0.0
    %2022 = vmatpush.msra.mxu0 0.0
    %2023 = vmatpush.msra.mxu0 0.0
    %2024 = vmatpush.msra.mxu0 0.0
    %v2025 = vand.u32 %v19, 4294901760
    %2026 = vmatpush.msra.mxu0 %v2025
    %v2027 = vand.u32 %v18, 4294901760
    %2028 = vmatpush.msra.mxu0 %v2027
    %v2029 = vand.u32 %v17, 4294901760
    %2030 = vmatpush.msra.mxu0 %v2029
    %v2031 = vand.u32 %v16, 4294901760
    %2032 = vmatpush.msra.mxu0 %v2031
    %v2033 = vand.u32 %v15, 4294901760
    %2034 = vmatpush.msra.mxu0 %v2033
    %v2035 = vand.u32 %v1840, 4294901760
    %2036 = vmatmul.f32.gmra.mxu0 %v2035
    %v2037 = vpop.f32.mrf.mxu0
    %v2038 = vadd.f32 %v2012, %v2037
    %2039 = vdwg.mxu0
    %v2040 = vadd.f32 %v370, %v2038
    %v2041 = vmul.f32 %v1830, 0.5
    %v2042 = vsub.f32 %v1826, %v2041
    %v2043 = vmul.f32 %v2042, %v21
    %v2044 = vadd.f32 %v2043, %v2040
    %v2045 = vadd.f32 %v2044, %v1838
    %2047 = vrot.lane.b32.xlu0 %v2045, 93
    %v2048 = vpop.permute.xlu0 %2047
    %2050 = vrot.lane.b32.xlu0 %v2045, 5
    %v2051 = vpop.permute.xlu0 %2050
    %v2053 = vsel %vm592, %v2048, %v2051
    %vm2054 = vcmp.lt.f32.partialorder %v2053, %v2045
    %v2055 = vsel %vm2054, 1, 0
    %v2056 = vcvt.s32.f32 %v2055
    %2057 = vrot.lane.b32.xlu0 %v2045, 98
    %v2058 = vpop.permute.xlu0 %2057
    %2060 = vrot.lane.b32.xlu0 %v2045, 10
    %v2061 = vpop.permute.xlu0 %2060
    %v2063 = vsel %vm603, %v2058, %v2061
    %vm2064 = vcmp.lt.f32.partialorder %v2063, %v2045
    %v2065 = vsel %vm2064, 1, 0
    %v2066 = vcvt.s32.f32 %v2065
    %v2067 = vadd.f32 %v2056, %v2066
    %2068 = vrot.lane.b32.xlu0 %v2045, 103
    %v2069 = vpop.permute.xlu0 %2068
    %2071 = vrot.lane.b32.xlu0 %v2045, 15
    %v2072 = vpop.permute.xlu0 %2071
    %v2074 = vsel %vm615, %v2069, %v2072
    %vm2075 = vcmp.lt.f32.partialorder %v2074, %v2045
    %v2076 = vsel %vm2075, 1, 0
    %v2077 = vcvt.s32.f32 %v2076
    %v2078 = vadd.f32 %v2067, %v2077
    %2079 = vrot.lane.b32.xlu0 %v2045, 108
    %v2080 = vpop.permute.xlu0 %2079
    %2082 = vrot.lane.b32.xlu0 %v2045, 20
    %v2083 = vpop.permute.xlu0 %2082
    %v2085 = vsel %vm627, %v2080, %v2083
    %vm2086 = vcmp.lt.f32.partialorder %v2085, %v2045
    %v2087 = vsel %vm2086, 1, 0
    %v2088 = vcvt.s32.f32 %v2087
    %v2089 = vadd.f32 %v2078, %v2088
    %2090 = vrot.lane.b32.xlu0 %v2045, 113
    %v2091 = vpop.permute.xlu0 %2090
    %2093 = vrot.lane.b32.xlu0 %v2045, 25
    %v2094 = vpop.permute.xlu0 %2093
    %v2096 = vsel %vm639, %v2091, %v2094
    %vm2097 = vcmp.lt.f32.partialorder %v2096, %v2045
    %v2098 = vsel %vm2097, 1, 0
    %v2099 = vcvt.s32.f32 %v2098
    %v2100 = vadd.f32 %v2089, %v2099
    %2101 = vrot.lane.b32.xlu0 %v2045, 118
    %v2102 = vpop.permute.xlu0 %2101
    %2104 = vrot.lane.b32.xlu0 %v2045, 30
    %v2105 = vpop.permute.xlu0 %2104
    %v2107 = vsel %vm651, %v2102, %v2105
    %vm2108 = vcmp.lt.f32.partialorder %v2107, %v2045
    %v2109 = vsel %vm2108, 1, 0
    %v2110 = vcvt.s32.f32 %v2109
    %v2111 = vadd.f32 %v2100, %v2110
    %2112 = vrot.lane.b32.xlu0 %v2045, 123
    %v2113 = vpop.permute.xlu0 %2112
    %2115 = vrot.lane.b32.xlu0 %v2045, 35
    %v2116 = vpop.permute.xlu0 %2115
    %v2118 = vsel %vm663, %v2113, %v2116
    %vm2119 = vcmp.lt.f32.partialorder %v2118, %v2045
    %v2120 = vsel %vm2119, 1, 0
    %v2121 = vcvt.s32.f32 %v2120
    %v2122 = vadd.f32 %v2111, %v2121
    %vm2123 = vcmp.le.f32.partialorder %v2122, 5.0
    %v2124 = vsel %vm2123, %v2045, -1e+30
    %2126 = vrot.lane.b32.xlu0 %v2124, 93
    %v2127 = vpop.permute.xlu0 %2126
    %2129 = vrot.lane.b32.xlu0 %v2124, 5
    %v2130 = vpop.permute.xlu0 %2129
    %v2132 = vsel %vm592, %v2127, %v2130
    %v2133 = vmax.f32 %v2124, %v2132
    %2135 = vrot.lane.b32.xlu0 %v2133, 98
    %v2136 = vpop.permute.xlu0 %2135
    %2138 = vrot.lane.b32.xlu0 %v2133, 10
    %v2139 = vpop.permute.xlu0 %2138
    %v2141 = vsel %vm603, %v2136, %v2139
    %v2142 = vmax.f32 %v2133, %v2141
    %2144 = vrot.lane.b32.xlu0 %v2142, 108
    %v2145 = vpop.permute.xlu0 %2144
    %2147 = vrot.lane.b32.xlu0 %v2142, 20
    %v2148 = vpop.permute.xlu0 %2147
    %v2150 = vsel %vm627, %v2145, %v2148
    %v2151 = vmax.f32 %v2142, %v2150
    %vm2152 = vcmp.le.f32.partialorder %v2122, 6.0
    %v2153 = vsel %vm2152, %v2045, -1e+30
    %2155 = vrot.lane.b32.xlu0 %v2153, 93
    %v2156 = vpop.permute.xlu0 %2155
    %2158 = vrot.lane.b32.xlu0 %v2153, 5
    %v2159 = vpop.permute.xlu0 %2158
    %v2161 = vsel %vm592, %v2156, %v2159
    %v2162 = vmax.f32 %v2153, %v2161
    %2164 = vrot.lane.b32.xlu0 %v2162, 98
    %v2165 = vpop.permute.xlu0 %2164
    %2167 = vrot.lane.b32.xlu0 %v2162, 10
    %v2168 = vpop.permute.xlu0 %2167
    %v2170 = vsel %vm603, %v2165, %v2168
    %v2171 = vmax.f32 %v2162, %v2170
    %2173 = vrot.lane.b32.xlu0 %v2171, 108
    %v2174 = vpop.permute.xlu0 %2173
    %2176 = vrot.lane.b32.xlu0 %v2171, 20
    %v2177 = vpop.permute.xlu0 %2176
    %v2179 = vsel %vm627, %v2174, %v2177
    %v2180 = vmax.f32 %v2171, %v2179
    %v2181 = vsub.f32 %v2180, %v2151
    %v2182 = vmul.f32 %v2181, 0.6
    %v2183 = vadd.f32 %v2151, %v2182
    %v2184 = vsub.f32 %v2045, %v2183
    %v2185 = vmax.f32 %v2184, 0.0
    %v2186 = vsub.f32 %v2185, %v1837
    %vm2187 = vcmp.gt.f32.partialorder %v2186, 0.0
    %v2188 = vsel %vm2187, 1, 0
    %v2189 = vcvt.s32.f32 %v2188
    %v2190 = vmul.f32 %v1832, %v23
    %v2191 = vadd.f32 %v2190, %v2189
    %v2192 = vmul.f32 %v1834, %v25
    %v2193 = vadd.f32 %v2192, %v2189
    %v2194 = vadd.f32 %v1835, %v2189
    %v2195 = vmul.f32 %v2191, %v22
    %v2196 = vadd.f32 %v2195, 0.5
    %v2197 = vmul.f32 %v2193, %v24
    %v2199 = vsel %vm379, %v2189, 0
    %2201 = vmatpush.msra.mxu0 0.0
    %2202 = vmatpush.msra.mxu0 0.0
    %2203 = vmatpush.msra.mxu0 0.0
    %2204 = vmatpush.msra.mxu0 0.0
    %2205 = vmatpush.msra.mxu0 0.0
    %2206 = vmatpush.msra.mxu0 0.0
    %2207 = vmatpush.msra.mxu0 0.0
    %2208 = vmatpush.msra.mxu0 0.0
    %2209 = vmatpush.msra.mxu0 0.0
    %2210 = vmatpush.msra.mxu0 0.0
    %2211 = vmatpush.msra.mxu0 0.0
    %v2212 = vand.u32 %v19, 4294901760
    %2213 = vmatpush.msra.mxu0 %v2212
    %v2214 = vand.u32 %v18, 4294901760
    %2215 = vmatpush.msra.mxu0 %v2214
    %v2216 = vand.u32 %v17, 4294901760
    %2217 = vmatpush.msra.mxu0 %v2216
    %v2218 = vand.u32 %v16, 4294901760
    %2219 = vmatpush.msra.mxu0 %v2218
    %v2220 = vand.u32 %v15, 4294901760
    %2221 = vmatpush.msra.mxu0 %v2220
    %v2222 = vand.u32 %v2199, 4294901760
    %v2223 = vsub.f32 %v2199, %v2222
    %v2224 = vand.u32 %v2223, 4294901760
    %v2225 = vsub.f32 %v2223, %v2224
    %v2226 = vand.u32 %v2225, 4294901760
    %2227 = vmatmul.f32.gmra.mxu0 %v2226
    %v2228 = vpop.f32.mrf.mxu0
    %v2229 = vadd.f32 %v26, %v2228
    %2230 = vdwg.mxu0
    %2231 = vmatpush.msra.mxu0 0.0
    %2232 = vmatpush.msra.mxu0 0.0
    %2233 = vmatpush.msra.mxu0 0.0
    %2234 = vmatpush.msra.mxu0 0.0
    %2235 = vmatpush.msra.mxu0 0.0
    %2236 = vmatpush.msra.mxu0 0.0
    %2237 = vmatpush.msra.mxu0 0.0
    %2238 = vmatpush.msra.mxu0 0.0
    %2239 = vmatpush.msra.mxu0 0.0
    %2240 = vmatpush.msra.mxu0 0.0
    %2241 = vmatpush.msra.mxu0 0.0
    %v2242 = vand.u32 %v19, 4294901760
    %v2243 = vsub.f32 %v19, %v2242
    %v2244 = vand.u32 %v2243, 4294901760
    %v2245 = vsub.f32 %v2243, %v2244
    %v2246 = vand.u32 %v2245, 4294901760
    %2247 = vmatpush.msra.mxu0 %v2246
    %v2248 = vand.u32 %v18, 4294901760
    %v2249 = vsub.f32 %v18, %v2248
    %v2250 = vand.u32 %v2249, 4294901760
    %v2251 = vsub.f32 %v2249, %v2250
    %v2252 = vand.u32 %v2251, 4294901760
    %2253 = vmatpush.msra.mxu0 %v2252
    %v2254 = vand.u32 %v17, 4294901760
    %v2255 = vsub.f32 %v17, %v2254
    %v2256 = vand.u32 %v2255, 4294901760
    %v2257 = vsub.f32 %v2255, %v2256
    %v2258 = vand.u32 %v2257, 4294901760
    %2259 = vmatpush.msra.mxu0 %v2258
    %v2260 = vand.u32 %v16, 4294901760
    %v2261 = vsub.f32 %v16, %v2260
    %v2262 = vand.u32 %v2261, 4294901760
    %v2263 = vsub.f32 %v2261, %v2262
    %v2264 = vand.u32 %v2263, 4294901760
    %2265 = vmatpush.msra.mxu0 %v2264
    %v2266 = vand.u32 %v15, 4294901760
    %v2267 = vsub.f32 %v15, %v2266
    %v2268 = vand.u32 %v2267, 4294901760
    %v2269 = vsub.f32 %v2267, %v2268
    %v2270 = vand.u32 %v2269, 4294901760
    %2271 = vmatpush.msra.mxu0 %v2270
    %v2272 = vand.u32 %v2199, 4294901760
    %2273 = vmatmul.f32.gmra.mxu0 %v2272
    %v2274 = vpop.f32.mrf.mxu0
    %v2275 = vadd.f32 %v2229, %v2274
    %2276 = vdwg.mxu0
    %2277 = vmatpush.msra.mxu0 0.0
    %2278 = vmatpush.msra.mxu0 0.0
    %2279 = vmatpush.msra.mxu0 0.0
    %2280 = vmatpush.msra.mxu0 0.0
    %2281 = vmatpush.msra.mxu0 0.0
    %2282 = vmatpush.msra.mxu0 0.0
    %2283 = vmatpush.msra.mxu0 0.0
    %2284 = vmatpush.msra.mxu0 0.0
    %2285 = vmatpush.msra.mxu0 0.0
    %2286 = vmatpush.msra.mxu0 0.0
    %2287 = vmatpush.msra.mxu0 0.0
    %v2288 = vand.u32 %v19, 4294901760
    %v2289 = vsub.f32 %v19, %v2288
    %2290 = vmatpush.msra.mxu0 %v2289
    %v2291 = vand.u32 %v18, 4294901760
    %v2292 = vsub.f32 %v18, %v2291
    %2293 = vmatpush.msra.mxu0 %v2292
    %v2294 = vand.u32 %v17, 4294901760
    %v2295 = vsub.f32 %v17, %v2294
    %2296 = vmatpush.msra.mxu0 %v2295
    %v2297 = vand.u32 %v16, 4294901760
    %v2298 = vsub.f32 %v16, %v2297
    %2299 = vmatpush.msra.mxu0 %v2298
    %v2300 = vand.u32 %v15, 4294901760
    %v2301 = vsub.f32 %v15, %v2300
    %2302 = vmatpush.msra.mxu0 %v2301
    %v2303 = vand.u32 %v2199, 4294901760
    %v2304 = vsub.f32 %v2199, %v2303
    %2305 = vmatmul.f32.gmra.mxu0 %v2304
    %v2306 = vpop.f32.mrf.mxu0
    %v2307 = vadd.f32 %v2275, %v2306
    %2308 = vdwg.mxu0
    %2309 = vmatpush.msra.mxu0 0.0
    %2310 = vmatpush.msra.mxu0 0.0
    %2311 = vmatpush.msra.mxu0 0.0
    %2312 = vmatpush.msra.mxu0 0.0
    %2313 = vmatpush.msra.mxu0 0.0
    %2314 = vmatpush.msra.mxu0 0.0
    %2315 = vmatpush.msra.mxu0 0.0
    %2316 = vmatpush.msra.mxu0 0.0
    %2317 = vmatpush.msra.mxu0 0.0
    %2318 = vmatpush.msra.mxu0 0.0
    %2319 = vmatpush.msra.mxu0 0.0
    %v2320 = vand.u32 %v19, 4294901760
    %2321 = vmatpush.msra.mxu0 %v2320
    %v2322 = vand.u32 %v18, 4294901760
    %2323 = vmatpush.msra.mxu0 %v2322
    %v2324 = vand.u32 %v17, 4294901760
    %2325 = vmatpush.msra.mxu0 %v2324
    %v2326 = vand.u32 %v16, 4294901760
    %2327 = vmatpush.msra.mxu0 %v2326
    %v2328 = vand.u32 %v15, 4294901760
    %2329 = vmatpush.msra.mxu0 %v2328
    %v2330 = vand.u32 %v2199, 4294901760
    %v2331 = vsub.f32 %v2199, %v2330
    %v2332 = vand.u32 %v2331, 4294901760
    %2333 = vmatmul.f32.gmra.mxu0 %v2332
    %v2334 = vpop.f32.mrf.mxu0
    %v2335 = vadd.f32 %v2307, %v2334
    %2336 = vdwg.mxu0
    %2337 = vmatpush.msra.mxu0 0.0
    %2338 = vmatpush.msra.mxu0 0.0
    %2339 = vmatpush.msra.mxu0 0.0
    %2340 = vmatpush.msra.mxu0 0.0
    %2341 = vmatpush.msra.mxu0 0.0
    %2342 = vmatpush.msra.mxu0 0.0
    %2343 = vmatpush.msra.mxu0 0.0
    %2344 = vmatpush.msra.mxu0 0.0
    %2345 = vmatpush.msra.mxu0 0.0
    %2346 = vmatpush.msra.mxu0 0.0
    %2347 = vmatpush.msra.mxu0 0.0
    %v2348 = vand.u32 %v19, 4294901760
    %v2349 = vsub.f32 %v19, %v2348
    %v2350 = vand.u32 %v2349, 4294901760
    %2351 = vmatpush.msra.mxu0 %v2350
    %v2352 = vand.u32 %v18, 4294901760
    %v2353 = vsub.f32 %v18, %v2352
    %v2354 = vand.u32 %v2353, 4294901760
    %2355 = vmatpush.msra.mxu0 %v2354
    %v2356 = vand.u32 %v17, 4294901760
    %v2357 = vsub.f32 %v17, %v2356
    %v2358 = vand.u32 %v2357, 4294901760
    %2359 = vmatpush.msra.mxu0 %v2358
    %v2360 = vand.u32 %v16, 4294901760
    %v2361 = vsub.f32 %v16, %v2360
    %v2362 = vand.u32 %v2361, 4294901760
    %2363 = vmatpush.msra.mxu0 %v2362
    %v2364 = vand.u32 %v15, 4294901760
    %v2365 = vsub.f32 %v15, %v2364
    %v2366 = vand.u32 %v2365, 4294901760
    %2367 = vmatpush.msra.mxu0 %v2366
    %v2368 = vand.u32 %v2199, 4294901760
    %2369 = vmatmul.f32.gmra.mxu0 %v2368
    %v2370 = vpop.f32.mrf.mxu0
    %v2371 = vadd.f32 %v2335, %v2370
    %2372 = vdwg.mxu0
    %2373 = vmatpush.msra.mxu0 0.0
    %2374 = vmatpush.msra.mxu0 0.0
    %2375 = vmatpush.msra.mxu0 0.0
    %2376 = vmatpush.msra.mxu0 0.0
    %2377 = vmatpush.msra.mxu0 0.0
    %2378 = vmatpush.msra.mxu0 0.0
    %2379 = vmatpush.msra.mxu0 0.0
    %2380 = vmatpush.msra.mxu0 0.0
    %2381 = vmatpush.msra.mxu0 0.0
    %2382 = vmatpush.msra.mxu0 0.0
    %2383 = vmatpush.msra.mxu0 0.0
    %v2384 = vand.u32 %v19, 4294901760
    %2385 = vmatpush.msra.mxu0 %v2384
    %v2386 = vand.u32 %v18, 4294901760
    %2387 = vmatpush.msra.mxu0 %v2386
    %v2388 = vand.u32 %v17, 4294901760
    %2389 = vmatpush.msra.mxu0 %v2388
    %v2390 = vand.u32 %v16, 4294901760
    %2391 = vmatpush.msra.mxu0 %v2390
    %v2392 = vand.u32 %v15, 4294901760
    %2393 = vmatpush.msra.mxu0 %v2392
    %v2394 = vand.u32 %v2199, 4294901760
    %2395 = vmatmul.f32.gmra.mxu0 %v2394
    %v2396 = vpop.f32.mrf.mxu0
    %v2397 = vadd.f32 %v2371, %v2396
    %2398 = vdwg.mxu0
    %v2400 = vrot.slane %v2397, 6
    %v2402 = vadd.f32 %v370, %v2400
    %v2403 = vmul.f32 %v2189, 0.5
    %v2404 = vsub.f32 %v2185, %v2403
    %v2405 = vmul.f32 %v2404, %v21
    %v2407 = vrot.slane %v2402, 2
    %v2409 = vadd.f32 %v2405, %v2407
    %v2410 = vadd.f32 %v2409, %v2197
    %2412 = vrot.lane.b32.xlu0 %v2410, 93
    %v2413 = vpop.permute.xlu0 %2412
    %2415 = vrot.lane.b32.xlu0 %v2410, 5
    %v2416 = vpop.permute.xlu0 %2415
    %v2418 = vsel %vm592, %v2413, %v2416
    %vm2419 = vcmp.lt.f32.partialorder %v2418, %v2410
    %v2420 = vsel %vm2419, 1, 0
    %v2421 = vcvt.s32.f32 %v2420
    %2422 = vrot.lane.b32.xlu0 %v2410, 98
    %v2423 = vpop.permute.xlu0 %2422
    %2425 = vrot.lane.b32.xlu0 %v2410, 10
    %v2426 = vpop.permute.xlu0 %2425
    %v2428 = vsel %vm603, %v2423, %v2426
    %vm2429 = vcmp.lt.f32.partialorder %v2428, %v2410
    %v2430 = vsel %vm2429, 1, 0
    %v2431 = vcvt.s32.f32 %v2430
    %v2432 = vadd.f32 %v2421, %v2431
    %2433 = vrot.lane.b32.xlu0 %v2410, 103
    %v2434 = vpop.permute.xlu0 %2433
    %2436 = vrot.lane.b32.xlu0 %v2410, 15
    %v2437 = vpop.permute.xlu0 %2436
    %v2439 = vsel %vm615, %v2434, %v2437
    %vm2440 = vcmp.lt.f32.partialorder %v2439, %v2410
    %v2441 = vsel %vm2440, 1, 0
    %v2442 = vcvt.s32.f32 %v2441
    %v2443 = vadd.f32 %v2432, %v2442
    %2444 = vrot.lane.b32.xlu0 %v2410, 108
    %v2445 = vpop.permute.xlu0 %2444
    %2447 = vrot.lane.b32.xlu0 %v2410, 20
    %v2448 = vpop.permute.xlu0 %2447
    %v2450 = vsel %vm627, %v2445, %v2448
    %vm2451 = vcmp.lt.f32.partialorder %v2450, %v2410
    %v2452 = vsel %vm2451, 1, 0
    %v2453 = vcvt.s32.f32 %v2452
    %v2454 = vadd.f32 %v2443, %v2453
    %2455 = vrot.lane.b32.xlu0 %v2410, 113
    %v2456 = vpop.permute.xlu0 %2455
    %2458 = vrot.lane.b32.xlu0 %v2410, 25
    %v2459 = vpop.permute.xlu0 %2458
    %v2461 = vsel %vm639, %v2456, %v2459
    %vm2462 = vcmp.lt.f32.partialorder %v2461, %v2410
    %v2463 = vsel %vm2462, 1, 0
    %v2464 = vcvt.s32.f32 %v2463
    %v2465 = vadd.f32 %v2454, %v2464
    %2466 = vrot.lane.b32.xlu0 %v2410, 118
    %v2467 = vpop.permute.xlu0 %2466
    %2469 = vrot.lane.b32.xlu0 %v2410, 30
    %v2470 = vpop.permute.xlu0 %2469
    %v2472 = vsel %vm651, %v2467, %v2470
    %vm2473 = vcmp.lt.f32.partialorder %v2472, %v2410
    %v2474 = vsel %vm2473, 1, 0
    %v2475 = vcvt.s32.f32 %v2474
    %v2476 = vadd.f32 %v2465, %v2475
    %2477 = vrot.lane.b32.xlu0 %v2410, 123
    %v2478 = vpop.permute.xlu0 %2477
    %2480 = vrot.lane.b32.xlu0 %v2410, 35
    %v2481 = vpop.permute.xlu0 %2480
    %v2483 = vsel %vm663, %v2478, %v2481
    %vm2484 = vcmp.lt.f32.partialorder %v2483, %v2410
    %v2485 = vsel %vm2484, 1, 0
    %v2486 = vcvt.s32.f32 %v2485
    %v2487 = vadd.f32 %v2476, %v2486
    %vm2488 = vcmp.le.f32.partialorder %v2487, 5.0
    %v2489 = vsel %vm2488, %v2410, -1e+30
    %2491 = vrot.lane.b32.xlu0 %v2489, 93
    %v2492 = vpop.permute.xlu0 %2491
    %2494 = vrot.lane.b32.xlu0 %v2489, 5
    %v2495 = vpop.permute.xlu0 %2494
    %v2497 = vsel %vm592, %v2492, %v2495
    %v2498 = vmax.f32 %v2489, %v2497
    %2500 = vrot.lane.b32.xlu0 %v2498, 98
    %v2501 = vpop.permute.xlu0 %2500
    %2503 = vrot.lane.b32.xlu0 %v2498, 10
    %v2504 = vpop.permute.xlu0 %2503
    %v2506 = vsel %vm603, %v2501, %v2504
    %v2507 = vmax.f32 %v2498, %v2506
    %2509 = vrot.lane.b32.xlu0 %v2507, 108
    %v2510 = vpop.permute.xlu0 %2509
    %2512 = vrot.lane.b32.xlu0 %v2507, 20
    %v2513 = vpop.permute.xlu0 %2512
    %v2515 = vsel %vm627, %v2510, %v2513
    %v2516 = vmax.f32 %v2507, %v2515
    %vm2517 = vcmp.le.f32.partialorder %v2487, 6.0
    %v2518 = vsel %vm2517, %v2410, -1e+30
    %2520 = vrot.lane.b32.xlu0 %v2518, 93
    %v2521 = vpop.permute.xlu0 %2520
    %2523 = vrot.lane.b32.xlu0 %v2518, 5
    %v2524 = vpop.permute.xlu0 %2523
    %v2526 = vsel %vm592, %v2521, %v2524
    %v2527 = vmax.f32 %v2518, %v2526
    %2529 = vrot.lane.b32.xlu0 %v2527, 98
    %v2530 = vpop.permute.xlu0 %2529
    %2532 = vrot.lane.b32.xlu0 %v2527, 10
    %v2533 = vpop.permute.xlu0 %2532
    %v2535 = vsel %vm603, %v2530, %v2533
    %v2536 = vmax.f32 %v2527, %v2535
    %2538 = vrot.lane.b32.xlu0 %v2536, 108
    %v2539 = vpop.permute.xlu0 %2538
    %2541 = vrot.lane.b32.xlu0 %v2536, 20
    %v2542 = vpop.permute.xlu0 %2541
    %v2544 = vsel %vm627, %v2539, %v2542
    %v2545 = vmax.f32 %v2536, %v2544
    %v2546 = vsub.f32 %v2545, %v2516
    %v2547 = vmul.f32 %v2546, 0.6
    %v2548 = vadd.f32 %v2516, %v2547
    %v2549 = vsub.f32 %v2410, %v2548
    %v2550 = vmax.f32 %v2549, 0.0
    %v2551 = vsub.f32 %v2550, %v2196
    %vm2552 = vcmp.gt.f32.partialorder %v2551, 0.0
    %v2553 = vsel %vm2552, 1, 0
    %v2554 = vcvt.s32.f32 %v2553
    %v2555 = vmul.f32 %v2191, %v23
    %v2556 = vadd.f32 %v2555, %v2554
    %v2557 = vmul.f32 %v2193, %v25
    %v2558 = vadd.f32 %v2557, %v2554
    %v2559 = vadd.f32 %v2194, %v2554
    %v2560 = vmul.f32 %v2556, %v22
    %v2561 = vadd.f32 %v2560, 0.5
    %v2562 = vmul.f32 %v2558, %v24
    %v2564 = vsel %vm379, %v2554, 0
    %2566 = vmatpush.msra.mxu0 0.0
    %2567 = vmatpush.msra.mxu0 0.0
    %2568 = vmatpush.msra.mxu0 0.0
    %2569 = vmatpush.msra.mxu0 0.0
    %2570 = vmatpush.msra.mxu0 0.0
    %2571 = vmatpush.msra.mxu0 0.0
    %2572 = vmatpush.msra.mxu0 0.0
    %2573 = vmatpush.msra.mxu0 0.0
    %2574 = vmatpush.msra.mxu0 0.0
    %2575 = vmatpush.msra.mxu0 0.0
    %2576 = vmatpush.msra.mxu0 0.0
    %v2577 = vand.u32 %v19, 4294901760
    %2578 = vmatpush.msra.mxu0 %v2577
    %v2579 = vand.u32 %v18, 4294901760
    %2580 = vmatpush.msra.mxu0 %v2579
    %v2581 = vand.u32 %v17, 4294901760
    %2582 = vmatpush.msra.mxu0 %v2581
    %v2583 = vand.u32 %v16, 4294901760
    %2584 = vmatpush.msra.mxu0 %v2583
    %v2585 = vand.u32 %v15, 4294901760
    %2586 = vmatpush.msra.mxu0 %v2585
    %v2587 = vand.u32 %v2564, 4294901760
    %v2588 = vsub.f32 %v2564, %v2587
    %v2589 = vand.u32 %v2588, 4294901760
    %v2590 = vsub.f32 %v2588, %v2589
    %v2591 = vand.u32 %v2590, 4294901760
    %2592 = vmatmul.f32.gmra.mxu0 %v2591
    %v2593 = vpop.f32.mrf.mxu0
    %v2594 = vadd.f32 %v26, %v2593
    %2595 = vdwg.mxu0
    %2596 = vmatpush.msra.mxu0 0.0
    %2597 = vmatpush.msra.mxu0 0.0
    %2598 = vmatpush.msra.mxu0 0.0
    %2599 = vmatpush.msra.mxu0 0.0
    %2600 = vmatpush.msra.mxu0 0.0
    %2601 = vmatpush.msra.mxu0 0.0
    %2602 = vmatpush.msra.mxu0 0.0
    %2603 = vmatpush.msra.mxu0 0.0
    %2604 = vmatpush.msra.mxu0 0.0
    %2605 = vmatpush.msra.mxu0 0.0
    %2606 = vmatpush.msra.mxu0 0.0
    %v2607 = vand.u32 %v19, 4294901760
    %v2608 = vsub.f32 %v19, %v2607
    %v2609 = vand.u32 %v2608, 4294901760
    %v2610 = vsub.f32 %v2608, %v2609
    %v2611 = vand.u32 %v2610, 4294901760
    %2612 = vmatpush.msra.mxu0 %v2611
    %v2613 = vand.u32 %v18, 4294901760
    %v2614 = vsub.f32 %v18, %v2613
    %v2615 = vand.u32 %v2614, 4294901760
    %v2616 = vsub.f32 %v2614, %v2615
    %v2617 = vand.u32 %v2616, 4294901760
    %2618 = vmatpush.msra.mxu0 %v2617
    %v2619 = vand.u32 %v17, 4294901760
    %v2620 = vsub.f32 %v17, %v2619
    %v2621 = vand.u32 %v2620, 4294901760
    %v2622 = vsub.f32 %v2620, %v2621
    %v2623 = vand.u32 %v2622, 4294901760
    %2624 = vmatpush.msra.mxu0 %v2623
    %v2625 = vand.u32 %v16, 4294901760
    %v2626 = vsub.f32 %v16, %v2625
    %v2627 = vand.u32 %v2626, 4294901760
    %v2628 = vsub.f32 %v2626, %v2627
    %v2629 = vand.u32 %v2628, 4294901760
    %2630 = vmatpush.msra.mxu0 %v2629
    %v2631 = vand.u32 %v15, 4294901760
    %v2632 = vsub.f32 %v15, %v2631
    %v2633 = vand.u32 %v2632, 4294901760
    %v2634 = vsub.f32 %v2632, %v2633
    %v2635 = vand.u32 %v2634, 4294901760
    %2636 = vmatpush.msra.mxu0 %v2635
    %v2637 = vand.u32 %v2564, 4294901760
    %2638 = vmatmul.f32.gmra.mxu0 %v2637
    %v2639 = vpop.f32.mrf.mxu0
    %v2640 = vadd.f32 %v2594, %v2639
    %2641 = vdwg.mxu0
    %2642 = vmatpush.msra.mxu0 0.0
    %2643 = vmatpush.msra.mxu0 0.0
    %2644 = vmatpush.msra.mxu0 0.0
    %2645 = vmatpush.msra.mxu0 0.0
    %2646 = vmatpush.msra.mxu0 0.0
    %2647 = vmatpush.msra.mxu0 0.0
    %2648 = vmatpush.msra.mxu0 0.0
    %2649 = vmatpush.msra.mxu0 0.0
    %2650 = vmatpush.msra.mxu0 0.0
    %2651 = vmatpush.msra.mxu0 0.0
    %2652 = vmatpush.msra.mxu0 0.0
    %v2653 = vand.u32 %v19, 4294901760
    %v2654 = vsub.f32 %v19, %v2653
    %2655 = vmatpush.msra.mxu0 %v2654
    %v2656 = vand.u32 %v18, 4294901760
    %v2657 = vsub.f32 %v18, %v2656
    %2658 = vmatpush.msra.mxu0 %v2657
    %v2659 = vand.u32 %v17, 4294901760
    %v2660 = vsub.f32 %v17, %v2659
    %2661 = vmatpush.msra.mxu0 %v2660
    %v2662 = vand.u32 %v16, 4294901760
    %v2663 = vsub.f32 %v16, %v2662
    %2664 = vmatpush.msra.mxu0 %v2663
    %v2665 = vand.u32 %v15, 4294901760
    %v2666 = vsub.f32 %v15, %v2665
    %2667 = vmatpush.msra.mxu0 %v2666
    %v2668 = vand.u32 %v2564, 4294901760
    %v2669 = vsub.f32 %v2564, %v2668
    %2670 = vmatmul.f32.gmra.mxu0 %v2669
    %v2671 = vpop.f32.mrf.mxu0
    %v2672 = vadd.f32 %v2640, %v2671
    %2673 = vdwg.mxu0
    %2674 = vmatpush.msra.mxu0 0.0
    %2675 = vmatpush.msra.mxu0 0.0
    %2676 = vmatpush.msra.mxu0 0.0
    %2677 = vmatpush.msra.mxu0 0.0
    %2678 = vmatpush.msra.mxu0 0.0
    %2679 = vmatpush.msra.mxu0 0.0
    %2680 = vmatpush.msra.mxu0 0.0
    %2681 = vmatpush.msra.mxu0 0.0
    %2682 = vmatpush.msra.mxu0 0.0
    %2683 = vmatpush.msra.mxu0 0.0
    %2684 = vmatpush.msra.mxu0 0.0
    %v2685 = vand.u32 %v19, 4294901760
    %2686 = vmatpush.msra.mxu0 %v2685
    %v2687 = vand.u32 %v18, 4294901760
    %2688 = vmatpush.msra.mxu0 %v2687
    %v2689 = vand.u32 %v17, 4294901760
    %2690 = vmatpush.msra.mxu0 %v2689
    %v2691 = vand.u32 %v16, 4294901760
    %2692 = vmatpush.msra.mxu0 %v2691
    %v2693 = vand.u32 %v15, 4294901760
    %2694 = vmatpush.msra.mxu0 %v2693
    %v2695 = vand.u32 %v2564, 4294901760
    %v2696 = vsub.f32 %v2564, %v2695
    %v2697 = vand.u32 %v2696, 4294901760
    %2698 = vmatmul.f32.gmra.mxu0 %v2697
    %v2699 = vpop.f32.mrf.mxu0
    %v2700 = vadd.f32 %v2672, %v2699
    %2701 = vdwg.mxu0
    %2702 = vmatpush.msra.mxu0 0.0
    %2703 = vmatpush.msra.mxu0 0.0
    %2704 = vmatpush.msra.mxu0 0.0
    %2705 = vmatpush.msra.mxu0 0.0
    %2706 = vmatpush.msra.mxu0 0.0
    %2707 = vmatpush.msra.mxu0 0.0
    %2708 = vmatpush.msra.mxu0 0.0
    %2709 = vmatpush.msra.mxu0 0.0
    %2710 = vmatpush.msra.mxu0 0.0
    %2711 = vmatpush.msra.mxu0 0.0
    %2712 = vmatpush.msra.mxu0 0.0
    %v2713 = vand.u32 %v19, 4294901760
    %v2714 = vsub.f32 %v19, %v2713
    %v2715 = vand.u32 %v2714, 4294901760
    %2716 = vmatpush.msra.mxu0 %v2715
    %v2717 = vand.u32 %v18, 4294901760
    %v2718 = vsub.f32 %v18, %v2717
    %v2719 = vand.u32 %v2718, 4294901760
    %2720 = vmatpush.msra.mxu0 %v2719
    %v2721 = vand.u32 %v17, 4294901760
    %v2722 = vsub.f32 %v17, %v2721
    %v2723 = vand.u32 %v2722, 4294901760
    %2724 = vmatpush.msra.mxu0 %v2723
    %v2725 = vand.u32 %v16, 4294901760
    %v2726 = vsub.f32 %v16, %v2725
    %v2727 = vand.u32 %v2726, 4294901760
    %2728 = vmatpush.msra.mxu0 %v2727
    %v2729 = vand.u32 %v15, 4294901760
    %v2730 = vsub.f32 %v15, %v2729
    %v2731 = vand.u32 %v2730, 4294901760
    %2732 = vmatpush.msra.mxu0 %v2731
    %v2733 = vand.u32 %v2564, 4294901760
    %2734 = vmatmul.f32.gmra.mxu0 %v2733
    %v2735 = vpop.f32.mrf.mxu0
    %v2736 = vadd.f32 %v2700, %v2735
    %2737 = vdwg.mxu0
    %2738 = vmatpush.msra.mxu0 0.0
    %2739 = vmatpush.msra.mxu0 0.0
    %2740 = vmatpush.msra.mxu0 0.0
    %2741 = vmatpush.msra.mxu0 0.0
    %2742 = vmatpush.msra.mxu0 0.0
    %2743 = vmatpush.msra.mxu0 0.0
    %2744 = vmatpush.msra.mxu0 0.0
    %2745 = vmatpush.msra.mxu0 0.0
    %2746 = vmatpush.msra.mxu0 0.0
    %2747 = vmatpush.msra.mxu0 0.0
    %2748 = vmatpush.msra.mxu0 0.0
    %v2749 = vand.u32 %v19, 4294901760
    %2750 = vmatpush.msra.mxu0 %v2749
    %v2751 = vand.u32 %v18, 4294901760
    %2752 = vmatpush.msra.mxu0 %v2751
    %v2753 = vand.u32 %v17, 4294901760
    %2754 = vmatpush.msra.mxu0 %v2753
    %v2755 = vand.u32 %v16, 4294901760
    %2756 = vmatpush.msra.mxu0 %v2755
    %v2757 = vand.u32 %v15, 4294901760
    %2758 = vmatpush.msra.mxu0 %v2757
    %v2759 = vand.u32 %v2564, 4294901760
    %2760 = vmatmul.f32.gmra.mxu0 %v2759
    %v2761 = vpop.f32.mrf.mxu0
    %v2762 = vadd.f32 %v2736, %v2761
    %2763 = vdwg.mxu0
    %v2765 = vrot.slane %v2762, 4
    %v2767 = vadd.f32 %v370, %v2765
    %v2768 = vmul.f32 %v2554, 0.5
    %v2769 = vsub.f32 %v2550, %v2768
    %v2770 = vmul.f32 %v2769, %v21
    %v2772 = vrot.slane %v2767, 4
    %v2774 = vadd.f32 %v2770, %v2772
    %v2775 = vadd.f32 %v2774, %v2562
    %2777 = vrot.lane.b32.xlu0 %v2775, 93
    %v2778 = vpop.permute.xlu0 %2777
    %2780 = vrot.lane.b32.xlu0 %v2775, 5
    %v2781 = vpop.permute.xlu0 %2780
    %v2783 = vsel %vm592, %v2778, %v2781
    %vm2784 = vcmp.lt.f32.partialorder %v2783, %v2775
    %v2785 = vsel %vm2784, 1, 0
    %v2786 = vcvt.s32.f32 %v2785
    %2787 = vrot.lane.b32.xlu0 %v2775, 98
    %v2788 = vpop.permute.xlu0 %2787
    %2790 = vrot.lane.b32.xlu0 %v2775, 10
    %v2791 = vpop.permute.xlu0 %2790
    %v2793 = vsel %vm603, %v2788, %v2791
    %vm2794 = vcmp.lt.f32.partialorder %v2793, %v2775
    %v2795 = vsel %vm2794, 1, 0
    %v2796 = vcvt.s32.f32 %v2795
    %v2797 = vadd.f32 %v2786, %v2796
    %2798 = vrot.lane.b32.xlu0 %v2775, 103
    %v2799 = vpop.permute.xlu0 %2798
    %2801 = vrot.lane.b32.xlu0 %v2775, 15
    %v2802 = vpop.permute.xlu0 %2801
    %v2804 = vsel %vm615, %v2799, %v2802
    %vm2805 = vcmp.lt.f32.partialorder %v2804, %v2775
    %v2806 = vsel %vm2805, 1, 0
    %v2807 = vcvt.s32.f32 %v2806
    %v2808 = vadd.f32 %v2797, %v2807
    %2809 = vrot.lane.b32.xlu0 %v2775, 108
    %v2810 = vpop.permute.xlu0 %2809
    %2812 = vrot.lane.b32.xlu0 %v2775, 20
    %v2813 = vpop.permute.xlu0 %2812
    %v2815 = vsel %vm627, %v2810, %v2813
    %vm2816 = vcmp.lt.f32.partialorder %v2815, %v2775
    %v2817 = vsel %vm2816, 1, 0
    %v2818 = vcvt.s32.f32 %v2817
    %v2819 = vadd.f32 %v2808, %v2818
    %2820 = vrot.lane.b32.xlu0 %v2775, 113
    %v2821 = vpop.permute.xlu0 %2820
    %2823 = vrot.lane.b32.xlu0 %v2775, 25
    %v2824 = vpop.permute.xlu0 %2823
    %v2826 = vsel %vm639, %v2821, %v2824
    %vm2827 = vcmp.lt.f32.partialorder %v2826, %v2775
    %v2828 = vsel %vm2827, 1, 0
    %v2829 = vcvt.s32.f32 %v2828
    %v2830 = vadd.f32 %v2819, %v2829
    %2831 = vrot.lane.b32.xlu0 %v2775, 118
    %v2832 = vpop.permute.xlu0 %2831
    %2834 = vrot.lane.b32.xlu0 %v2775, 30
    %v2835 = vpop.permute.xlu0 %2834
    %v2837 = vsel %vm651, %v2832, %v2835
    %vm2838 = vcmp.lt.f32.partialorder %v2837, %v2775
    %v2839 = vsel %vm2838, 1, 0
    %v2840 = vcvt.s32.f32 %v2839
    %v2841 = vadd.f32 %v2830, %v2840
    %2842 = vrot.lane.b32.xlu0 %v2775, 123
    %v2843 = vpop.permute.xlu0 %2842
    %2845 = vrot.lane.b32.xlu0 %v2775, 35
    %v2846 = vpop.permute.xlu0 %2845
    %v2848 = vsel %vm663, %v2843, %v2846
    %vm2849 = vcmp.lt.f32.partialorder %v2848, %v2775
    %v2850 = vsel %vm2849, 1, 0
    %v2851 = vcvt.s32.f32 %v2850
    %v2852 = vadd.f32 %v2841, %v2851
    %vm2853 = vcmp.le.f32.partialorder %v2852, 5.0
    %v2854 = vsel %vm2853, %v2775, -1e+30
    %2856 = vrot.lane.b32.xlu0 %v2854, 93
    %v2857 = vpop.permute.xlu0 %2856
    %2859 = vrot.lane.b32.xlu0 %v2854, 5
    %v2860 = vpop.permute.xlu0 %2859
    %v2862 = vsel %vm592, %v2857, %v2860
    %v2863 = vmax.f32 %v2854, %v2862
    %2865 = vrot.lane.b32.xlu0 %v2863, 98
    %v2866 = vpop.permute.xlu0 %2865
    %2868 = vrot.lane.b32.xlu0 %v2863, 10
    %v2869 = vpop.permute.xlu0 %2868
    %v2871 = vsel %vm603, %v2866, %v2869
    %v2872 = vmax.f32 %v2863, %v2871
    %2874 = vrot.lane.b32.xlu0 %v2872, 108
    %v2875 = vpop.permute.xlu0 %2874
    %2877 = vrot.lane.b32.xlu0 %v2872, 20
    %v2878 = vpop.permute.xlu0 %2877
    %v2880 = vsel %vm627, %v2875, %v2878
    %v2881 = vmax.f32 %v2872, %v2880
    %vm2882 = vcmp.le.f32.partialorder %v2852, 6.0
    %v2883 = vsel %vm2882, %v2775, -1e+30
    %2885 = vrot.lane.b32.xlu0 %v2883, 93
    %v2886 = vpop.permute.xlu0 %2885
    %2888 = vrot.lane.b32.xlu0 %v2883, 5
    %v2889 = vpop.permute.xlu0 %2888
    %v2891 = vsel %vm592, %v2886, %v2889
    %v2892 = vmax.f32 %v2883, %v2891
    %2894 = vrot.lane.b32.xlu0 %v2892, 98
    %v2895 = vpop.permute.xlu0 %2894
    %2897 = vrot.lane.b32.xlu0 %v2892, 10
    %v2898 = vpop.permute.xlu0 %2897
    %v2900 = vsel %vm603, %v2895, %v2898
    %v2901 = vmax.f32 %v2892, %v2900
    %2903 = vrot.lane.b32.xlu0 %v2901, 108
    %v2904 = vpop.permute.xlu0 %2903
    %2906 = vrot.lane.b32.xlu0 %v2901, 20
    %v2907 = vpop.permute.xlu0 %2906
    %v2909 = vsel %vm627, %v2904, %v2907
    %v2910 = vmax.f32 %v2901, %v2909
    %v2911 = vsub.f32 %v2910, %v2881
    %v2912 = vmul.f32 %v2911, 0.6
    %v2913 = vadd.f32 %v2881, %v2912
    %v2914 = vsub.f32 %v2775, %v2913
    %v2915 = vmax.f32 %v2914, 0.0
    %v2916 = vsub.f32 %v2915, %v2561
    %vm2917 = vcmp.gt.f32.partialorder %v2916, 0.0
    %v2918 = vsel %vm2917, 1, 0
    %v2919 = vcvt.s32.f32 %v2918
    %v2920 = vmul.f32 %v2556, %v23
    %v2921 = vadd.f32 %v2920, %v2919
    %v2922 = vmul.f32 %v2558, %v25
    %v2923 = vadd.f32 %v2922, %v2919
    %v2924 = vadd.f32 %v2559, %v2919
    %v2925 = vmul.f32 %v2921, %v22
    %v2926 = vadd.f32 %v2925, 0.5
    %v2927 = vmul.f32 %v2923, %v24
    %v2929 = vsel %vm379, %v2919, 0
    %2931 = vmatpush.msra.mxu0 0.0
    %2932 = vmatpush.msra.mxu0 0.0
    %2933 = vmatpush.msra.mxu0 0.0
    %2934 = vmatpush.msra.mxu0 0.0
    %2935 = vmatpush.msra.mxu0 0.0
    %2936 = vmatpush.msra.mxu0 0.0
    %2937 = vmatpush.msra.mxu0 0.0
    %2938 = vmatpush.msra.mxu0 0.0
    %2939 = vmatpush.msra.mxu0 0.0
    %2940 = vmatpush.msra.mxu0 0.0
    %2941 = vmatpush.msra.mxu0 0.0
    %v2942 = vand.u32 %v19, 4294901760
    %2943 = vmatpush.msra.mxu0 %v2942
    %v2944 = vand.u32 %v18, 4294901760
    %2945 = vmatpush.msra.mxu0 %v2944
    %v2946 = vand.u32 %v17, 4294901760
    %2947 = vmatpush.msra.mxu0 %v2946
    %v2948 = vand.u32 %v16, 4294901760
    %2949 = vmatpush.msra.mxu0 %v2948
    %v2950 = vand.u32 %v15, 4294901760
    %2951 = vmatpush.msra.mxu0 %v2950
    %v2952 = vand.u32 %v2929, 4294901760
    %v2953 = vsub.f32 %v2929, %v2952
    %v2954 = vand.u32 %v2953, 4294901760
    %v2955 = vsub.f32 %v2953, %v2954
    %v2956 = vand.u32 %v2955, 4294901760
    %2957 = vmatmul.f32.gmra.mxu0 %v2956
    %v2958 = vpop.f32.mrf.mxu0
    %v2959 = vadd.f32 %v26, %v2958
    %2960 = vdwg.mxu0
    %2961 = vmatpush.msra.mxu0 0.0
    %2962 = vmatpush.msra.mxu0 0.0
    %2963 = vmatpush.msra.mxu0 0.0
    %2964 = vmatpush.msra.mxu0 0.0
    %2965 = vmatpush.msra.mxu0 0.0
    %2966 = vmatpush.msra.mxu0 0.0
    %2967 = vmatpush.msra.mxu0 0.0
    %2968 = vmatpush.msra.mxu0 0.0
    %2969 = vmatpush.msra.mxu0 0.0
    %2970 = vmatpush.msra.mxu0 0.0
    %2971 = vmatpush.msra.mxu0 0.0
    %v2972 = vand.u32 %v19, 4294901760
    %v2973 = vsub.f32 %v19, %v2972
    %v2974 = vand.u32 %v2973, 4294901760
    %v2975 = vsub.f32 %v2973, %v2974
    %v2976 = vand.u32 %v2975, 4294901760
    %2977 = vmatpush.msra.mxu0 %v2976
    %v2978 = vand.u32 %v18, 4294901760
    %v2979 = vsub.f32 %v18, %v2978
    %v2980 = vand.u32 %v2979, 4294901760
    %v2981 = vsub.f32 %v2979, %v2980
    %v2982 = vand.u32 %v2981, 4294901760
    %2983 = vmatpush.msra.mxu0 %v2982
    %v2984 = vand.u32 %v17, 4294901760
    %v2985 = vsub.f32 %v17, %v2984
    %v2986 = vand.u32 %v2985, 4294901760
    %v2987 = vsub.f32 %v2985, %v2986
    %v2988 = vand.u32 %v2987, 4294901760
    %2989 = vmatpush.msra.mxu0 %v2988
    %v2990 = vand.u32 %v16, 4294901760
    %v2991 = vsub.f32 %v16, %v2990
    %v2992 = vand.u32 %v2991, 4294901760
    %v2993 = vsub.f32 %v2991, %v2992
    %v2994 = vand.u32 %v2993, 4294901760
    %2995 = vmatpush.msra.mxu0 %v2994
    %v2996 = vand.u32 %v15, 4294901760
    %v2997 = vsub.f32 %v15, %v2996
    %v2998 = vand.u32 %v2997, 4294901760
    %v2999 = vsub.f32 %v2997, %v2998
    %v3000 = vand.u32 %v2999, 4294901760
    %3001 = vmatpush.msra.mxu0 %v3000
    %v3002 = vand.u32 %v2929, 4294901760
    %3003 = vmatmul.f32.gmra.mxu0 %v3002
    %v3004 = vpop.f32.mrf.mxu0
    %v3005 = vadd.f32 %v2959, %v3004
    %3006 = vdwg.mxu0
    %3007 = vmatpush.msra.mxu0 0.0
    %3008 = vmatpush.msra.mxu0 0.0
    %3009 = vmatpush.msra.mxu0 0.0
    %3010 = vmatpush.msra.mxu0 0.0
    %3011 = vmatpush.msra.mxu0 0.0
    %3012 = vmatpush.msra.mxu0 0.0
    %3013 = vmatpush.msra.mxu0 0.0
    %3014 = vmatpush.msra.mxu0 0.0
    %3015 = vmatpush.msra.mxu0 0.0
    %3016 = vmatpush.msra.mxu0 0.0
    %3017 = vmatpush.msra.mxu0 0.0
    %v3018 = vand.u32 %v19, 4294901760
    %v3019 = vsub.f32 %v19, %v3018
    %3020 = vmatpush.msra.mxu0 %v3019
    %v3021 = vand.u32 %v18, 4294901760
    %v3022 = vsub.f32 %v18, %v3021
    %3023 = vmatpush.msra.mxu0 %v3022
    %v3024 = vand.u32 %v17, 4294901760
    %v3025 = vsub.f32 %v17, %v3024
    %3026 = vmatpush.msra.mxu0 %v3025
    %v3027 = vand.u32 %v16, 4294901760
    %v3028 = vsub.f32 %v16, %v3027
    %3029 = vmatpush.msra.mxu0 %v3028
    %v3030 = vand.u32 %v15, 4294901760
    %v3031 = vsub.f32 %v15, %v3030
    %3032 = vmatpush.msra.mxu0 %v3031
    %v3033 = vand.u32 %v2929, 4294901760
    %v3034 = vsub.f32 %v2929, %v3033
    %3035 = vmatmul.f32.gmra.mxu0 %v3034
    %v3036 = vpop.f32.mrf.mxu0
    %v3037 = vadd.f32 %v3005, %v3036
    %3038 = vdwg.mxu0
    %3039 = vmatpush.msra.mxu0 0.0
    %3040 = vmatpush.msra.mxu0 0.0
    %3041 = vmatpush.msra.mxu0 0.0
    %3042 = vmatpush.msra.mxu0 0.0
    %3043 = vmatpush.msra.mxu0 0.0
    %3044 = vmatpush.msra.mxu0 0.0
    %3045 = vmatpush.msra.mxu0 0.0
    %3046 = vmatpush.msra.mxu0 0.0
    %3047 = vmatpush.msra.mxu0 0.0
    %3048 = vmatpush.msra.mxu0 0.0
    %3049 = vmatpush.msra.mxu0 0.0
    %v3050 = vand.u32 %v19, 4294901760
    %3051 = vmatpush.msra.mxu0 %v3050
    %v3052 = vand.u32 %v18, 4294901760
    %3053 = vmatpush.msra.mxu0 %v3052
    %v3054 = vand.u32 %v17, 4294901760
    %3055 = vmatpush.msra.mxu0 %v3054
    %v3056 = vand.u32 %v16, 4294901760
    %3057 = vmatpush.msra.mxu0 %v3056
    %v3058 = vand.u32 %v15, 4294901760
    %3059 = vmatpush.msra.mxu0 %v3058
    %v3060 = vand.u32 %v2929, 4294901760
    %v3061 = vsub.f32 %v2929, %v3060
    %v3062 = vand.u32 %v3061, 4294901760
    %3063 = vmatmul.f32.gmra.mxu0 %v3062
    %v3064 = vpop.f32.mrf.mxu0
    %v3065 = vadd.f32 %v3037, %v3064
    %3066 = vdwg.mxu0
    %3067 = vmatpush.msra.mxu0 0.0
    %3068 = vmatpush.msra.mxu0 0.0
    %3069 = vmatpush.msra.mxu0 0.0
    %3070 = vmatpush.msra.mxu0 0.0
    %3071 = vmatpush.msra.mxu0 0.0
    %3072 = vmatpush.msra.mxu0 0.0
    %3073 = vmatpush.msra.mxu0 0.0
    %3074 = vmatpush.msra.mxu0 0.0
    %3075 = vmatpush.msra.mxu0 0.0
    %3076 = vmatpush.msra.mxu0 0.0
    %3077 = vmatpush.msra.mxu0 0.0
    %v3078 = vand.u32 %v19, 4294901760
    %v3079 = vsub.f32 %v19, %v3078
    %v3080 = vand.u32 %v3079, 4294901760
    %3081 = vmatpush.msra.mxu0 %v3080
    %v3082 = vand.u32 %v18, 4294901760
    %v3083 = vsub.f32 %v18, %v3082
    %v3084 = vand.u32 %v3083, 4294901760
    %3085 = vmatpush.msra.mxu0 %v3084
    %v3086 = vand.u32 %v17, 4294901760
    %v3087 = vsub.f32 %v17, %v3086
    %v3088 = vand.u32 %v3087, 4294901760
    %3089 = vmatpush.msra.mxu0 %v3088
    %v3090 = vand.u32 %v16, 4294901760
    %v3091 = vsub.f32 %v16, %v3090
    %v3092 = vand.u32 %v3091, 4294901760
    %3093 = vmatpush.msra.mxu0 %v3092
    %v3094 = vand.u32 %v15, 4294901760
    %v3095 = vsub.f32 %v15, %v3094
    %v3096 = vand.u32 %v3095, 4294901760
    %3097 = vmatpush.msra.mxu0 %v3096
    %v3098 = vand.u32 %v2929, 4294901760
    %3099 = vmatmul.f32.gmra.mxu0 %v3098
    %v3100 = vpop.f32.mrf.mxu0
    %v3101 = vadd.f32 %v3065, %v3100
    %3102 = vdwg.mxu0
    %3103 = vmatpush.msra.mxu0 0.0
    %3104 = vmatpush.msra.mxu0 0.0
    %3105 = vmatpush.msra.mxu0 0.0
    %3106 = vmatpush.msra.mxu0 0.0
    %3107 = vmatpush.msra.mxu0 0.0
    %3108 = vmatpush.msra.mxu0 0.0
    %3109 = vmatpush.msra.mxu0 0.0
    %3110 = vmatpush.msra.mxu0 0.0
    %3111 = vmatpush.msra.mxu0 0.0
    %3112 = vmatpush.msra.mxu0 0.0
    %3113 = vmatpush.msra.mxu0 0.0
    %v3114 = vand.u32 %v19, 4294901760
    %3115 = vmatpush.msra.mxu0 %v3114
    %v3116 = vand.u32 %v18, 4294901760
    %3117 = vmatpush.msra.mxu0 %v3116
    %v3118 = vand.u32 %v17, 4294901760
    %3119 = vmatpush.msra.mxu0 %v3118
    %v3120 = vand.u32 %v16, 4294901760
    %3121 = vmatpush.msra.mxu0 %v3120
    %v3122 = vand.u32 %v15, 4294901760
    %3123 = vmatpush.msra.mxu0 %v3122
    %v3124 = vand.u32 %v2929, 4294901760
    %3125 = vmatmul.f32.gmra.mxu0 %v3124
    %v3126 = vpop.f32.mrf.mxu0
    %v3127 = vadd.f32 %v3101, %v3126
    %3128 = vdwg.mxu0
    %v3130 = vrot.slane %v3127, 2
    %v3132 = vadd.f32 %v370, %v3130
    %v3133 = vmul.f32 %v2919, 0.5
    %v3134 = vsub.f32 %v2915, %v3133
    %v3135 = vmul.f32 %v3134, %v21
    %v3137 = vrot.slane %v3132, 6
    %v3139 = vadd.f32 %v3135, %v3137
    %v3140 = vadd.f32 %v3139, %v2927
    %3142 = vrot.lane.b32.xlu0 %v3140, 93
    %v3143 = vpop.permute.xlu0 %3142
    %3145 = vrot.lane.b32.xlu0 %v3140, 5
    %v3146 = vpop.permute.xlu0 %3145
    %v3148 = vsel %vm592, %v3143, %v3146
    %vm3149 = vcmp.lt.f32.partialorder %v3148, %v3140
    %v3150 = vsel %vm3149, 1, 0
    %v3151 = vcvt.s32.f32 %v3150
    %3152 = vrot.lane.b32.xlu0 %v3140, 98
    %v3153 = vpop.permute.xlu0 %3152
    %3155 = vrot.lane.b32.xlu0 %v3140, 10
    %v3156 = vpop.permute.xlu0 %3155
    %v3158 = vsel %vm603, %v3153, %v3156
    %vm3159 = vcmp.lt.f32.partialorder %v3158, %v3140
    %v3160 = vsel %vm3159, 1, 0
    %v3161 = vcvt.s32.f32 %v3160
    %v3162 = vadd.f32 %v3151, %v3161
    %3163 = vrot.lane.b32.xlu0 %v3140, 103
    %v3164 = vpop.permute.xlu0 %3163
    %3166 = vrot.lane.b32.xlu0 %v3140, 15
    %v3167 = vpop.permute.xlu0 %3166
    %v3169 = vsel %vm615, %v3164, %v3167
    %vm3170 = vcmp.lt.f32.partialorder %v3169, %v3140
    %v3171 = vsel %vm3170, 1, 0
    %v3172 = vcvt.s32.f32 %v3171
    %v3173 = vadd.f32 %v3162, %v3172
    %3174 = vrot.lane.b32.xlu0 %v3140, 108
    %v3175 = vpop.permute.xlu0 %3174
    %3177 = vrot.lane.b32.xlu0 %v3140, 20
    %v3178 = vpop.permute.xlu0 %3177
    %v3180 = vsel %vm627, %v3175, %v3178
    %vm3181 = vcmp.lt.f32.partialorder %v3180, %v3140
    %v3182 = vsel %vm3181, 1, 0
    %v3183 = vcvt.s32.f32 %v3182
    %v3184 = vadd.f32 %v3173, %v3183
    %3185 = vrot.lane.b32.xlu0 %v3140, 113
    %v3186 = vpop.permute.xlu0 %3185
    %3188 = vrot.lane.b32.xlu0 %v3140, 25
    %v3189 = vpop.permute.xlu0 %3188
    %v3191 = vsel %vm639, %v3186, %v3189
    %vm3192 = vcmp.lt.f32.partialorder %v3191, %v3140
    %v3193 = vsel %vm3192, 1, 0
    %v3194 = vcvt.s32.f32 %v3193
    %v3195 = vadd.f32 %v3184, %v3194
    %3196 = vrot.lane.b32.xlu0 %v3140, 118
    %v3197 = vpop.permute.xlu0 %3196
    %3199 = vrot.lane.b32.xlu0 %v3140, 30
    %v3200 = vpop.permute.xlu0 %3199
    %v3202 = vsel %vm651, %v3197, %v3200
    %vm3203 = vcmp.lt.f32.partialorder %v3202, %v3140
    %v3204 = vsel %vm3203, 1, 0
    %v3205 = vcvt.s32.f32 %v3204
    %v3206 = vadd.f32 %v3195, %v3205
    %3207 = vrot.lane.b32.xlu0 %v3140, 123
    %v3208 = vpop.permute.xlu0 %3207
    %3210 = vrot.lane.b32.xlu0 %v3140, 35
    %v3211 = vpop.permute.xlu0 %3210
    %v3213 = vsel %vm663, %v3208, %v3211
    %vm3214 = vcmp.lt.f32.partialorder %v3213, %v3140
    %v3215 = vsel %vm3214, 1, 0
    %v3216 = vcvt.s32.f32 %v3215
    %v3217 = vadd.f32 %v3206, %v3216
    %vm3218 = vcmp.le.f32.partialorder %v3217, 5.0
    %v3219 = vsel %vm3218, %v3140, -1e+30
    %3221 = vrot.lane.b32.xlu0 %v3219, 93
    %v3222 = vpop.permute.xlu0 %3221
    %3224 = vrot.lane.b32.xlu0 %v3219, 5
    %v3225 = vpop.permute.xlu0 %3224
    %v3227 = vsel %vm592, %v3222, %v3225
    %v3228 = vmax.f32 %v3219, %v3227
    %3230 = vrot.lane.b32.xlu0 %v3228, 98
    %v3231 = vpop.permute.xlu0 %3230
    %3233 = vrot.lane.b32.xlu0 %v3228, 10
    %v3234 = vpop.permute.xlu0 %3233
    %v3236 = vsel %vm603, %v3231, %v3234
    %v3237 = vmax.f32 %v3228, %v3236
    %3239 = vrot.lane.b32.xlu0 %v3237, 108
    %v3240 = vpop.permute.xlu0 %3239
    %3242 = vrot.lane.b32.xlu0 %v3237, 20
    %v3243 = vpop.permute.xlu0 %3242
    %v3245 = vsel %vm627, %v3240, %v3243
    %v3246 = vmax.f32 %v3237, %v3245
    %vm3247 = vcmp.le.f32.partialorder %v3217, 6.0
    %v3248 = vsel %vm3247, %v3140, -1e+30
    %3250 = vrot.lane.b32.xlu0 %v3248, 93
    %v3251 = vpop.permute.xlu0 %3250
    %3253 = vrot.lane.b32.xlu0 %v3248, 5
    %v3254 = vpop.permute.xlu0 %3253
    %v3256 = vsel %vm592, %v3251, %v3254
    %v3257 = vmax.f32 %v3248, %v3256
    %3259 = vrot.lane.b32.xlu0 %v3257, 98
    %v3260 = vpop.permute.xlu0 %3259
    %3262 = vrot.lane.b32.xlu0 %v3257, 10
    %v3263 = vpop.permute.xlu0 %3262
    %v3265 = vsel %vm603, %v3260, %v3263
    %v3266 = vmax.f32 %v3257, %v3265
    %3268 = vrot.lane.b32.xlu0 %v3266, 108
    %v3269 = vpop.permute.xlu0 %3268
    %3271 = vrot.lane.b32.xlu0 %v3266, 20
    %v3272 = vpop.permute.xlu0 %3271
    %v3274 = vsel %vm627, %v3269, %v3272
    %v3275 = vmax.f32 %v3266, %v3274
    %v3276 = vsub.f32 %v3275, %v3246
    %v3277 = vmul.f32 %v3276, 0.6
    %v3278 = vadd.f32 %v3246, %v3277
    %v3279 = vsub.f32 %v3140, %v3278
    %v3280 = vmax.f32 %v3279, 0.0
    %v3281 = vsub.f32 %v3280, %v2926
    %vm3282 = vcmp.gt.f32.partialorder %v3281, 0.0
    %v3283 = vsel %vm3282, 1, 0
    %v3284 = vcvt.s32.f32 %v3283
    %v3285 = vmul.f32 %v2921, %v23
    %v3286 = vadd.f32 %v3285, %v3284
    %v3287 = vmul.f32 %v2923, %v25
    %v3288 = vadd.f32 %v3287, %v3284
    %v3289 = vadd.f32 %v2924, %v3284
    %v3290 = vmul.f32 %v3286, %v22
    %v3291 = vadd.f32 %v3290, 0.5
    %v3292 = vmul.f32 %v3288, %v24
    %v3294 = vsel %vm379, %v3284, 0
    %3296 = vmatpush.msra.mxu0 0.0
    %3297 = vmatpush.msra.mxu0 0.0
    %3298 = vmatpush.msra.mxu0 0.0
    %3299 = vmatpush.msra.mxu0 0.0
    %3300 = vmatpush.msra.mxu0 0.0
    %3301 = vmatpush.msra.mxu0 0.0
    %3302 = vmatpush.msra.mxu0 0.0
    %3303 = vmatpush.msra.mxu0 0.0
    %3304 = vmatpush.msra.mxu0 0.0
    %3305 = vmatpush.msra.mxu0 0.0
    %3306 = vmatpush.msra.mxu0 0.0
    %v3307 = vand.u32 %v19, 4294901760
    %3308 = vmatpush.msra.mxu0 %v3307
    %v3309 = vand.u32 %v18, 4294901760
    %3310 = vmatpush.msra.mxu0 %v3309
    %v3311 = vand.u32 %v17, 4294901760
    %3312 = vmatpush.msra.mxu0 %v3311
    %v3313 = vand.u32 %v16, 4294901760
    %3314 = vmatpush.msra.mxu0 %v3313
    %v3315 = vand.u32 %v15, 4294901760
    %3316 = vmatpush.msra.mxu0 %v3315
    %v3317 = vand.u32 %v3294, 4294901760
    %v3318 = vsub.f32 %v3294, %v3317
    %v3319 = vand.u32 %v3318, 4294901760
    %v3320 = vsub.f32 %v3318, %v3319
    %v3321 = vand.u32 %v3320, 4294901760
    %3322 = vmatmul.f32.gmra.mxu0 %v3321
    %v3323 = vpop.f32.mrf.mxu0
    %v3324 = vadd.f32 %v26, %v3323
    %3325 = vdwg.mxu0
    %3326 = vmatpush.msra.mxu0 0.0
    %3327 = vmatpush.msra.mxu0 0.0
    %3328 = vmatpush.msra.mxu0 0.0
    %3329 = vmatpush.msra.mxu0 0.0
    %3330 = vmatpush.msra.mxu0 0.0
    %3331 = vmatpush.msra.mxu0 0.0
    %3332 = vmatpush.msra.mxu0 0.0
    %3333 = vmatpush.msra.mxu0 0.0
    %3334 = vmatpush.msra.mxu0 0.0
    %3335 = vmatpush.msra.mxu0 0.0
    %3336 = vmatpush.msra.mxu0 0.0
    %v3337 = vand.u32 %v19, 4294901760
    %v3338 = vsub.f32 %v19, %v3337
    %v3339 = vand.u32 %v3338, 4294901760
    %v3340 = vsub.f32 %v3338, %v3339
    %v3341 = vand.u32 %v3340, 4294901760
    %3342 = vmatpush.msra.mxu0 %v3341
    %v3343 = vand.u32 %v18, 4294901760
    %v3344 = vsub.f32 %v18, %v3343
    %v3345 = vand.u32 %v3344, 4294901760
    %v3346 = vsub.f32 %v3344, %v3345
    %v3347 = vand.u32 %v3346, 4294901760
    %3348 = vmatpush.msra.mxu0 %v3347
    %v3349 = vand.u32 %v17, 4294901760
    %v3350 = vsub.f32 %v17, %v3349
    %v3351 = vand.u32 %v3350, 4294901760
    %v3352 = vsub.f32 %v3350, %v3351
    %v3353 = vand.u32 %v3352, 4294901760
    %3354 = vmatpush.msra.mxu0 %v3353
    %v3355 = vand.u32 %v16, 4294901760
    %v3356 = vsub.f32 %v16, %v3355
    %v3357 = vand.u32 %v3356, 4294901760
    %v3358 = vsub.f32 %v3356, %v3357
    %v3359 = vand.u32 %v3358, 4294901760
    %3360 = vmatpush.msra.mxu0 %v3359
    %v3361 = vand.u32 %v15, 4294901760
    %v3362 = vsub.f32 %v15, %v3361
    %v3363 = vand.u32 %v3362, 4294901760
    %v3364 = vsub.f32 %v3362, %v3363
    %v3365 = vand.u32 %v3364, 4294901760
    %3366 = vmatpush.msra.mxu0 %v3365
    %v3367 = vand.u32 %v3294, 4294901760
    %3368 = vmatmul.f32.gmra.mxu0 %v3367
    %v3369 = vpop.f32.mrf.mxu0
    %v3370 = vadd.f32 %v3324, %v3369
    %3371 = vdwg.mxu0
    %3372 = vmatpush.msra.mxu0 0.0
    %3373 = vmatpush.msra.mxu0 0.0
    %3374 = vmatpush.msra.mxu0 0.0
    %3375 = vmatpush.msra.mxu0 0.0
    %3376 = vmatpush.msra.mxu0 0.0
    %3377 = vmatpush.msra.mxu0 0.0
    %3378 = vmatpush.msra.mxu0 0.0
    %3379 = vmatpush.msra.mxu0 0.0
    %3380 = vmatpush.msra.mxu0 0.0
    %3381 = vmatpush.msra.mxu0 0.0
    %3382 = vmatpush.msra.mxu0 0.0
    %v3383 = vand.u32 %v19, 4294901760
    %v3384 = vsub.f32 %v19, %v3383
    %3385 = vmatpush.msra.mxu0 %v3384
    %v3386 = vand.u32 %v18, 4294901760
    %v3387 = vsub.f32 %v18, %v3386
    %3388 = vmatpush.msra.mxu0 %v3387
    %v3389 = vand.u32 %v17, 4294901760
    %v3390 = vsub.f32 %v17, %v3389
    %3391 = vmatpush.msra.mxu0 %v3390
    %v3392 = vand.u32 %v16, 4294901760
    %v3393 = vsub.f32 %v16, %v3392
    %3394 = vmatpush.msra.mxu0 %v3393
    %v3395 = vand.u32 %v15, 4294901760
    %v3396 = vsub.f32 %v15, %v3395
    %3397 = vmatpush.msra.mxu0 %v3396
    %v3398 = vand.u32 %v3294, 4294901760
    %v3399 = vsub.f32 %v3294, %v3398
    %3400 = vmatmul.f32.gmra.mxu0 %v3399
    %v3401 = vpop.f32.mrf.mxu0
    %v3402 = vadd.f32 %v3370, %v3401
    %3403 = vdwg.mxu0
    %3404 = vmatpush.msra.mxu0 0.0
    %3405 = vmatpush.msra.mxu0 0.0
    %3406 = vmatpush.msra.mxu0 0.0
    %3407 = vmatpush.msra.mxu0 0.0
    %3408 = vmatpush.msra.mxu0 0.0
    %3409 = vmatpush.msra.mxu0 0.0
    %3410 = vmatpush.msra.mxu0 0.0
    %3411 = vmatpush.msra.mxu0 0.0
    %3412 = vmatpush.msra.mxu0 0.0
    %3413 = vmatpush.msra.mxu0 0.0
    %3414 = vmatpush.msra.mxu0 0.0
    %v3415 = vand.u32 %v19, 4294901760
    %3416 = vmatpush.msra.mxu0 %v3415
    %v3417 = vand.u32 %v18, 4294901760
    %3418 = vmatpush.msra.mxu0 %v3417
    %v3419 = vand.u32 %v17, 4294901760
    %3420 = vmatpush.msra.mxu0 %v3419
    %v3421 = vand.u32 %v16, 4294901760
    %3422 = vmatpush.msra.mxu0 %v3421
    %v3423 = vand.u32 %v15, 4294901760
    %3424 = vmatpush.msra.mxu0 %v3423
    %v3425 = vand.u32 %v3294, 4294901760
    %v3426 = vsub.f32 %v3294, %v3425
    %v3427 = vand.u32 %v3426, 4294901760
    %3428 = vmatmul.f32.gmra.mxu0 %v3427
    %v3429 = vpop.f32.mrf.mxu0
    %v3430 = vadd.f32 %v3402, %v3429
    %3431 = vdwg.mxu0
    %3432 = vmatpush.msra.mxu0 0.0
    %3433 = vmatpush.msra.mxu0 0.0
    %3434 = vmatpush.msra.mxu0 0.0
    %3435 = vmatpush.msra.mxu0 0.0
    %3436 = vmatpush.msra.mxu0 0.0
    %3437 = vmatpush.msra.mxu0 0.0
    %3438 = vmatpush.msra.mxu0 0.0
    %3439 = vmatpush.msra.mxu0 0.0
    %3440 = vmatpush.msra.mxu0 0.0
    %3441 = vmatpush.msra.mxu0 0.0
    %3442 = vmatpush.msra.mxu0 0.0
    %v3443 = vand.u32 %v19, 4294901760
    %v3444 = vsub.f32 %v19, %v3443
    %v3445 = vand.u32 %v3444, 4294901760
    %3446 = vmatpush.msra.mxu0 %v3445
    %v3447 = vand.u32 %v18, 4294901760
    %v3448 = vsub.f32 %v18, %v3447
    %v3449 = vand.u32 %v3448, 4294901760
    %3450 = vmatpush.msra.mxu0 %v3449
    %v3451 = vand.u32 %v17, 4294901760
    %v3452 = vsub.f32 %v17, %v3451
    %v3453 = vand.u32 %v3452, 4294901760
    %3454 = vmatpush.msra.mxu0 %v3453
    %v3455 = vand.u32 %v16, 4294901760
    %v3456 = vsub.f32 %v16, %v3455
    %v3457 = vand.u32 %v3456, 4294901760
    %3458 = vmatpush.msra.mxu0 %v3457
    %v3459 = vand.u32 %v15, 4294901760
    %v3460 = vsub.f32 %v15, %v3459
    %v3461 = vand.u32 %v3460, 4294901760
    %3462 = vmatpush.msra.mxu0 %v3461
    %v3463 = vand.u32 %v3294, 4294901760
    %3464 = vmatmul.f32.gmra.mxu0 %v3463
    %v3465 = vpop.f32.mrf.mxu0
    %v3466 = vadd.f32 %v3430, %v3465
    %3467 = vdwg.mxu0
    %3468 = vmatpush.msra.mxu0 0.0
    %3469 = vmatpush.msra.mxu0 0.0
    %3470 = vmatpush.msra.mxu0 0.0
    %3471 = vmatpush.msra.mxu0 0.0
    %3472 = vmatpush.msra.mxu0 0.0
    %3473 = vmatpush.msra.mxu0 0.0
    %3474 = vmatpush.msra.mxu0 0.0
    %3475 = vmatpush.msra.mxu0 0.0
    %3476 = vmatpush.msra.mxu0 0.0
    %3477 = vmatpush.msra.mxu0 0.0
    %3478 = vmatpush.msra.mxu0 0.0
    %v3479 = vand.u32 %v19, 4294901760
    %3480 = vmatpush.msra.mxu0 %v3479
    %v3481 = vand.u32 %v18, 4294901760
    %3482 = vmatpush.msra.mxu0 %v3481
    %v3483 = vand.u32 %v17, 4294901760
    %3484 = vmatpush.msra.mxu0 %v3483
    %v3485 = vand.u32 %v16, 4294901760
    %3486 = vmatpush.msra.mxu0 %v3485
    %v3487 = vand.u32 %v15, 4294901760
    %3488 = vmatpush.msra.mxu0 %v3487
    %v3489 = vand.u32 %v3294, 4294901760
    %3490 = vmatmul.f32.gmra.mxu0 %v3489
    %v3491 = vpop.f32.mrf.mxu0
    %v3492 = vadd.f32 %v3466, %v3491
    %3493 = vdwg.mxu0
    %v3494 = vadd.f32 %v374, %v3492
    %v3495 = vmul.f32 %v3284, 0.5
    %v3496 = vsub.f32 %v3280, %v3495
    %v3497 = vmul.f32 %v3496, %v21
    %v3498 = vadd.f32 %v3497, %v3494
    %v3499 = vadd.f32 %v3498, %v3292
    %3501 = vrot.lane.b32.xlu0 %v3499, 93
    %v3502 = vpop.permute.xlu0 %3501
    %3504 = vrot.lane.b32.xlu0 %v3499, 5
    %v3505 = vpop.permute.xlu0 %3504
    %v3507 = vsel %vm592, %v3502, %v3505
    %vm3508 = vcmp.lt.f32.partialorder %v3507, %v3499
    %v3509 = vsel %vm3508, 1, 0
    %v3510 = vcvt.s32.f32 %v3509
    %3511 = vrot.lane.b32.xlu0 %v3499, 98
    %v3512 = vpop.permute.xlu0 %3511
    %3514 = vrot.lane.b32.xlu0 %v3499, 10
    %v3515 = vpop.permute.xlu0 %3514
    %v3517 = vsel %vm603, %v3512, %v3515
    %vm3518 = vcmp.lt.f32.partialorder %v3517, %v3499
    %v3519 = vsel %vm3518, 1, 0
    %v3520 = vcvt.s32.f32 %v3519
    %v3521 = vadd.f32 %v3510, %v3520
    %3522 = vrot.lane.b32.xlu0 %v3499, 103
    %v3523 = vpop.permute.xlu0 %3522
    %3525 = vrot.lane.b32.xlu0 %v3499, 15
    %v3526 = vpop.permute.xlu0 %3525
    %v3528 = vsel %vm615, %v3523, %v3526
    %vm3529 = vcmp.lt.f32.partialorder %v3528, %v3499
    %v3530 = vsel %vm3529, 1, 0
    %v3531 = vcvt.s32.f32 %v3530
    %v3532 = vadd.f32 %v3521, %v3531
    %3533 = vrot.lane.b32.xlu0 %v3499, 108
    %v3534 = vpop.permute.xlu0 %3533
    %3536 = vrot.lane.b32.xlu0 %v3499, 20
    %v3537 = vpop.permute.xlu0 %3536
    %v3539 = vsel %vm627, %v3534, %v3537
    %vm3540 = vcmp.lt.f32.partialorder %v3539, %v3499
    %v3541 = vsel %vm3540, 1, 0
    %v3542 = vcvt.s32.f32 %v3541
    %v3543 = vadd.f32 %v3532, %v3542
    %3544 = vrot.lane.b32.xlu0 %v3499, 113
    %v3545 = vpop.permute.xlu0 %3544
    %3547 = vrot.lane.b32.xlu0 %v3499, 25
    %v3548 = vpop.permute.xlu0 %3547
    %v3550 = vsel %vm639, %v3545, %v3548
    %vm3551 = vcmp.lt.f32.partialorder %v3550, %v3499
    %v3552 = vsel %vm3551, 1, 0
    %v3553 = vcvt.s32.f32 %v3552
    %v3554 = vadd.f32 %v3543, %v3553
    %3555 = vrot.lane.b32.xlu0 %v3499, 118
    %v3556 = vpop.permute.xlu0 %3555
    %3558 = vrot.lane.b32.xlu0 %v3499, 30
    %v3559 = vpop.permute.xlu0 %3558
    %v3561 = vsel %vm651, %v3556, %v3559
    %vm3562 = vcmp.lt.f32.partialorder %v3561, %v3499
    %v3563 = vsel %vm3562, 1, 0
    %v3564 = vcvt.s32.f32 %v3563
    %v3565 = vadd.f32 %v3554, %v3564
    %3566 = vrot.lane.b32.xlu0 %v3499, 123
    %v3567 = vpop.permute.xlu0 %3566
    %3569 = vrot.lane.b32.xlu0 %v3499, 35
    %v3570 = vpop.permute.xlu0 %3569
    %v3572 = vsel %vm663, %v3567, %v3570
    %vm3573 = vcmp.lt.f32.partialorder %v3572, %v3499
    %v3574 = vsel %vm3573, 1, 0
    %v3575 = vcvt.s32.f32 %v3574
    %v3576 = vadd.f32 %v3565, %v3575
    %vm3577 = vcmp.le.f32.partialorder %v3576, 5.0
    %v3578 = vsel %vm3577, %v3499, -1e+30
    %3580 = vrot.lane.b32.xlu0 %v3578, 93
    %v3581 = vpop.permute.xlu0 %3580
    %3583 = vrot.lane.b32.xlu0 %v3578, 5
    %v3584 = vpop.permute.xlu0 %3583
    %v3586 = vsel %vm592, %v3581, %v3584
    %v3587 = vmax.f32 %v3578, %v3586
    %3589 = vrot.lane.b32.xlu0 %v3587, 98
    %v3590 = vpop.permute.xlu0 %3589
    %3592 = vrot.lane.b32.xlu0 %v3587, 10
    %v3593 = vpop.permute.xlu0 %3592
    %v3595 = vsel %vm603, %v3590, %v3593
    %v3596 = vmax.f32 %v3587, %v3595
    %3598 = vrot.lane.b32.xlu0 %v3596, 108
    %v3599 = vpop.permute.xlu0 %3598
    %3601 = vrot.lane.b32.xlu0 %v3596, 20
    %v3602 = vpop.permute.xlu0 %3601
    %v3604 = vsel %vm627, %v3599, %v3602
    %v3605 = vmax.f32 %v3596, %v3604
    %vm3606 = vcmp.le.f32.partialorder %v3576, 6.0
    %v3607 = vsel %vm3606, %v3499, -1e+30
    %3609 = vrot.lane.b32.xlu0 %v3607, 93
    %v3610 = vpop.permute.xlu0 %3609
    %3612 = vrot.lane.b32.xlu0 %v3607, 5
    %v3613 = vpop.permute.xlu0 %3612
    %v3615 = vsel %vm592, %v3610, %v3613
    %v3616 = vmax.f32 %v3607, %v3615
    %3618 = vrot.lane.b32.xlu0 %v3616, 98
    %v3619 = vpop.permute.xlu0 %3618
    %3621 = vrot.lane.b32.xlu0 %v3616, 10
    %v3622 = vpop.permute.xlu0 %3621
    %v3624 = vsel %vm603, %v3619, %v3622
    %v3625 = vmax.f32 %v3616, %v3624
    %3627 = vrot.lane.b32.xlu0 %v3625, 108
    %v3628 = vpop.permute.xlu0 %3627
    %3630 = vrot.lane.b32.xlu0 %v3625, 20
    %v3631 = vpop.permute.xlu0 %3630
    %v3633 = vsel %vm627, %v3628, %v3631
    %v3634 = vmax.f32 %v3625, %v3633
    %v3635 = vsub.f32 %v3634, %v3605
    %v3636 = vmul.f32 %v3635, 0.6
    %v3637 = vadd.f32 %v3605, %v3636
    %v3638 = vsub.f32 %v3499, %v3637
    %v3639 = vmax.f32 %v3638, 0.0
    %v3640 = vsub.f32 %v3639, %v3291
    %vm3641 = vcmp.gt.f32.partialorder %v3640, 0.0
    %v3642 = vsel %vm3641, 1, 0
    %v3643 = vcvt.s32.f32 %v3642
    %v3644 = vadd.f32 %v3289, %v3643
    %vm3645 = vcmask 320512
    %3646 = vst.msk [vmem:[#allocation4] sm:$0x3] %vm3645, %v3644
    %v3647 = vld [vmem:[%s1 + $0x80] sm:$0xff]
    %v3648 = vld [vmem:[%s1 + $0x88] sm:$0xff]
    %v3649 = vld [vmem:[%s1 + $0x90] sm:$0xff]
    %v3650 = vld [vmem:[%s1 + $0x98] sm:$0xff]
    %v3651 = vld [vmem:[%s1 + $0xa0] sm:$0xff]
    %v3652 = vld [vmem:[%s1 + $0x7f] sm:$0x1]
    %v3653 = vperm.slane %v3652, 0
    %v3655 = vsel %vm379, %v3644, 0
    %3657 = vmatpush.msra.mxu0 0.0
    %3658 = vmatpush.msra.mxu0 0.0
    %3659 = vmatpush.msra.mxu0 0.0
    %3660 = vmatpush.msra.mxu0 0.0
    %3661 = vmatpush.msra.mxu0 0.0
    %3662 = vmatpush.msra.mxu0 0.0
    %3663 = vmatpush.msra.mxu0 0.0
    %3664 = vmatpush.msra.mxu0 0.0
    %3665 = vmatpush.msra.mxu0 0.0
    %3666 = vmatpush.msra.mxu0 0.0
    %3667 = vmatpush.msra.mxu0 0.0
    %v3668 = vand.u32 %v3651, 4294901760
    %3669 = vmatpush.msra.mxu0 %v3668
    %v3670 = vand.u32 %v3650, 4294901760
    %3671 = vmatpush.msra.mxu0 %v3670
    %v3672 = vand.u32 %v3649, 4294901760
    %3673 = vmatpush.msra.mxu0 %v3672
    %v3674 = vand.u32 %v3648, 4294901760
    %3675 = vmatpush.msra.mxu0 %v3674
    %v3676 = vand.u32 %v3647, 4294901760
    %3677 = vmatpush.msra.mxu0 %v3676
    %v3678 = vand.u32 %v3655, 4294901760
    %v3679 = vsub.f32 %v3655, %v3678
    %v3680 = vand.u32 %v3679, 4294901760
    %v3681 = vsub.f32 %v3679, %v3680
    %v3682 = vand.u32 %v3681, 4294901760
    %3683 = vmatmul.f32.gmra.mxu0 %v3682
    %v3684 = vpop.f32.mrf.mxu0
    %v3685 = vadd.f32 %v3653, %v3684
    %3686 = vdwg.mxu0
    %3687 = vmatpush.msra.mxu0 0.0
    %3688 = vmatpush.msra.mxu0 0.0
    %3689 = vmatpush.msra.mxu0 0.0
    %3690 = vmatpush.msra.mxu0 0.0
    %3691 = vmatpush.msra.mxu0 0.0
    %3692 = vmatpush.msra.mxu0 0.0
    %3693 = vmatpush.msra.mxu0 0.0
    %3694 = vmatpush.msra.mxu0 0.0
    %3695 = vmatpush.msra.mxu0 0.0
    %3696 = vmatpush.msra.mxu0 0.0
    %3697 = vmatpush.msra.mxu0 0.0
    %v3698 = vand.u32 %v3651, 4294901760
    %v3699 = vsub.f32 %v3651, %v3698
    %v3700 = vand.u32 %v3699, 4294901760
    %v3701 = vsub.f32 %v3699, %v3700
    %v3702 = vand.u32 %v3701, 4294901760
    %3703 = vmatpush.msra.mxu0 %v3702
    %v3704 = vand.u32 %v3650, 4294901760
    %v3705 = vsub.f32 %v3650, %v3704
    %v3706 = vand.u32 %v3705, 4294901760
    %v3707 = vsub.f32 %v3705, %v3706
    %v3708 = vand.u32 %v3707, 4294901760
    %3709 = vmatpush.msra.mxu0 %v3708
    %v3710 = vand.u32 %v3649, 4294901760
    %v3711 = vsub.f32 %v3649, %v3710
    %v3712 = vand.u32 %v3711, 4294901760
    %v3713 = vsub.f32 %v3711, %v3712
    %v3714 = vand.u32 %v3713, 4294901760
    %3715 = vmatpush.msra.mxu0 %v3714
    %v3716 = vand.u32 %v3648, 4294901760
    %v3717 = vsub.f32 %v3648, %v3716
    %v3718 = vand.u32 %v3717, 4294901760
    %v3719 = vsub.f32 %v3717, %v3718
    %v3720 = vand.u32 %v3719, 4294901760
    %3721 = vmatpush.msra.mxu0 %v3720
    %v3722 = vand.u32 %v3647, 4294901760
    %v3723 = vsub.f32 %v3647, %v3722
    %v3724 = vand.u32 %v3723, 4294901760
    %v3725 = vsub.f32 %v3723, %v3724
    %v3726 = vand.u32 %v3725, 4294901760
    %3727 = vmatpush.msra.mxu0 %v3726
    %v3728 = vand.u32 %v3655, 4294901760
    %3729 = vmatmul.f32.gmra.mxu0 %v3728
    %v3730 = vpop.f32.mrf.mxu0
    %v3731 = vadd.f32 %v3685, %v3730
    %3732 = vdwg.mxu0
    %3733 = vmatpush.msra.mxu0 0.0
    %3734 = vmatpush.msra.mxu0 0.0
    %3735 = vmatpush.msra.mxu0 0.0
    %3736 = vmatpush.msra.mxu0 0.0
    %3737 = vmatpush.msra.mxu0 0.0
    %3738 = vmatpush.msra.mxu0 0.0
    %3739 = vmatpush.msra.mxu0 0.0
    %3740 = vmatpush.msra.mxu0 0.0
    %3741 = vmatpush.msra.mxu0 0.0
    %3742 = vmatpush.msra.mxu0 0.0
    %3743 = vmatpush.msra.mxu0 0.0
    %v3744 = vand.u32 %v3651, 4294901760
    %v3745 = vsub.f32 %v3651, %v3744
    %3746 = vmatpush.msra.mxu0 %v3745
    %v3747 = vand.u32 %v3650, 4294901760
    %v3748 = vsub.f32 %v3650, %v3747
    %3749 = vmatpush.msra.mxu0 %v3748
    %v3750 = vand.u32 %v3649, 4294901760
    %v3751 = vsub.f32 %v3649, %v3750
    %3752 = vmatpush.msra.mxu0 %v3751
    %v3753 = vand.u32 %v3648, 4294901760
    %v3754 = vsub.f32 %v3648, %v3753
    %3755 = vmatpush.msra.mxu0 %v3754
    %v3756 = vand.u32 %v3647, 4294901760
    %v3757 = vsub.f32 %v3647, %v3756
    %3758 = vmatpush.msra.mxu0 %v3757
    %v3759 = vand.u32 %v3655, 4294901760
    %v3760 = vsub.f32 %v3655, %v3759
    %3761 = vmatmul.f32.gmra.mxu0 %v3760
    %v3762 = vpop.f32.mrf.mxu0
    %v3763 = vadd.f32 %v3731, %v3762
    %3764 = vdwg.mxu0
    %3765 = vmatpush.msra.mxu0 0.0
    %3766 = vmatpush.msra.mxu0 0.0
    %3767 = vmatpush.msra.mxu0 0.0
    %3768 = vmatpush.msra.mxu0 0.0
    %3769 = vmatpush.msra.mxu0 0.0
    %3770 = vmatpush.msra.mxu0 0.0
    %3771 = vmatpush.msra.mxu0 0.0
    %3772 = vmatpush.msra.mxu0 0.0
    %3773 = vmatpush.msra.mxu0 0.0
    %3774 = vmatpush.msra.mxu0 0.0
    %3775 = vmatpush.msra.mxu0 0.0
    %v3776 = vand.u32 %v3651, 4294901760
    %3777 = vmatpush.msra.mxu0 %v3776
    %v3778 = vand.u32 %v3650, 4294901760
    %3779 = vmatpush.msra.mxu0 %v3778
    %v3780 = vand.u32 %v3649, 4294901760
    %3781 = vmatpush.msra.mxu0 %v3780
    %v3782 = vand.u32 %v3648, 4294901760
    %3783 = vmatpush.msra.mxu0 %v3782
    %v3784 = vand.u32 %v3647, 4294901760
    %3785 = vmatpush.msra.mxu0 %v3784
    %v3786 = vand.u32 %v3655, 4294901760
    %v3787 = vsub.f32 %v3655, %v3786
    %v3788 = vand.u32 %v3787, 4294901760
    %3789 = vmatmul.f32.gmra.mxu0 %v3788
    %v3790 = vpop.f32.mrf.mxu0
    %v3791 = vadd.f32 %v3763, %v3790
    %3792 = vdwg.mxu0
    %3793 = vmatpush.msra.mxu0 0.0
    %3794 = vmatpush.msra.mxu0 0.0
    %3795 = vmatpush.msra.mxu0 0.0
    %3796 = vmatpush.msra.mxu0 0.0
    %3797 = vmatpush.msra.mxu0 0.0
    %3798 = vmatpush.msra.mxu0 0.0
    %3799 = vmatpush.msra.mxu0 0.0
    %3800 = vmatpush.msra.mxu0 0.0
    %3801 = vmatpush.msra.mxu0 0.0
    %3802 = vmatpush.msra.mxu0 0.0
    %3803 = vmatpush.msra.mxu0 0.0
    %v3804 = vand.u32 %v3651, 4294901760
    %v3805 = vsub.f32 %v3651, %v3804
    %v3806 = vand.u32 %v3805, 4294901760
    %3807 = vmatpush.msra.mxu0 %v3806
    %v3808 = vand.u32 %v3650, 4294901760
    %v3809 = vsub.f32 %v3650, %v3808
    %v3810 = vand.u32 %v3809, 4294901760
    %3811 = vmatpush.msra.mxu0 %v3810
    %v3812 = vand.u32 %v3649, 4294901760
    %v3813 = vsub.f32 %v3649, %v3812
    %v3814 = vand.u32 %v3813, 4294901760
    %3815 = vmatpush.msra.mxu0 %v3814
    %v3816 = vand.u32 %v3648, 4294901760
    %v3817 = vsub.f32 %v3648, %v3816
    %v3818 = vand.u32 %v3817, 4294901760
    %3819 = vmatpush.msra.mxu0 %v3818
    %v3820 = vand.u32 %v3647, 4294901760
    %v3821 = vsub.f32 %v3647, %v3820
    %v3822 = vand.u32 %v3821, 4294901760
    %3823 = vmatpush.msra.mxu0 %v3822
    %v3824 = vand.u32 %v3655, 4294901760
    %3825 = vmatmul.f32.gmra.mxu0 %v3824
    %v3826 = vpop.f32.mrf.mxu0
    %v3827 = vadd.f32 %v3791, %v3826
    %3828 = vdwg.mxu0
    %3829 = vmatpush.msra.mxu0 0.0
    %3830 = vmatpush.msra.mxu0 0.0
    %3831 = vmatpush.msra.mxu0 0.0
    %3832 = vmatpush.msra.mxu0 0.0
    %3833 = vmatpush.msra.mxu0 0.0
    %3834 = vmatpush.msra.mxu0 0.0
    %3835 = vmatpush.msra.mxu0 0.0
    %3836 = vmatpush.msra.mxu0 0.0
    %3837 = vmatpush.msra.mxu0 0.0
    %3838 = vmatpush.msra.mxu0 0.0
    %3839 = vmatpush.msra.mxu0 0.0
    %v3840 = vand.u32 %v3651, 4294901760
    %3841 = vmatpush.msra.mxu0 %v3840
    %v3842 = vand.u32 %v3650, 4294901760
    %3843 = vmatpush.msra.mxu0 %v3842
    %v3844 = vand.u32 %v3649, 4294901760
    %3845 = vmatpush.msra.mxu0 %v3844
    %v3846 = vand.u32 %v3648, 4294901760
    %3847 = vmatpush.msra.mxu0 %v3846
    %v3848 = vand.u32 %v3647, 4294901760
    %3849 = vmatpush.msra.mxu0 %v3848
    %v3850 = vand.u32 %v3655, 4294901760
    %3851 = vmatmul.f32.gmra.mxu0 %v3850
    %v3852 = vpop.f32.mrf.mxu0
    %v3853 = vadd.f32 %v3827, %v3852
    %3854 = vdwg.mxu0
    %vm3855 = vcmask 74752
    %3856 = vst.msk [vmem:[#allocation2] sm:$0x3] %vm3855, %v3853
    // Predicated region
    $region10: #{tpu_custom_call.1} parent=1 // pred_check
      _
    $region11: #{tpu_custom_call.1} parent=1 // pred_check_branch
      %3858 = sbr.rel (0) target = $region13
    $region12: #{tpu_custom_call.1} parent=1 // pred_region
      %3860 = vsyncadd [#allocation3], 0
      %s3862 = sshll.u32 [#allocation2], 4
      %s3863 = int_to_ptr.vmem [resolvable:$true] %s3862
      %s3864 = sshll.u32 %s2, 4
      %s3865 = int_to_ptr.hbm [resolvable:$true] %s3864
      %3867 = dma.vmem_to_hbm [thread:$0]  %s3863, 32, %s3865, [#allocation3]
    $region13: #{tpu_custom_call.1} parent=1 // pred_fallthru
      _
    // Predicated region
    $region14: #{tpu_custom_call.1} parent=1 // pred_check
      _
    $region15: #{tpu_custom_call.1} parent=1 // pred_check_branch
      %3869 = sbr.rel (0) target = $region17
    $region16: #{tpu_custom_call.1} parent=1 // pred_region
      %3871 = vsyncadd [#allocation5], 0
      %s3873 = sshll.u32 [#allocation4], 4
      %s3874 = int_to_ptr.vmem [resolvable:$true] %s3873
      %s3875 = sshll.u32 %s3, 4
      %s3876 = int_to_ptr.hbm [resolvable:$true] %s3875
      %3878 = dma.vmem_to_hbm [thread:$0]  %s3874, 32, %s3876, [#allocation5]
    $region17: #{tpu_custom_call.1} parent=1 // pred_fallthru
      _
    // Predicated region
    $region18: #{tpu_custom_call.1} parent=1 // pred_check
      _
    $region19: #{tpu_custom_call.1} parent=1 // pred_check_branch
      %3880 = sbr.rel (0) target = $region21
    $region20: #{tpu_custom_call.1} parent=1 // pred_region
      %3882 = dma.done [#allocation3], 32
    $region21: #{tpu_custom_call.1} parent=1 // pred_fallthru
      _
    // Predicated region
    $region22: #{tpu_custom_call.1} parent=1 // pred_check
      _
    $region23: #{tpu_custom_call.1} parent=1 // pred_check_branch
      %3884 = sbr.rel (0) target = $region25
    $region24: #{tpu_custom_call.1} parent=1 // pred_region
      %3886 = dma.done [#allocation5], 32
    $region25: #{tpu_custom_call.1} parent=1 // pred_fallthru
      _
    %3887 = vsyncpa [#allocation3], 1
    %3888 = vsyncpa [#allocation5], 1

</llo_original>
